<compile_context>
chip_gen: v7x
topology: tpu7x:2x2x1
jax: 0.10.0
libtpu: 0.0.40
codegen_flags: <defaults>
</compile_context>

<pallas_src>
import jax
import jax.numpy as jnp
from jax import lax
from jax.experimental import pallas as pl
from jax.experimental.pallas import tpu as pltpu

NEG_SLOPE = 0.01  # PyTorch F.leaky_relu default negative_slope


def _leaky(x):
    return jnp.where(x > 0, x, NEG_SLOPE * x)


def _build_patches(xpad, patch_ref, H, W, C):
    """im2col: fill the (H*W, 9*C) patch matrix from a padded (H+2, W+2, C) image.

    Column ordering is k = (dy*3 + dx)*C + ci, matching the (9*C, Cout) weight
    repack done in the wrapper.
    """
    for t, (dy, dx) in enumerate((dy, dx) for dy in range(3) for dx in range(3)):
        tap = xpad[dy:dy + H, dx:dx + W, :]               # (H, W, C)
        patch_ref[:, t * C:(t + 1) * C] = tap.reshape(H * W, C)


def fractal_kernel(x_ref, w1_ref, b1_ref, wst_ref, bst_ref, w2t_ref, b2t_ref,
                   o_ref, patch1_ref, patch2_ref, pad_ref):
    # x_ref:  (1, H+2, W+2, C)  one pre-padded batch element (NHWC)
    # o_ref:  (1, C, H*W)       channel-major, lane-dense output slab
    H = x_ref.shape[1] - 2
    W = x_ref.shape[2] - 2
    C = x_ref.shape[3]

    xpad = x_ref[0]                                       # (H+2, W+2, C)

    # --- shared im2col of x, used by conv1 (branch 1) and conv_side (branch 2)
    _build_patches(xpad, patch1_ref, H, W, C)
    P = patch1_ref[...]                                   # (H*W, 9C)

    # branch-1 first conv, spatial-major rows: (H*W, C)
    p1 = _leaky(jnp.dot(P, w1_ref[...], preferred_element_type=jnp.float32)
                + b1_ref[...])

    # side branch, channel-major output (C, H*W): contract last dims (q @ k.T form)
    p2t = _leaky(
        lax.dot_general(wst_ref[...], P,
                        dimension_numbers=(((1,), (1,)), ((), ())),
                        preferred_element_type=jnp.float32)
        + bst_ref[...])

    # --- re-pad p1 for the second conv: zero only the halo border, then the
    #     interior (the interior is fully overwritten every step).
    zc = jnp.zeros((H + 2, 1, C), jnp.float32)
    zr = jnp.zeros((1, W + 2, C), jnp.float32)
    pad_ref[:, 0:1, :] = zc
    pad_ref[:, W + 1:W + 2, :] = zc
    pad_ref[0:1, :, :] = zr
    pad_ref[H + 1:H + 2, :, :] = zr
    pad_ref[1:H + 1, 1:W + 1, :] = p1.reshape(H, W, C)

    # --- second conv of branch 1, channel-major output (C, H*W)
    _build_patches(pad_ref[...], patch2_ref, H, W, C)
    out2t = _leaky(
        lax.dot_general(w2t_ref[...], patch2_ref[...],
                        dimension_numbers=(((1,), (1,)), ((), ())),
                        preferred_element_type=jnp.float32)
        + b2t_ref[...])

    # (p1_branch + p2_branch) / 2 ; (C, H*W) store -> 256-lane unmasked vst.
    o_ref[0] = ((out2t + p2t) * 0.5).astype(o_ref.dtype)


def fractal_block(x_nchw, params):
    """Pallas implementation of FractalBlock(channels, level=0).forward."""
    w1, b1, w2, b2, ws, bs = params           # w*: (3,3,C,C) HWIO, b*: (1,C)
    N, C, H, W = x_nchw.shape

    # Layout plumbing only (no compute hoisted into the wrapper).
    x_nhwc = jnp.transpose(x_nchw, (0, 2, 3, 1)).astype(jnp.float32)
    x_pad = jnp.pad(x_nhwc, ((0, 0), (1, 1), (1, 1), (0, 0)))

    def repack(w):                             # (3,3,Cin,Cout) -> (9*Cin, Cout)
        return w.reshape(9 * C, C).astype(jnp.float32)

    w1r = repack(w1)                           # (9C, C)  canonical dot
    wst = repack(ws).T                         # (C, 9C)  transposed-output dot
    w2t = repack(w2).T                         # (C, 9C)
    b1r = b1.reshape(1, C).astype(jnp.float32)
    bsc = bs.reshape(C, 1).astype(jnp.float32)
    b2c = b2.reshape(C, 1).astype(jnp.float32)

    out_flat = pl.pallas_call(
        fractal_kernel,
        out_shape=jax.ShapeDtypeStruct((N, C, H * W), jnp.float32),
        grid_spec=pltpu.PrefetchScalarGridSpec(
            num_scalar_prefetch=0,
            grid=(N,),
            in_specs=[
                pl.BlockSpec((1, H + 2, W + 2, C), lambda n: (n, 0, 0, 0)),
                pl.BlockSpec((9 * C, C), lambda n: (0, 0)),   # W1 repacked
                pl.BlockSpec((1, C), lambda n: (0, 0)),       # b1 (row)
                pl.BlockSpec((C, 9 * C), lambda n: (0, 0)),   # Ws^T repacked
                pl.BlockSpec((C, 1), lambda n: (0, 0)),       # bs (col)
                pl.BlockSpec((C, 9 * C), lambda n: (0, 0)),   # W2^T repacked
                pl.BlockSpec((C, 1), lambda n: (0, 0)),       # b2 (col)
            ],
            out_specs=pl.BlockSpec((1, C, H * W), lambda n: (n, 0, 0)),
            scratch_shapes=[
                pltpu.VMEM((H * W, 9 * C), jnp.float32),      # im2col(x)
                pltpu.VMEM((H * W, 9 * C), jnp.float32),      # im2col(p1)
                pltpu.VMEM((H + 2, W + 2, C), jnp.float32),   # padded p1
            ],
        ),
        compiler_params=pltpu.CompilerParams(
            dimension_semantics=("parallel",)),
    )(x_pad, w1r, b1r, wst, bsc, w2t, b2c)

    # (N, C, H*W) -> NCHW with a plain reshape (no output transpose needed).
    return out_flat.reshape(N, C, H, W)


def make_params(key, channels):
    """Deterministic synthetic params (PyTorch Conv2d weight OIHW -> HWIO)."""
    keys = jax.random.split(key, 6)
    params = []
    for i in range(3):
        w_oihw = 0.1 * jax.random.normal(keys[2 * i], (channels, channels, 3, 3),
                                         dtype=jnp.float32)
        b = 0.1 * jax.random.normal(keys[2 * i + 1], (channels,),
                                    dtype=jnp.float32)
        w_hwio = jnp.transpose(w_oihw, (2, 3, 1, 0))    # OIHW -> HWIO
        params.extend([w_hwio, b.reshape(1, channels)])
    return tuple(params)


def ref_forward(x_nchw, params):
    """Pure-JAX reference (correctness check only)."""
    w1, b1, w2, b2, ws, bs = params
    x = jnp.transpose(x_nchw, (0, 2, 3, 1)).astype(jnp.float32)

    def conv(v, w, b):
        y = lax.conv_general_dilated(
            v, w, window_strides=(1, 1), padding="SAME",
            dimension_numbers=("NHWC", "HWIO", "NHWC"))
        return y + b.reshape(1, 1, 1, -1)

    p1 = _leaky(conv(x, w1, b1))
    p1 = _leaky(conv(p1, w2, b2))
    p2 = _leaky(conv(x, ws, bs))
    return jnp.transpose((p1 + p2) * 0.5, (0, 3, 1, 2))


if __name__ == "__main__":
    key = jax.random.PRNGKey(0)
    kx, kp = jax.random.split(key)

    N, C, H, W = 2, 4, 16, 16
    x = jax.random.normal(kx, (N, C, H, W), dtype=jnp.float32)
    params = make_params(kp, C)

    out = jax.block_until_ready(fractal_block(x, params))
    ref = jax.block_until_ready(ref_forward(x, params))

    err = float(jnp.max(jnp.abs(out - ref)))
    assert out.shape == (N, C, H, W), out.shape
    assert err < 1e-4, f"mismatch vs reference: {err}"

    print("KERNEL_OK")
</pallas_src>

<mosaic_0001>
module attributes {stable_mosaic.version = 11 : i64} {
  func.func @fractal_kernel(%arg0: i32, %arg1: memref<1x18x18x4xf32, #tpu.memory_space<vmem>>, %arg2: memref<36x4xf32, #tpu.memory_space<vmem>>, %arg3: memref<1x4xf32, #tpu.memory_space<vmem>>, %arg4: memref<4x36xf32, #tpu.memory_space<vmem>>, %arg5: memref<4x1xf32, #tpu.memory_space<vmem>>, %arg6: memref<4x36xf32, #tpu.memory_space<vmem>>, %arg7: memref<4x1xf32, #tpu.memory_space<vmem>>, %arg8: memref<1x4x256xf32, #tpu.memory_space<vmem>>, %arg9: memref<256x36xf32, #tpu.memory_space<vmem>>, %arg10: memref<256x36xf32, #tpu.memory_space<vmem>>, %arg11: memref<18x18x4xf32, #tpu.memory_space<vmem>>) attributes {dimension_semantics = [#tpu.dimension_semantics<parallel>], iteration_bounds = array<i64: 2>, scalar_prefetch = 0 : i64, scratch_operands = 3 : i64, tpu.core_type = #tpu.core_type<tc>, window_params = [{transform_indices = @transform_0, window_bounds = array<i64: 1, 18, 18, 4>}, {pipeline_mode = #tpu.pipeline_mode<synchronous>, transform_indices = @transform_1, window_bounds = array<i64: 36, 4>}, {pipeline_mode = #tpu.pipeline_mode<synchronous>, transform_indices = @transform_2, window_bounds = array<i64: 1, 4>}, {pipeline_mode = #tpu.pipeline_mode<synchronous>, transform_indices = @transform_3, window_bounds = array<i64: 4, 36>}, {pipeline_mode = #tpu.pipeline_mode<synchronous>, transform_indices = @transform_4, window_bounds = array<i64: 4, 1>}, {pipeline_mode = #tpu.pipeline_mode<synchronous>, transform_indices = @transform_5, window_bounds = array<i64: 4, 36>}, {pipeline_mode = #tpu.pipeline_mode<synchronous>, transform_indices = @transform_6, window_bounds = array<i64: 4, 1>}, {transform_indices = @transform_7, window_bounds = array<i64: 1, 4, 256>}]} {
    %c0 = arith.constant 0 : index
    %c0_0 = arith.constant 0 : index
    %c0_1 = arith.constant 0 : index
    %c0_2 = arith.constant 0 : index
    %0 = vector.load %arg1[%c0, %c0_0, %c0_1, %c0_2] : memref<1x18x18x4xf32, #tpu.memory_space<vmem>>, vector<1x18x18x4xf32>
    %1 = vector.shape_cast %0 : vector<1x18x18x4xf32> to vector<18x18x4xf32>
    %2 = vector.extract_strided_slice %1 {offsets = [0, 0, 0], sizes = [16, 16, 4], strides = [1, 1, 1]} : vector<18x18x4xf32> to vector<16x16x4xf32>
    %3 = vector.shape_cast %2 : vector<16x16x4xf32> to vector<256x4xf32>
    %c0_3 = arith.constant 0 : index
    %c0_4 = arith.constant 0 : index
    %4 = vector.load %arg9[%c0_3, %c0_4] : memref<256x36xf32, #tpu.memory_space<vmem>>, vector<256x4xf32>
    tpu.vector_store %arg9[%c0_3, %c0_4], %3 {strides = array<i32>} : memref<256x36xf32, #tpu.memory_space<vmem>>, vector<256x4xf32>,
    %5 = vector.extract_strided_slice %1 {offsets = [0, 1, 0], sizes = [16, 16, 4], strides = [1, 1, 1]} : vector<18x18x4xf32> to vector<16x16x4xf32>
    %6 = vector.shape_cast %5 : vector<16x16x4xf32> to vector<256x4xf32>
    %c0_5 = arith.constant 0 : index
    %c4 = arith.constant 4 : index
    %7 = vector.load %arg9[%c0_5, %c4] : memref<256x36xf32, #tpu.memory_space<vmem>>, vector<256x4xf32>
    tpu.vector_store %arg9[%c0_5, %c4], %6 {strides = array<i32>} : memref<256x36xf32, #tpu.memory_space<vmem>>, vector<256x4xf32>,
    %8 = vector.extract_strided_slice %1 {offsets = [0, 2, 0], sizes = [16, 16, 4], strides = [1, 1, 1]} : vector<18x18x4xf32> to vector<16x16x4xf32>
    %9 = vector.shape_cast %8 : vector<16x16x4xf32> to vector<256x4xf32>
    %c0_6 = arith.constant 0 : index
    %c8 = arith.constant 8 : index
    %10 = vector.load %arg9[%c0_6, %c8] : memref<256x36xf32, #tpu.memory_space<vmem>>, vector<256x4xf32>
    tpu.vector_store %arg9[%c0_6, %c8], %9 {strides = array<i32>} : memref<256x36xf32, #tpu.memory_space<vmem>>, vector<256x4xf32>,
    %11 = vector.extract_strided_slice %1 {offsets = [1, 0, 0], sizes = [16, 16, 4], strides = [1, 1, 1]} : vector<18x18x4xf32> to vector<16x16x4xf32>
    %12 = vector.shape_cast %11 : vector<16x16x4xf32> to vector<256x4xf32>
    %c0_7 = arith.constant 0 : index
    %c12 = arith.constant 12 : index
    %13 = vector.load %arg9[%c0_7, %c12] : memref<256x36xf32, #tpu.memory_space<vmem>>, vector<256x4xf32>
    tpu.vector_store %arg9[%c0_7, %c12], %12 {strides = array<i32>} : memref<256x36xf32, #tpu.memory_space<vmem>>, vector<256x4xf32>,
    %14 = vector.extract_strided_slice %1 {offsets = [1, 1, 0], sizes = [16, 16, 4], strides = [1, 1, 1]} : vector<18x18x4xf32> to vector<16x16x4xf32>
    %15 = vector.shape_cast %14 : vector<16x16x4xf32> to vector<256x4xf32>
    %c0_8 = arith.constant 0 : index
    %c16 = arith.constant 16 : index
    %16 = vector.load %arg9[%c0_8, %c16] : memref<256x36xf32, #tpu.memory_space<vmem>>, vector<256x4xf32>
    tpu.vector_store %arg9[%c0_8, %c16], %15 {strides = array<i32>} : memref<256x36xf32, #tpu.memory_space<vmem>>, vector<256x4xf32>,
    %17 = vector.extract_strided_slice %1 {offsets = [1, 2, 0], sizes = [16, 16, 4], strides = [1, 1, 1]} : vector<18x18x4xf32> to vector<16x16x4xf32>
    %18 = vector.shape_cast %17 : vector<16x16x4xf32> to vector<256x4xf32>
    %c0_9 = arith.constant 0 : index
    %c20 = arith.constant 20 : index
    %19 = vector.load %arg9[%c0_9, %c20] : memref<256x36xf32, #tpu.memory_space<vmem>>, vector<256x4xf32>
    tpu.vector_store %arg9[%c0_9, %c20], %18 {strides = array<i32>} : memref<256x36xf32, #tpu.memory_space<vmem>>, vector<256x4xf32>,
    %20 = vector.extract_strided_slice %1 {offsets = [2, 0, 0], sizes = [16, 16, 4], strides = [1, 1, 1]} : vector<18x18x4xf32> to vector<16x16x4xf32>
    %21 = vector.shape_cast %20 : vector<16x16x4xf32> to vector<256x4xf32>
    %c0_10 = arith.constant 0 : index
    %c24 = arith.constant 24 : index
    %22 = vector.load %arg9[%c0_10, %c24] : memref<256x36xf32, #tpu.memory_space<vmem>>, vector<256x4xf32>
    tpu.vector_store %arg9[%c0_10, %c24], %21 {strides = array<i32>} : memref<256x36xf32, #tpu.memory_space<vmem>>, vector<256x4xf32>,
    %23 = vector.extract_strided_slice %1 {offsets = [2, 1, 0], sizes = [16, 16, 4], strides = [1, 1, 1]} : vector<18x18x4xf32> to vector<16x16x4xf32>
    %24 = vector.shape_cast %23 : vector<16x16x4xf32> to vector<256x4xf32>
    %c0_11 = arith.constant 0 : index
    %c28 = arith.constant 28 : index
    %25 = vector.load %arg9[%c0_11, %c28] : memref<256x36xf32, #tpu.memory_space<vmem>>, vector<256x4xf32>
    tpu.vector_store %arg9[%c0_11, %c28], %24 {strides = array<i32>} : memref<256x36xf32, #tpu.memory_space<vmem>>, vector<256x4xf32>,
    %26 = vector.extract_strided_slice %1 {offsets = [2, 2, 0], sizes = [16, 16, 4], strides = [1, 1, 1]} : vector<18x18x4xf32> to vector<16x16x4xf32>
    %27 = vector.shape_cast %26 : vector<16x16x4xf32> to vector<256x4xf32>
    %c0_12 = arith.constant 0 : index
    %c32 = arith.constant 32 : index
    %28 = vector.load %arg9[%c0_12, %c32] : memref<256x36xf32, #tpu.memory_space<vmem>>, vector<256x4xf32>
    tpu.vector_store %arg9[%c0_12, %c32], %27 {strides = array<i32>} : memref<256x36xf32, #tpu.memory_space<vmem>>, vector<256x4xf32>,
    %c0_13 = arith.constant 0 : index
    %c0_14 = arith.constant 0 : index
    %29 = vector.load %arg9[%c0_13, %c0_14] : memref<256x36xf32, #tpu.memory_space<vmem>>, vector<256x36xf32>
    %c0_15 = arith.constant 0 : index
    %c0_16 = arith.constant 0 : index
    %30 = vector.load %arg2[%c0_15, %c0_16] : memref<36x4xf32, #tpu.memory_space<vmem>>, vector<36x4xf32>
    %cst = arith.constant dense<0.000000e+00> : vector<256x4xf32>
    %31 = tpu.matmul %29, %30, %cst {dimension_numbers = #tpu.dot_dimension_numbers<[1], [0], [0], [1], [0, 0, 1, 1], [], []>} : vector<256x36xf32>, vector<36x4xf32>, vector<256x4xf32> -> vector<256x4xf32>
    %c0_17 = arith.constant 0 : index
    %c0_18 = arith.constant 0 : index
    %32 = vector.load %arg3[%c0_17, %c0_18] : memref<1x4xf32, #tpu.memory_space<vmem>>, vector<1x4xf32>
    %33 = vector.broadcast %32 : vector<1x4xf32> to vector<256x4xf32>
    %34 = arith.addf %31, %33 : vector<256x4xf32>
    %cst_19 = arith.constant 0.000000e+00 : f32
    %35 = vector.broadcast %cst_19 : f32 to vector<256x4xf32>
    %36 = arith.cmpf ogt, %34, %35 : vector<256x4xf32>
    %cst_20 = arith.constant 0.00999999977 : f32
    %37 = vector.broadcast %cst_20 : f32 to vector<256x4xf32>
    %38 = arith.mulf %37, %34 : vector<256x4xf32>
    %39 = arith.select %36, %34, %38 : vector<256x4xi1>, vector<256x4xf32>
    %c0_21 = arith.constant 0 : index
    %c0_22 = arith.constant 0 : index
    %40 = vector.load %arg4[%c0_21, %c0_22] : memref<4x36xf32, #tpu.memory_space<vmem>>, vector<4x36xf32>
    %cst_23 = arith.constant dense<0.000000e+00> : vector<4x256xf32>
    %41 = tpu.matmul %40, %29, %cst_23 {dimension_numbers = #tpu.dot_dimension_numbers<[1], [1], [0], [0], [0, 0, 1, 0], [], []>} : vector<4x36xf32>, vector<256x36xf32>, vector<4x256xf32> -> vector<4x256xf32>
    %c0_24 = arith.constant 0 : index
    %c0_25 = arith.constant 0 : index
    %42 = vector.load %arg5[%c0_24, %c0_25] : memref<4x1xf32, #tpu.memory_space<vmem>>, vector<4x1xf32>
    %43 = vector.broadcast %42 : vector<4x1xf32> to vector<4x256xf32>
    %44 = arith.addf %41, %43 : vector<4x256xf32>
    %cst_26 = arith.constant 0.000000e+00 : f32
    %45 = vector.broadcast %cst_26 : f32 to vector<4x256xf32>
    %46 = arith.cmpf ogt, %44, %45 : vector<4x256xf32>
    %cst_27 = arith.constant 0.00999999977 : f32
    %47 = vector.broadcast %cst_27 : f32 to vector<4x256xf32>
    %48 = arith.mulf %47, %44 : vector<4x256xf32>
    %49 = arith.select %46, %44, %48 : vector<4x256xi1>, vector<4x256xf32>
    %cst_28 = arith.constant 0.000000e+00 : f32
    %50 = vector.broadcast %cst_28 : f32 to vector<18x1x4xf32>
    %cst_29 = arith.constant 0.000000e+00 : f32
    %51 = vector.broadcast %cst_29 : f32 to vector<1x18x4xf32>
    %c0_30 = arith.constant 0 : index
    %c0_31 = arith.constant 0 : index
    %c0_32 = arith.constant 0 : index
    %52 = vector.load %arg11[%c0_30, %c0_31, %c0_32] : memref<18x18x4xf32, #tpu.memory_space<vmem>>, vector<18x1x4xf32>
    tpu.vector_store %arg11[%c0_30, %c0_31, %c0_32], %50 {strides = array<i32>} : memref<18x18x4xf32, #tpu.memory_space<vmem>>, vector<18x1x4xf32>,
    %c0_33 = arith.constant 0 : index
    %c17 = arith.constant 17 : index
    %c0_34 = arith.constant 0 : index
    %53 = vector.load %arg11[%c0_33, %c17, %c0_34] : memref<18x18x4xf32, #tpu.memory_space<vmem>>, vector<18x1x4xf32>
    tpu.vector_store %arg11[%c0_33, %c17, %c0_34], %50 {strides = array<i32>} : memref<18x18x4xf32, #tpu.memory_space<vmem>>, vector<18x1x4xf32>,
    %c0_35 = arith.constant 0 : index
    %c0_36 = arith.constant 0 : index
    %c0_37 = arith.constant 0 : index
    %54 = vector.load %arg11[%c0_35, %c0_36, %c0_37] : memref<18x18x4xf32, #tpu.memory_space<vmem>>, vector<1x18x4xf32>
    tpu.vector_store %arg11[%c0_35, %c0_36, %c0_37], %51 {strides = array<i32>} : memref<18x18x4xf32, #tpu.memory_space<vmem>>, vector<1x18x4xf32>,
    %c17_38 = arith.constant 17 : index
    %c0_39 = arith.constant 0 : index
    %c0_40 = arith.constant 0 : index
    %55 = vector.load %arg11[%c17_38, %c0_39, %c0_40] : memref<18x18x4xf32, #tpu.memory_space<vmem>>, vector<1x18x4xf32>
    tpu.vector_store %arg11[%c17_38, %c0_39, %c0_40], %51 {strides = array<i32>} : memref<18x18x4xf32, #tpu.memory_space<vmem>>, vector<1x18x4xf32>,
    %56 = vector.shape_cast %39 : vector<256x4xf32> to vector<16x16x4xf32>
    %c1 = arith.constant 1 : index
    %c1_41 = arith.constant 1 : index
    %c0_42 = arith.constant 0 : index
    %57 = vector.load %arg11[%c1, %c1_41, %c0_42] : memref<18x18x4xf32, #tpu.memory_space<vmem>>, vector<16x16x4xf32>
    tpu.vector_store %arg11[%c1, %c1_41, %c0_42], %56 {strides = array<i32>} : memref<18x18x4xf32, #tpu.memory_space<vmem>>, vector<16x16x4xf32>,
    %c0_43 = arith.constant 0 : index
    %c0_44 = arith.constant 0 : index
    %c0_45 = arith.constant 0 : index
    %58 = vector.load %arg11[%c0_43, %c0_44, %c0_45] : memref<18x18x4xf32, #tpu.memory_space<vmem>>, vector<18x18x4xf32>
    %59 = vector.extract_strided_slice %58 {offsets = [0, 0, 0], sizes = [16, 16, 4], strides = [1, 1, 1]} : vector<18x18x4xf32> to vector<16x16x4xf32>
    %60 = vector.shape_cast %59 : vector<16x16x4xf32> to vector<256x4xf32>
    %c0_46 = arith.constant 0 : index
    %c0_47 = arith.constant 0 : index
    %61 = vector.load %arg10[%c0_46, %c0_47] : memref<256x36xf32, #tpu.memory_space<vmem>>, vector<256x4xf32>
    tpu.vector_store %arg10[%c0_46, %c0_47], %60 {strides = array<i32>} : memref<256x36xf32, #tpu.memory_space<vmem>>, vector<256x4xf32>,
    %62 = vector.extract_strided_slice %58 {offsets = [0, 1, 0], sizes = [16, 16, 4], strides = [1, 1, 1]} : vector<18x18x4xf32> to vector<16x16x4xf32>
    %63 = vector.shape_cast %62 : vector<16x16x4xf32> to vector<256x4xf32>
    %c0_48 = arith.constant 0 : index
    %c4_49 = arith.constant 4 : index
    %64 = vector.load %arg10[%c0_48, %c4_49] : memref<256x36xf32, #tpu.memory_space<vmem>>, vector<256x4xf32>
    tpu.vector_store %arg10[%c0_48, %c4_49], %63 {strides = array<i32>} : memref<256x36xf32, #tpu.memory_space<vmem>>, vector<256x4xf32>,
    %65 = vector.extract_strided_slice %58 {offsets = [0, 2, 0], sizes = [16, 16, 4], strides = [1, 1, 1]} : vector<18x18x4xf32> to vector<16x16x4xf32>
    %66 = vector.shape_cast %65 : vector<16x16x4xf32> to vector<256x4xf32>
    %c0_50 = arith.constant 0 : index
    %c8_51 = arith.constant 8 : index
    %67 = vector.load %arg10[%c0_50, %c8_51] : memref<256x36xf32, #tpu.memory_space<vmem>>, vector<256x4xf32>
    tpu.vector_store %arg10[%c0_50, %c8_51], %66 {strides = array<i32>} : memref<256x36xf32, #tpu.memory_space<vmem>>, vector<256x4xf32>,
    %68 = vector.extract_strided_slice %58 {offsets = [1, 0, 0], sizes = [16, 16, 4], strides = [1, 1, 1]} : vector<18x18x4xf32> to vector<16x16x4xf32>
    %69 = vector.shape_cast %68 : vector<16x16x4xf32> to vector<256x4xf32>
    %c0_52 = arith.constant 0 : index
    %c12_53 = arith.constant 12 : index
    %70 = vector.load %arg10[%c0_52, %c12_53] : memref<256x36xf32, #tpu.memory_space<vmem>>, vector<256x4xf32>
    tpu.vector_store %arg10[%c0_52, %c12_53], %69 {strides = array<i32>} : memref<256x36xf32, #tpu.memory_space<vmem>>, vector<256x4xf32>,
    %71 = vector.extract_strided_slice %58 {offsets = [1, 1, 0], sizes = [16, 16, 4], strides = [1, 1, 1]} : vector<18x18x4xf32> to vector<16x16x4xf32>
    %72 = vector.shape_cast %71 : vector<16x16x4xf32> to vector<256x4xf32>
    %c0_54 = arith.constant 0 : index
    %c16_55 = arith.constant 16 : index
    %73 = vector.load %arg10[%c0_54, %c16_55] : memref<256x36xf32, #tpu.memory_space<vmem>>, vector<256x4xf32>
    tpu.vector_store %arg10[%c0_54, %c16_55], %72 {strides = array<i32>} : memref<256x36xf32, #tpu.memory_space<vmem>>, vector<256x4xf32>,
    %74 = vector.extract_strided_slice %58 {offsets = [1, 2, 0], sizes = [16, 16, 4], strides = [1, 1, 1]} : vector<18x18x4xf32> to vector<16x16x4xf32>
    %75 = vector.shape_cast %74 : vector<16x16x4xf32> to vector<256x4xf32>
    %c0_56 = arith.constant 0 : index
    %c20_57 = arith.constant 20 : index
    %76 = vector.load %arg10[%c0_56, %c20_57] : memref<256x36xf32, #tpu.memory_space<vmem>>, vector<256x4xf32>
    tpu.vector_store %arg10[%c0_56, %c20_57], %75 {strides = array<i32>} : memref<256x36xf32, #tpu.memory_space<vmem>>, vector<256x4xf32>,
    %77 = vector.extract_strided_slice %58 {offsets = [2, 0, 0], sizes = [16, 16, 4], strides = [1, 1, 1]} : vector<18x18x4xf32> to vector<16x16x4xf32>
    %78 = vector.shape_cast %77 : vector<16x16x4xf32> to vector<256x4xf32>
    %c0_58 = arith.constant 0 : index
    %c24_59 = arith.constant 24 : index
    %79 = vector.load %arg10[%c0_58, %c24_59] : memref<256x36xf32, #tpu.memory_space<vmem>>, vector<256x4xf32>
    tpu.vector_store %arg10[%c0_58, %c24_59], %78 {strides = array<i32>} : memref<256x36xf32, #tpu.memory_space<vmem>>, vector<256x4xf32>,
    %80 = vector.extract_strided_slice %58 {offsets = [2, 1, 0], sizes = [16, 16, 4], strides = [1, 1, 1]} : vector<18x18x4xf32> to vector<16x16x4xf32>
    %81 = vector.shape_cast %80 : vector<16x16x4xf32> to vector<256x4xf32>
    %c0_60 = arith.constant 0 : index
    %c28_61 = arith.constant 28 : index
    %82 = vector.load %arg10[%c0_60, %c28_61] : memref<256x36xf32, #tpu.memory_space<vmem>>, vector<256x4xf32>
    tpu.vector_store %arg10[%c0_60, %c28_61], %81 {strides = array<i32>} : memref<256x36xf32, #tpu.memory_space<vmem>>, vector<256x4xf32>,
    %83 = vector.extract_strided_slice %58 {offsets = [2, 2, 0], sizes = [16, 16, 4], strides = [1, 1, 1]} : vector<18x18x4xf32> to vector<16x16x4xf32>
    %84 = vector.shape_cast %83 : vector<16x16x4xf32> to vector<256x4xf32>
    %c0_62 = arith.constant 0 : index
    %c32_63 = arith.constant 32 : index
    %85 = vector.load %arg10[%c0_62, %c32_63] : memref<256x36xf32, #tpu.memory_space<vmem>>, vector<256x4xf32>
    tpu.vector_store %arg10[%c0_62, %c32_63], %84 {strides = array<i32>} : memref<256x36xf32, #tpu.memory_space<vmem>>, vector<256x4xf32>,
    %c0_64 = arith.constant 0 : index
    %c0_65 = arith.constant 0 : index
    %86 = vector.load %arg6[%c0_64, %c0_65] : memref<4x36xf32, #tpu.memory_space<vmem>>, vector<4x36xf32>
    %c0_66 = arith.constant 0 : index
    %c0_67 = arith.constant 0 : index
    %87 = vector.load %arg10[%c0_66, %c0_67] : memref<256x36xf32, #tpu.memory_space<vmem>>, vector<256x36xf32>
    %cst_68 = arith.constant dense<0.000000e+00> : vector<4x256xf32>
    %88 = tpu.matmul %86, %87, %cst_68 {dimension_numbers = #tpu.dot_dimension_numbers<[1], [1], [0], [0], [0, 0, 1, 0], [], []>} : vector<4x36xf32>, vector<256x36xf32>, vector<4x256xf32> -> vector<4x256xf32>
    %c0_69 = arith.constant 0 : index
    %c0_70 = arith.constant 0 : index
    %89 = vector.load %arg7[%c0_69, %c0_70] : memref<4x1xf32, #tpu.memory_space<vmem>>, vector<4x1xf32>
    %90 = vector.broadcast %89 : vector<4x1xf32> to vector<4x256xf32>
    %91 = arith.addf %88, %90 : vector<4x256xf32>
    %cst_71 = arith.constant 0.000000e+00 : f32
    %92 = vector.broadcast %cst_71 : f32 to vector<4x256xf32>
    %93 = arith.cmpf ogt, %91, %92 : vector<4x256xf32>
    %cst_72 = arith.constant 0.00999999977 : f32
    %94 = vector.broadcast %cst_72 : f32 to vector<4x256xf32>
    %95 = arith.mulf %94, %91 : vector<4x256xf32>
    %96 = arith.select %93, %91, %95 : vector<4x256xi1>, vector<4x256xf32>
    %97 = arith.addf %96, %49 : vector<4x256xf32>
    %cst_73 = arith.constant 5.000000e-01 : f32
    %98 = vector.broadcast %cst_73 : f32 to vector<4x256xf32>
    %99 = arith.mulf %97, %98 : vector<4x256xf32>
    %c0_74 = arith.constant 0 : index
    %c0_75 = arith.constant 0 : index
    %c0_76 = arith.constant 0 : index
    %100 = vector.load %arg8[%c0_74, %c0_75, %c0_76] : memref<1x4x256xf32, #tpu.memory_space<vmem>>, vector<1x4x256xf32>
    %101 = vector.shape_cast %100 : vector<1x4x256xf32> to vector<4x256xf32>
    %102 = vector.shape_cast %99 : vector<4x256xf32> to vector<1x4x256xf32>
    tpu.vector_store %arg8[%c0_74, %c0_75, %c0_76], %102 {strides = array<i32>} : memref<1x4x256xf32, #tpu.memory_space<vmem>>, vector<1x4x256xf32>,
    return
  }
  func.func @transform_0(%arg0: i32) -> (i32, i32, i32, i32) {
    %c0_i32 = arith.constant 0 : i32
    %c0_i32_0 = arith.constant 0 : i32
    %c0_i32_1 = arith.constant 0 : i32
    %c0_i32_2 = arith.constant 0 : i32
    return %arg0, %c0_i32, %c0_i32_0, %c0_i32_1 : i32, i32, i32, i32
  }
  func.func @transform_1(%arg0: i32) -> (i32, i32) {
    %c0_i32 = arith.constant 0 : i32
    %c0_i32_0 = arith.constant 0 : i32
    %c0_i32_1 = arith.constant 0 : i32
    return %c0_i32, %c0_i32_0 : i32, i32
  }
  func.func @transform_2(%arg0: i32) -> (i32, i32) {
    %c0_i32 = arith.constant 0 : i32
    %c0_i32_0 = arith.constant 0 : i32
    %c0_i32_1 = arith.constant 0 : i32
    return %c0_i32, %c0_i32_0 : i32, i32
  }
  func.func @transform_3(%arg0: i32) -> (i32, i32) {
    %c0_i32 = arith.constant 0 : i32
    %c0_i32_0 = arith.constant 0 : i32
    %c0_i32_1 = arith.constant 0 : i32
    return %c0_i32, %c0_i32_0 : i32, i32
  }
  func.func @transform_4(%arg0: i32) -> (i32, i32) {
    %c0_i32 = arith.constant 0 : i32
    %c0_i32_0 = arith.constant 0 : i32
    %c0_i32_1 = arith.constant 0 : i32
    return %c0_i32, %c0_i32_0 : i32, i32
  }
  func.func @transform_5(%arg0: i32) -> (i32, i32) {
    %c0_i32 = arith.constant 0 : i32
    %c0_i32_0 = arith.constant 0 : i32
    %c0_i32_1 = arith.constant 0 : i32
    return %c0_i32, %c0_i32_0 : i32, i32
  }
  func.func @transform_6(%arg0: i32) -> (i32, i32) {
    %c0_i32 = arith.constant 0 : i32
    %c0_i32_0 = arith.constant 0 : i32
    %c0_i32_1 = arith.constant 0 : i32
    return %c0_i32, %c0_i32_0 : i32, i32
  }
  func.func @transform_7(%arg0: i32) -> (i32, i32, i32) {
    %c0_i32 = arith.constant 0 : i32
    %c0_i32_0 = arith.constant 0 : i32
    %c0_i32_1 = arith.constant 0 : i32
    return %arg0, %c0_i32, %c0_i32_0 : i32, i32, i32
  }
}

</mosaic_0001>

<llo_original>
// kernel: tpu_custom_call.1
$region0: #{tpu_custom_call.1}
  #allocation0 [shape = 'u32[]', space=smem, size = 0x4, offset = 0x4, fixed_abs, tag = 'smem constant byte address 0x4 - core index']
  #allocation1 [shape = 'u32[144,128]{1,0:T(1,128)}', space=vmem, size = 0x12000, scoped, tag = 'internal scratch']
  #allocation2 [shape = 'f32[256,36]{1,0:T(8,128)}', space=vmem, size = 0x20000, scoped, tag = 'scratch operand']
  #allocation3 [shape = 'f32[256,36]{1,0:T(8,128)}', space=vmem, size = 0x20000, scoped, tag = 'scratch operand']
  #allocation4 [shape = 'f32[18,18,4]{2,1,0:T(8,128)}', space=vmem, size = 0x36000, scoped, tag = 'scratch operand']
  %s0 = inlined_call_operand.vmem [shape: f32[2,18,18,4], index: 0, kind: input, shape index: {}]
  %s1 = inlined_call_operand.vmem [shape: f32[36,4], index: 1, kind: input, shape index: {}]
  %s2 = inlined_call_operand.vmem [shape: f32[1,4], index: 2, kind: input, shape index: {}]
  %s3 = inlined_call_operand.vmem [shape: f32[4,36], index: 3, kind: input, shape index: {}]
  %s4 = inlined_call_operand.vmem [shape: f32[4,1], index: 4, kind: input, shape index: {}]
  %s5 = inlined_call_operand.vmem [shape: f32[4,36], index: 5, kind: input, shape index: {}]
  %s6 = inlined_call_operand.vmem [shape: f32[4,1], index: 6, kind: input, shape index: {}]
  %s7 = inlined_call_operand.hbm [shape: f32[2,4,256], index: 7, kind: output, shape index: {}]
  %s8 = sld [smem:[#allocation0]]
  $region61: #{tpu_custom_call.1} parent=0
    _
  %s10 = ssub.s32 1, %s8
  %s11 = scalar_select 0, %s10, %s8
  $region1: #{tpu_custom_call.1} parent=0
    #allocation5 [shape = 'u8[8192]{0}', space=vmem, size = 0x2000, scoped, tag = 'output window, operand 0']
    #allocation6 [shape = 's32[2]{0}', space=sflag, size = 0x8, scoped, tag = 'scoped memory for tpu_custom_call.1']
    %12 = vsyncpa [#allocation6], 0
    %s13 = scalar_lea.sflag [#allocation6], 1
    %14 = vsyncpa %s13, 0
    loop: start=0, step=1, limit=4
    $region2: #{tpu_custom_call.1} parent=1 // loop_pre_header
      _
    $region3: #{tpu_custom_call.1} parent=1 // loop_header
      %s16 = sphi 0, %s20
      %p17 = scmp.ge.s32.totalorder %s16, 4
      %s26 = sphi 0, %s28
      %s29 = sphi 0, %s26
      %s30 = sphi 0, %s29
      %s46 = sphi 0, %s30
      %s50 = sphi 0, %s50
      %s52 = sphi 0, %s50
      %s53 = sphi 0, %s52
      %s67 = sphi 0, %s53
      %s71 = sphi 0, %s71
      %s73 = sphi 0, %s71
      %s74 = sphi 0, %s73
      %s88 = sphi 0, %s74
      %s92 = sphi 0, %s92
      %s94 = sphi 0, %s92
      %s95 = sphi 0, %s94
      %s109 = sphi 0, %s95
      %s113 = sphi 0, %s113
      %s115 = sphi 0, %s113
      %s116 = sphi 0, %s115
      %s130 = sphi 0, %s116
      %s134 = sphi 0, %s134
      %s136 = sphi 0, %s134
      %s137 = sphi 0, %s136
      %s151 = sphi 0, %s137
      %s155 = sphi 0, %s155
      %s157 = sphi 0, %s155
      %s158 = sphi 0, %s157
      %s172 = sphi 0, %s158
      %s178 = sphi 0, %s180
      %s181 = sphi 0, %s178
      %s182 = sphi 0, %s181
      %s198 = sphi 0, %s182
    $region4: #{tpu_custom_call.1} parent=1 // loop_header_branch
      %19 = sbr.rel (%p17) target = $region8
    $region5: #{tpu_custom_call.1} parent=1 // loop_body
      %s21 = ssub.s32 %s16, 1
      %s22 = ssub.s32 %s16, 2
      %s23 = sadd.s32 %s16, 1
      %s24 = ssub.s32 %s16, %s23
      %p25 = scmp.eq.s32.totalorder %s24, 0
      %s27 = sadd.s32 %s26, 1
      %s28 = scalar_select %p25, %s26, %s27
      %p31 = pneg %p25
      %p32 = scmp.eq.s32.totalorder %s16, 1
      %p33 = por %p31, %p32
      %p34 = scmp.ne.s32.totalorder %s26, %s29
      %p35 = scmp.eq.s32.totalorder %s16, 0
      %p36 = por %p34, %p35
      %p37 = scmp.ne.s32.totalorder %s26, %s29
      %p38 = scmp.eq.s32.totalorder %s21, 1
      %p39 = por %p37, %p38
      %p40 = scmp.ne.s32.totalorder %s29, %s30
      %p41 = scmp.eq.s32.totalorder %s21, 0
      %p42 = por %p40, %p41
      %p43 = scmp.ne.s32.totalorder %s29, %s30
      %p44 = scmp.eq.s32.totalorder %s22, 1
      %p45 = por %p43, %p44
      %p47 = scmp.ne.s32.totalorder %s30, %s46
      %p48 = scmp.eq.s32.totalorder %s22, 0
      %p49 = por %p47, %p48
      %s51 = sadd.s32 %s50, 1
      %p54 = scmp.eq.s32.totalorder %s16, 1
      %p55 = scmp.ne.s32.totalorder %s50, %s52
      %p56 = scmp.eq.s32.totalorder %s16, 0
      %p57 = por %p55, %p56
      %p58 = scmp.ne.s32.totalorder %s50, %s52
      %p59 = scmp.eq.s32.totalorder %s21, 1
      %p60 = por %p58, %p59
      %p61 = scmp.ne.s32.totalorder %s52, %s53
      %p62 = scmp.eq.s32.totalorder %s21, 0
      %p63 = por %p61, %p62
      %p64 = scmp.ne.s32.totalorder %s52, %s53
      %p65 = scmp.eq.s32.totalorder %s22, 1
      %p66 = por %p64, %p65
      %p68 = scmp.ne.s32.totalorder %s53, %s67
      %p69 = scmp.eq.s32.totalorder %s22, 0
      %p70 = por %p68, %p69
      %s72 = sadd.s32 %s71, 1
      %p75 = scmp.eq.s32.totalorder %s16, 1
      %p76 = scmp.ne.s32.totalorder %s71, %s73
      %p77 = scmp.eq.s32.totalorder %s16, 0
      %p78 = por %p76, %p77
      %p79 = scmp.ne.s32.totalorder %s71, %s73
      %p80 = scmp.eq.s32.totalorder %s21, 1
      %p81 = por %p79, %p80
      %p82 = scmp.ne.s32.totalorder %s73, %s74
      %p83 = scmp.eq.s32.totalorder %s21, 0
      %p84 = por %p82, %p83
      %p85 = scmp.ne.s32.totalorder %s73, %s74
      %p86 = scmp.eq.s32.totalorder %s22, 1
      %p87 = por %p85, %p86
      %p89 = scmp.ne.s32.totalorder %s74, %s88
      %p90 = scmp.eq.s32.totalorder %s22, 0
      %p91 = por %p89, %p90
      %s93 = sadd.s32 %s92, 1
      %p96 = scmp.eq.s32.totalorder %s16, 1
      %p97 = scmp.ne.s32.totalorder %s92, %s94
      %p98 = scmp.eq.s32.totalorder %s16, 0
      %p99 = por %p97, %p98
      %p100 = scmp.ne.s32.totalorder %s92, %s94
      %p101 = scmp.eq.s32.totalorder %s21, 1
      %p102 = por %p100, %p101
      %p103 = scmp.ne.s32.totalorder %s94, %s95
      %p104 = scmp.eq.s32.totalorder %s21, 0
      %p105 = por %p103, %p104
      %p106 = scmp.ne.s32.totalorder %s94, %s95
      %p107 = scmp.eq.s32.totalorder %s22, 1
      %p108 = por %p106, %p107
      %p110 = scmp.ne.s32.totalorder %s95, %s109
      %p111 = scmp.eq.s32.totalorder %s22, 0
      %p112 = por %p110, %p111
      %s114 = sadd.s32 %s113, 1
      %p117 = scmp.eq.s32.totalorder %s16, 1
      %p118 = scmp.ne.s32.totalorder %s113, %s115
      %p119 = scmp.eq.s32.totalorder %s16, 0
      %p120 = por %p118, %p119
      %p121 = scmp.ne.s32.totalorder %s113, %s115
      %p122 = scmp.eq.s32.totalorder %s21, 1
      %p123 = por %p121, %p122
      %p124 = scmp.ne.s32.totalorder %s115, %s116
      %p125 = scmp.eq.s32.totalorder %s21, 0
      %p126 = por %p124, %p125
      %p127 = scmp.ne.s32.totalorder %s115, %s116
      %p128 = scmp.eq.s32.totalorder %s22, 1
      %p129 = por %p127, %p128
      %p131 = scmp.ne.s32.totalorder %s116, %s130
      %p132 = scmp.eq.s32.totalorder %s22, 0
      %p133 = por %p131, %p132
      %s135 = sadd.s32 %s134, 1
      %p138 = scmp.eq.s32.totalorder %s16, 1
      %p139 = scmp.ne.s32.totalorder %s134, %s136
      %p140 = scmp.eq.s32.totalorder %s16, 0
      %p141 = por %p139, %p140
      %p142 = scmp.ne.s32.totalorder %s134, %s136
      %p143 = scmp.eq.s32.totalorder %s21, 1
      %p144 = por %p142, %p143
      %p145 = scmp.ne.s32.totalorder %s136, %s137
      %p146 = scmp.eq.s32.totalorder %s21, 0
      %p147 = por %p145, %p146
      %p148 = scmp.ne.s32.totalorder %s136, %s137
      %p149 = scmp.eq.s32.totalorder %s22, 1
      %p150 = por %p148, %p149
      %p152 = scmp.ne.s32.totalorder %s137, %s151
      %p153 = scmp.eq.s32.totalorder %s22, 0
      %p154 = por %p152, %p153
      %s156 = sadd.s32 %s155, 1
      %p159 = scmp.eq.s32.totalorder %s16, 1
      %p160 = scmp.ne.s32.totalorder %s155, %s157
      %p161 = scmp.eq.s32.totalorder %s16, 0
      %p162 = por %p160, %p161
      %p163 = scmp.ne.s32.totalorder %s155, %s157
      %p164 = scmp.eq.s32.totalorder %s21, 1
      %p165 = por %p163, %p164
      %p166 = scmp.ne.s32.totalorder %s157, %s158
      %p167 = scmp.eq.s32.totalorder %s21, 0
      %p168 = por %p166, %p167
      %p169 = scmp.ne.s32.totalorder %s157, %s158
      %p170 = scmp.eq.s32.totalorder %s22, 1
      %p171 = por %p169, %p170
      %p173 = scmp.ne.s32.totalorder %s158, %s172
      %p174 = scmp.eq.s32.totalorder %s22, 0
      %p175 = por %p173, %p174
      %s176 = ssub.s32 %s16, %s23
      %p177 = scmp.eq.s32.totalorder %s176, 0
      %s179 = sadd.s32 %s178, 1
      %s180 = scalar_select %p177, %s178, %s179
      %p183 = pneg %p177
      %p184 = scmp.eq.s32.totalorder %s16, 1
      %p185 = por %p183, %p184
      %p186 = scmp.ne.s32.totalorder %s178, %s181
      %p187 = scmp.eq.s32.totalorder %s16, 0
      %p188 = por %p186, %p187
      %p189 = scmp.ne.s32.totalorder %s178, %s181
      %p190 = scmp.eq.s32.totalorder %s21, 1
      %p191 = por %p189, %p190
      %p192 = scmp.ne.s32.totalorder %s181, %s182
      %p193 = scmp.eq.s32.totalorder %s21, 0
      %p194 = por %p192, %p193
      %p195 = scmp.ne.s32.totalorder %s181, %s182
      %p196 = scmp.eq.s32.totalorder %s22, 1
      %p197 = por %p195, %p196
      %p199 = scmp.ne.s32.totalorder %s182, %s198
      %p200 = scmp.eq.s32.totalorder %s22, 0
      %p201 = por %p199, %p200
      %p202 = scmp.le.s32.totalorder 1, %s16
      %p203 = scmp.lt.s32.totalorder %s16, 3
      %p204 = pnand %p202, %p203
      %p205 = pneg %p204
      // Predicated region
      $region9: #{tpu_custom_call.1} parent=5 // pred_check
        _
      $region10: #{tpu_custom_call.1} parent=5 // pred_check_branch
        %207 = sbr.rel (%p204) target = $region12
      $region11: #{tpu_custom_call.1} parent=5 // pred_region
        %s208 = ssub.s32 %s16, 1
        // Predicated region
        $region13: #{tpu_custom_call.1} parent=11 // pred_check
          %p209 = pneg %p63
        $region14: #{tpu_custom_call.1} parent=11 // pred_check_branch
          %211 = sbr.rel (%p209) target = $region16
        $region15: #{tpu_custom_call.1} parent=11 // pred_region
          _
        $region16: #{tpu_custom_call.1} parent=11 // pred_fallthru
          _
        // Predicated region
        $region17: #{tpu_custom_call.1} parent=11 // pred_check
          %p212 = pneg %p84
        $region18: #{tpu_custom_call.1} parent=11 // pred_check_branch
          %214 = sbr.rel (%p212) target = $region20
        $region19: #{tpu_custom_call.1} parent=11 // pred_region
          _
        $region20: #{tpu_custom_call.1} parent=11 // pred_fallthru
          _
        // Predicated region
        $region21: #{tpu_custom_call.1} parent=11 // pred_check
          %p215 = pneg %p105
        $region22: #{tpu_custom_call.1} parent=11 // pred_check_branch
          %217 = sbr.rel (%p215) target = $region24
        $region23: #{tpu_custom_call.1} parent=11 // pred_region
          _
        $region24: #{tpu_custom_call.1} parent=11 // pred_fallthru
          _
        // Predicated region
        $region25: #{tpu_custom_call.1} parent=11 // pred_check
          %p218 = pneg %p126
        $region26: #{tpu_custom_call.1} parent=11 // pred_check_branch
          %220 = sbr.rel (%p218) target = $region28
        $region27: #{tpu_custom_call.1} parent=11 // pred_region
          _
        $region28: #{tpu_custom_call.1} parent=11 // pred_fallthru
          _
        // Predicated region
        $region29: #{tpu_custom_call.1} parent=11 // pred_check
          %p221 = pneg %p147
        $region30: #{tpu_custom_call.1} parent=11 // pred_check_branch
          %223 = sbr.rel (%p221) target = $region32
        $region31: #{tpu_custom_call.1} parent=11 // pred_region
          _
        $region32: #{tpu_custom_call.1} parent=11 // pred_fallthru
          _
        // Predicated region
        $region33: #{tpu_custom_call.1} parent=11 // pred_check
          %p224 = pneg %p168
        $region34: #{tpu_custom_call.1} parent=11 // pred_check_branch
          %226 = sbr.rel (%p224) target = $region36
        $region35: #{tpu_custom_call.1} parent=11 // pred_region
          _
        $region36: #{tpu_custom_call.1} parent=11 // pred_fallthru
          _
      $region12: #{tpu_custom_call.1} parent=5 // pred_fallthru
        _
      %p227 = scmp.lt.s32.totalorder %s16, 2
      // Predicated region
      $region37: #{tpu_custom_call.1} parent=5 // pred_check
        %p228 = pneg %p227
      $region38: #{tpu_custom_call.1} parent=5 // pred_check_branch
        %230 = sbr.rel (%p228) target = $region40
      $region39: #{tpu_custom_call.1} parent=5 // pred_region
        // Predicated region
        $region41: #{tpu_custom_call.1} parent=39 // pred_check
          %p231 = pneg %p36
        $region42: #{tpu_custom_call.1} parent=39 // pred_check_branch
          %233 = sbr.rel (%p231) target = $region44
        $region43: #{tpu_custom_call.1} parent=39 // pred_region
          %p234 = scmp.lt.s32.totalorder %s16, 1
          %s235 = scalar_select %p234, %s16, 1
          %s236 = smul.addr %s235, 54
          %s237 = smul.addr %s236, 8
          %s238 = scalar_lea.vmem %s0, %s237
        $region44: #{tpu_custom_call.1} parent=39 // pred_fallthru
          _
      $region40: #{tpu_custom_call.1} parent=5 // pred_fallthru
        _
      %p239 = scmp.le.s32.totalorder 1, %s16
      %p240 = scmp.lt.s32.totalorder %s16, 3
      %p241 = pnand %p239, %p240
      %p242 = pneg %p241
      // Predicated region
      $region45: #{tpu_custom_call.1} parent=5 // pred_check
        _
      $region46: #{tpu_custom_call.1} parent=5 // pred_check_branch
        %244 = sbr.rel (%p241) target = $region48
      $region47: #{tpu_custom_call.1} parent=5 // pred_region
        %s245 = ssub.s32 %s16, 1
        %p246 = scmp.lt.s32.totalorder %s21, 1
        %s247 = scalar_select %p246, %s21, 1
        %s248 = smul.addr %s247, 54
        %s249 = smul.addr %s248, 8
        %s250 = scalar_lea.vmem %s0, %s249
        %p251 = pneg %p42
        %p252 = pneg %p39
        %p253 = pneg %p63
        %p254 = pneg %p60
        %p255 = pneg %p84
        %p256 = pneg %p81
        %p257 = pneg %p105
        %p258 = pneg %p102
        %p259 = pneg %p126
        %p260 = pneg %p123
        %p261 = pneg %p147
        %p262 = pneg %p144
        %p263 = pneg %p168
        %p264 = pneg %p165
        %p265 = pneg %p194
        %p266 = pneg %p191
        %s267 = sand.u32 %s181, 1
        %s268 = scalar_lea.sflag [#allocation6], %s267
        %s269 = sand.u32 %s181, 1
        %s270 = smul.addr %s269, 8
        %s271 = scalar_lea.vmem [#allocation5], %s270
        %p272 = scmp.lt.s32.totalorder %s21, 1
        %s273 = scalar_select %p272, %s21, 1
        %s274 = smul.addr %s273, 54
        %s275 = smul.addr %s274, 8
        %s276 = scalar_lea.vmem %s0, %s275
        %v277 = vld [vmem:[%s276] sm:$0xff]
        %v278 = vld [vmem:[%s276 + $0x8] sm:$0xff]
        %v279 = vld [vmem:[%s276 + $0x10] sm:$0x3]
        %v280 = vld [vmem:[%s276 + $0x18] sm:$0xff]
        %v281 = vld [vmem:[%s276 + $0x20] sm:$0xff]
        %v282 = vld [vmem:[%s276 + $0x28] sm:$0x3]
        %v283 = vld [vmem:[%s276 + $0x30] sm:$0xff]
        %v284 = vld [vmem:[%s276 + $0x38] sm:$0xff]
        %v285 = vld [vmem:[%s276 + $0x40] sm:$0x3]
        %v286 = vld [vmem:[%s276 + $0x48] sm:$0xff]
        %v287 = vld [vmem:[%s276 + $0x50] sm:$0xff]
        %v288 = vld [vmem:[%s276 + $0x58] sm:$0x3]
        %v289 = vld [vmem:[%s276 + $0x60] sm:$0xff]
        %v290 = vld [vmem:[%s276 + $0x68] sm:$0xff]
        %v291 = vld [vmem:[%s276 + $0x70] sm:$0x3]
        %v292 = vld [vmem:[%s276 + $0x78] sm:$0xff]
        %v293 = vld [vmem:[%s276 + $0x80] sm:$0xff]
        %v294 = vld [vmem:[%s276 + $0x88] sm:$0x3]
        %v295 = vld [vmem:[%s276 + $0x90] sm:$0xff]
        %v296 = vld [vmem:[%s276 + $0x98] sm:$0xff]
        %v297 = vld [vmem:[%s276 + $0xa0] sm:$0x3]
        %v298 = vld [vmem:[%s276 + $0xa8] sm:$0xff]
        %v299 = vld [vmem:[%s276 + $0xb0] sm:$0xff]
        %v300 = vld [vmem:[%s276 + $0xb8] sm:$0x3]
        %v301 = vld [vmem:[%s276 + $0xc0] sm:$0xff]
        %v302 = vld [vmem:[%s276 + $0xc8] sm:$0xff]
        %v303 = vld [vmem:[%s276 + $0xd0] sm:$0x3]
        %v304 = vld [vmem:[%s276 + $0xd8] sm:$0xff]
        %v305 = vld [vmem:[%s276 + $0xe0] sm:$0xff]
        %v306 = vld [vmem:[%s276 + $0xe8] sm:$0x3]
        %v307 = vld [vmem:[%s276 + $0xf0] sm:$0xff]
        %v308 = vld [vmem:[%s276 + $0xf8] sm:$0xff]
        %v309 = vld [vmem:[%s276 + $0x100] sm:$0x3]
        %v310 = vld [vmem:[%s276 + $0x108] sm:$0xff]
        %v311 = vld [vmem:[%s276 + $0x110] sm:$0xff]
        %v312 = vld [vmem:[%s276 + $0x118] sm:$0x3]
        %v313 = vld [vmem:[%s276 + $0x120] sm:$0xff]
        %v314 = vld [vmem:[%s276 + $0x128] sm:$0xff]
        %v315 = vld [vmem:[%s276 + $0x130] sm:$0x3]
        %v316 = vld [vmem:[%s276 + $0x138] sm:$0xff]
        %v317 = vld [vmem:[%s276 + $0x140] sm:$0xff]
        %v318 = vld [vmem:[%s276 + $0x148] sm:$0x3]
        %v319 = vld [vmem:[%s276 + $0x150] sm:$0xff]
        %v320 = vld [vmem:[%s276 + $0x158] sm:$0xff]
        %v321 = vld [vmem:[%s276 + $0x160] sm:$0x3]
        %v322 = vld [vmem:[%s276 + $0x168] sm:$0xff]
        %v323 = vld [vmem:[%s276 + $0x170] sm:$0xff]
        %v324 = vld [vmem:[%s276 + $0x178] sm:$0x3]
        %v325 = vld [vmem:[%s276 + $0x180] sm:$0xff]
        %v326 = vld [vmem:[%s276 + $0x188] sm:$0xff]
        %v327 = vld [vmem:[%s276 + $0x190] sm:$0x3]
        %v328 = vld [vmem:[%s276 + $0x198] sm:$0xff]
        %v329 = vld [vmem:[%s276 + $0x1a0] sm:$0xff]
        %v330 = vld [vmem:[%s276 + $0x1a8] sm:$0x3]
        %vm331 = vcmask 31744
        %332 = vst.msk [vmem:[#allocation2] sm:$0xff] %vm331, %v277
        %333 = vst.msk [vmem:[#allocation2 + $0x8] sm:$0xff] %vm331, %v278
        %334 = vst.msk [vmem:[#allocation2 + $0x10] sm:$0xff] %vm331, %v280
        %335 = vst.msk [vmem:[#allocation2 + $0x18] sm:$0xff] %vm331, %v281
        %336 = vst.msk [vmem:[#allocation2 + $0x20] sm:$0xff] %vm331, %v283
        %337 = vst.msk [vmem:[#allocation2 + $0x28] sm:$0xff] %vm331, %v284
        %338 = vst.msk [vmem:[#allocation2 + $0x30] sm:$0xff] %vm331, %v286
        %339 = vst.msk [vmem:[#allocation2 + $0x38] sm:$0xff] %vm331, %v287
        %340 = vst.msk [vmem:[#allocation2 + $0x40] sm:$0xff] %vm331, %v289
        %341 = vst.msk [vmem:[#allocation2 + $0x48] sm:$0xff] %vm331, %v290
        %342 = vst.msk [vmem:[#allocation2 + $0x50] sm:$0xff] %vm331, %v292
        %343 = vst.msk [vmem:[#allocation2 + $0x58] sm:$0xff] %vm331, %v293
        %344 = vst.msk [vmem:[#allocation2 + $0x60] sm:$0xff] %vm331, %v295
        %345 = vst.msk [vmem:[#allocation2 + $0x68] sm:$0xff] %vm331, %v296
        %346 = vst.msk [vmem:[#allocation2 + $0x70] sm:$0xff] %vm331, %v298
        %347 = vst.msk [vmem:[#allocation2 + $0x78] sm:$0xff] %vm331, %v299
        %348 = vst.msk [vmem:[#allocation2 + $0x80] sm:$0xff] %vm331, %v301
        %349 = vst.msk [vmem:[#allocation2 + $0x88] sm:$0xff] %vm331, %v302
        %350 = vst.msk [vmem:[#allocation2 + $0x90] sm:$0xff] %vm331, %v304
        %351 = vst.msk [vmem:[#allocation2 + $0x98] sm:$0xff] %vm331, %v305
        %352 = vst.msk [vmem:[#allocation2 + $0xa0] sm:$0xff] %vm331, %v307
        %353 = vst.msk [vmem:[#allocation2 + $0xa8] sm:$0xff] %vm331, %v308
        %354 = vst.msk [vmem:[#allocation2 + $0xb0] sm:$0xff] %vm331, %v310
        %355 = vst.msk [vmem:[#allocation2 + $0xb8] sm:$0xff] %vm331, %v311
        %356 = vst.msk [vmem:[#allocation2 + $0xc0] sm:$0xff] %vm331, %v313
        %357 = vst.msk [vmem:[#allocation2 + $0xc8] sm:$0xff] %vm331, %v314
        %358 = vst.msk [vmem:[#allocation2 + $0xd0] sm:$0xff] %vm331, %v316
        %359 = vst.msk [vmem:[#allocation2 + $0xd8] sm:$0xff] %vm331, %v317
        %360 = vst.msk [vmem:[#allocation2 + $0xe0] sm:$0xff] %vm331, %v319
        %361 = vst.msk [vmem:[#allocation2 + $0xe8] sm:$0xff] %vm331, %v320
        %362 = vst.msk [vmem:[#allocation2 + $0xf0] sm:$0xff] %vm331, %v322
        %363 = vst.msk [vmem:[#allocation2 + $0xf8] sm:$0xff] %vm331, %v323
        %vm412 = vcmask 1046528
        %v413 = vrot.slane %v277, 1
        %v414 = vrot.slane %v278, 1
        %v415 = vsel %vm412, %v413, %v414
        %v416 = vrot.slane %v279, 1
        %v417 = vsel %vm412, %v414, %v416
        %v418 = vrot.slane %v280, 1
        %v419 = vrot.slane %v281, 1
        %v420 = vsel %vm412, %v418, %v419
        %v421 = vrot.slane %v282, 1
        %v422 = vsel %vm412, %v419, %v421
        %v423 = vrot.slane %v283, 1
        %v424 = vrot.slane %v284, 1
        %v425 = vsel %vm412, %v423, %v424
        %v426 = vrot.slane %v285, 1
        %v427 = vsel %vm412, %v424, %v426
        %v428 = vrot.slane %v286, 1
        %v429 = vrot.slane %v287, 1
        %v430 = vsel %vm412, %v428, %v429
        %v431 = vrot.slane %v288, 1
        %v432 = vsel %vm412, %v429, %v431
        %v433 = vrot.slane %v289, 1
        %v434 = vrot.slane %v290, 1
        %v435 = vsel %vm412, %v433, %v434
        %v436 = vrot.slane %v291, 1
        %v437 = vsel %vm412, %v434, %v436
        %v438 = vrot.slane %v292, 1
        %v439 = vrot.slane %v293, 1
        %v440 = vsel %vm412, %v438, %v439
        %v441 = vrot.slane %v294, 1
        %v442 = vsel %vm412, %v439, %v441
        %v443 = vrot.slane %v295, 1
        %v444 = vrot.slane %v296, 1
        %v445 = vsel %vm412, %v443, %v444
        %v446 = vrot.slane %v297, 1
        %v447 = vsel %vm412, %v444, %v446
        %v448 = vrot.slane %v298, 1
        %v449 = vrot.slane %v299, 1
        %v450 = vsel %vm412, %v448, %v449
        %v451 = vrot.slane %v300, 1
        %v452 = vsel %vm412, %v449, %v451
        %v453 = vrot.slane %v301, 1
        %v454 = vrot.slane %v302, 1
        %v455 = vsel %vm412, %v453, %v454
        %v456 = vrot.slane %v303, 1
        %v457 = vsel %vm412, %v454, %v456
        %v458 = vrot.slane %v304, 1
        %v459 = vrot.slane %v305, 1
        %v460 = vsel %vm412, %v458, %v459
        %v461 = vrot.slane %v306, 1
        %v462 = vsel %vm412, %v459, %v461
        %v463 = vrot.slane %v307, 1
        %v464 = vrot.slane %v308, 1
        %v465 = vsel %vm412, %v463, %v464
        %v466 = vrot.slane %v309, 1
        %v467 = vsel %vm412, %v464, %v466
        %v468 = vrot.slane %v310, 1
        %v469 = vrot.slane %v311, 1
        %v470 = vsel %vm412, %v468, %v469
        %v471 = vrot.slane %v312, 1
        %v472 = vsel %vm412, %v469, %v471
        %v473 = vrot.slane %v313, 1
        %v474 = vrot.slane %v314, 1
        %v475 = vsel %vm412, %v473, %v474
        %v476 = vrot.slane %v315, 1
        %v477 = vsel %vm412, %v474, %v476
        %v478 = vrot.slane %v316, 1
        %v479 = vrot.slane %v317, 1
        %v480 = vsel %vm412, %v478, %v479
        %v481 = vrot.slane %v318, 1
        %v482 = vsel %vm412, %v479, %v481
        %v483 = vrot.slane %v319, 1
        %v484 = vrot.slane %v320, 1
        %v485 = vsel %vm412, %v483, %v484
        %v486 = vrot.slane %v321, 1
        %v487 = vsel %vm412, %v484, %v486
        %v488 = vrot.slane %v322, 1
        %v489 = vrot.slane %v323, 1
        %v490 = vsel %vm412, %v488, %v489
        %v491 = vrot.slane %v324, 1
        %v492 = vsel %vm412, %v489, %v491
        %493 = vrot.lane.b32.xlu0 %v415, 4
        %v494 = vpop.permute.xlu0 %493
        %495 = vrot.lane.b32.xlu0 %v417, 4
        %v496 = vpop.permute.xlu0 %495
        %497 = vrot.lane.b32.xlu0 %v420, 4
        %v498 = vpop.permute.xlu0 %497
        %499 = vrot.lane.b32.xlu0 %v422, 4
        %v500 = vpop.permute.xlu0 %499
        %501 = vrot.lane.b32.xlu0 %v425, 4
        %v502 = vpop.permute.xlu0 %501
        %503 = vrot.lane.b32.xlu0 %v427, 4
        %v504 = vpop.permute.xlu0 %503
        %505 = vrot.lane.b32.xlu0 %v430, 4
        %v506 = vpop.permute.xlu0 %505
        %507 = vrot.lane.b32.xlu0 %v432, 4
        %v508 = vpop.permute.xlu0 %507
        %509 = vrot.lane.b32.xlu0 %v435, 4
        %v510 = vpop.permute.xlu0 %509
        %511 = vrot.lane.b32.xlu0 %v437, 4
        %v512 = vpop.permute.xlu0 %511
        %513 = vrot.lane.b32.xlu0 %v440, 4
        %v514 = vpop.permute.xlu0 %513
        %515 = vrot.lane.b32.xlu0 %v442, 4
        %v516 = vpop.permute.xlu0 %515
        %517 = vrot.lane.b32.xlu0 %v445, 4
        %v518 = vpop.permute.xlu0 %517
        %519 = vrot.lane.b32.xlu0 %v447, 4
        %v520 = vpop.permute.xlu0 %519
        %521 = vrot.lane.b32.xlu0 %v450, 4
        %v522 = vpop.permute.xlu0 %521
        %523 = vrot.lane.b32.xlu0 %v452, 4
        %v524 = vpop.permute.xlu0 %523
        %525 = vrot.lane.b32.xlu0 %v455, 4
        %v526 = vpop.permute.xlu0 %525
        %527 = vrot.lane.b32.xlu0 %v457, 4
        %v528 = vpop.permute.xlu0 %527
        %529 = vrot.lane.b32.xlu0 %v460, 4
        %v530 = vpop.permute.xlu0 %529
        %531 = vrot.lane.b32.xlu0 %v462, 4
        %v532 = vpop.permute.xlu0 %531
        %533 = vrot.lane.b32.xlu0 %v465, 4
        %v534 = vpop.permute.xlu0 %533
        %535 = vrot.lane.b32.xlu0 %v467, 4
        %v536 = vpop.permute.xlu0 %535
        %537 = vrot.lane.b32.xlu0 %v470, 4
        %v538 = vpop.permute.xlu0 %537
        %539 = vrot.lane.b32.xlu0 %v472, 4
        %v540 = vpop.permute.xlu0 %539
        %541 = vrot.lane.b32.xlu0 %v475, 4
        %v542 = vpop.permute.xlu0 %541
        %543 = vrot.lane.b32.xlu0 %v477, 4
        %v544 = vpop.permute.xlu0 %543
        %545 = vrot.lane.b32.xlu0 %v480, 4
        %v546 = vpop.permute.xlu0 %545
        %547 = vrot.lane.b32.xlu0 %v482, 4
        %v548 = vpop.permute.xlu0 %547
        %549 = vrot.lane.b32.xlu0 %v485, 4
        %v550 = vpop.permute.xlu0 %549
        %551 = vrot.lane.b32.xlu0 %v487, 4
        %v552 = vpop.permute.xlu0 %551
        %553 = vrot.lane.b32.xlu0 %v490, 4
        %v554 = vpop.permute.xlu0 %553
        %555 = vrot.lane.b32.xlu0 %v492, 4
        %v556 = vpop.permute.xlu0 %555
        %vm589 = vcmask 64544
        %590 = vst.msk [vmem:[#allocation2] sm:$0xff] %vm589, %v494
        %591 = vst.msk [vmem:[#allocation2 + $0x8] sm:$0xff] %vm589, %v496
        %592 = vst.msk [vmem:[#allocation2 + $0x10] sm:$0xff] %vm589, %v498
        %593 = vst.msk [vmem:[#allocation2 + $0x18] sm:$0xff] %vm589, %v500
        %594 = vst.msk [vmem:[#allocation2 + $0x20] sm:$0xff] %vm589, %v502
        %595 = vst.msk [vmem:[#allocation2 + $0x28] sm:$0xff] %vm589, %v504
        %596 = vst.msk [vmem:[#allocation2 + $0x30] sm:$0xff] %vm589, %v506
        %597 = vst.msk [vmem:[#allocation2 + $0x38] sm:$0xff] %vm589, %v508
        %598 = vst.msk [vmem:[#allocation2 + $0x40] sm:$0xff] %vm589, %v510
        %599 = vst.msk [vmem:[#allocation2 + $0x48] sm:$0xff] %vm589, %v512
        %600 = vst.msk [vmem:[#allocation2 + $0x50] sm:$0xff] %vm589, %v514
        %601 = vst.msk [vmem:[#allocation2 + $0x58] sm:$0xff] %vm589, %v516
        %602 = vst.msk [vmem:[#allocation2 + $0x60] sm:$0xff] %vm589, %v518
        %603 = vst.msk [vmem:[#allocation2 + $0x68] sm:$0xff] %vm589, %v520
        %604 = vst.msk [vmem:[#allocation2 + $0x70] sm:$0xff] %vm589, %v522
        %605 = vst.msk [vmem:[#allocation2 + $0x78] sm:$0xff] %vm589, %v524
        %606 = vst.msk [vmem:[#allocation2 + $0x80] sm:$0xff] %vm589, %v526
        %607 = vst.msk [vmem:[#allocation2 + $0x88] sm:$0xff] %vm589, %v528
        %608 = vst.msk [vmem:[#allocation2 + $0x90] sm:$0xff] %vm589, %v530
        %609 = vst.msk [vmem:[#allocation2 + $0x98] sm:$0xff] %vm589, %v532
        %610 = vst.msk [vmem:[#allocation2 + $0xa0] sm:$0xff] %vm589, %v534
        %611 = vst.msk [vmem:[#allocation2 + $0xa8] sm:$0xff] %vm589, %v536
        %612 = vst.msk [vmem:[#allocation2 + $0xb0] sm:$0xff] %vm589, %v538
        %613 = vst.msk [vmem:[#allocation2 + $0xb8] sm:$0xff] %vm589, %v540
        %614 = vst.msk [vmem:[#allocation2 + $0xc0] sm:$0xff] %vm589, %v542
        %615 = vst.msk [vmem:[#allocation2 + $0xc8] sm:$0xff] %vm589, %v544
        %616 = vst.msk [vmem:[#allocation2 + $0xd0] sm:$0xff] %vm589, %v546
        %617 = vst.msk [vmem:[#allocation2 + $0xd8] sm:$0xff] %vm589, %v548
        %618 = vst.msk [vmem:[#allocation2 + $0xe0] sm:$0xff] %vm589, %v550
        %619 = vst.msk [vmem:[#allocation2 + $0xe8] sm:$0xff] %vm589, %v552
        %620 = vst.msk [vmem:[#allocation2 + $0xf0] sm:$0xff] %vm589, %v554
        %621 = vst.msk [vmem:[#allocation2 + $0xf8] sm:$0xff] %vm589, %v556
        %vm622 = vcmask 1045504
        %v623 = vrot.slane %v277, 2
        %v624 = vrot.slane %v278, 2
        %v625 = vsel %vm622, %v623, %v624
        %v626 = vrot.slane %v279, 2
        %v627 = vsel %vm622, %v624, %v626
        %v628 = vrot.slane %v280, 2
        %v629 = vrot.slane %v281, 2
        %v630 = vsel %vm622, %v628, %v629
        %v631 = vrot.slane %v282, 2
        %v632 = vsel %vm622, %v629, %v631
        %v633 = vrot.slane %v283, 2
        %v634 = vrot.slane %v284, 2
        %v635 = vsel %vm622, %v633, %v634
        %v636 = vrot.slane %v285, 2
        %v637 = vsel %vm622, %v634, %v636
        %v638 = vrot.slane %v286, 2
        %v639 = vrot.slane %v287, 2
        %v640 = vsel %vm622, %v638, %v639
        %v641 = vrot.slane %v288, 2
        %v642 = vsel %vm622, %v639, %v641
        %v643 = vrot.slane %v289, 2
        %v644 = vrot.slane %v290, 2
        %v645 = vsel %vm622, %v643, %v644
        %v646 = vrot.slane %v291, 2
        %v647 = vsel %vm622, %v644, %v646
        %v648 = vrot.slane %v292, 2
        %v649 = vrot.slane %v293, 2
        %v650 = vsel %vm622, %v648, %v649
        %v651 = vrot.slane %v294, 2
        %v652 = vsel %vm622, %v649, %v651
        %v653 = vrot.slane %v295, 2
        %v654 = vrot.slane %v296, 2
        %v655 = vsel %vm622, %v653, %v654
        %v656 = vrot.slane %v297, 2
        %v657 = vsel %vm622, %v654, %v656
        %v658 = vrot.slane %v298, 2
        %v659 = vrot.slane %v299, 2
        %v660 = vsel %vm622, %v658, %v659
        %v661 = vrot.slane %v300, 2
        %v662 = vsel %vm622, %v659, %v661
        %v663 = vrot.slane %v301, 2
        %v664 = vrot.slane %v302, 2
        %v665 = vsel %vm622, %v663, %v664
        %v666 = vrot.slane %v303, 2
        %v667 = vsel %vm622, %v664, %v666
        %v668 = vrot.slane %v304, 2
        %v669 = vrot.slane %v305, 2
        %v670 = vsel %vm622, %v668, %v669
        %v671 = vrot.slane %v306, 2
        %v672 = vsel %vm622, %v669, %v671
        %v673 = vrot.slane %v307, 2
        %v674 = vrot.slane %v308, 2
        %v675 = vsel %vm622, %v673, %v674
        %v676 = vrot.slane %v309, 2
        %v677 = vsel %vm622, %v674, %v676
        %v678 = vrot.slane %v310, 2
        %v679 = vrot.slane %v311, 2
        %v680 = vsel %vm622, %v678, %v679
        %v681 = vrot.slane %v312, 2
        %v682 = vsel %vm622, %v679, %v681
        %v683 = vrot.slane %v313, 2
        %v684 = vrot.slane %v314, 2
        %v685 = vsel %vm622, %v683, %v684
        %v686 = vrot.slane %v315, 2
        %v687 = vsel %vm622, %v684, %v686
        %v688 = vrot.slane %v316, 2
        %v689 = vrot.slane %v317, 2
        %v690 = vsel %vm622, %v688, %v689
        %v691 = vrot.slane %v318, 2
        %v692 = vsel %vm622, %v689, %v691
        %v693 = vrot.slane %v319, 2
        %v694 = vrot.slane %v320, 2
        %v695 = vsel %vm622, %v693, %v694
        %v696 = vrot.slane %v321, 2
        %v697 = vsel %vm622, %v694, %v696
        %v698 = vrot.slane %v322, 2
        %v699 = vrot.slane %v323, 2
        %v700 = vsel %vm622, %v698, %v699
        %v701 = vrot.slane %v324, 2
        %v702 = vsel %vm622, %v699, %v701
        %703 = vrot.lane.b32.xlu0 %v625, 8
        %v704 = vpop.permute.xlu0 %703
        %705 = vrot.lane.b32.xlu0 %v627, 8
        %v706 = vpop.permute.xlu0 %705
        %707 = vrot.lane.b32.xlu0 %v630, 8
        %v708 = vpop.permute.xlu0 %707
        %709 = vrot.lane.b32.xlu0 %v632, 8
        %v710 = vpop.permute.xlu0 %709
        %711 = vrot.lane.b32.xlu0 %v635, 8
        %v712 = vpop.permute.xlu0 %711
        %713 = vrot.lane.b32.xlu0 %v637, 8
        %v714 = vpop.permute.xlu0 %713
        %715 = vrot.lane.b32.xlu0 %v640, 8
        %v716 = vpop.permute.xlu0 %715
        %717 = vrot.lane.b32.xlu0 %v642, 8
        %v718 = vpop.permute.xlu0 %717
        %719 = vrot.lane.b32.xlu0 %v645, 8
        %v720 = vpop.permute.xlu0 %719
        %721 = vrot.lane.b32.xlu0 %v647, 8
        %v722 = vpop.permute.xlu0 %721
        %723 = vrot.lane.b32.xlu0 %v650, 8
        %v724 = vpop.permute.xlu0 %723
        %725 = vrot.lane.b32.xlu0 %v652, 8
        %v726 = vpop.permute.xlu0 %725
        %727 = vrot.lane.b32.xlu0 %v655, 8
        %v728 = vpop.permute.xlu0 %727
        %729 = vrot.lane.b32.xlu0 %v657, 8
        %v730 = vpop.permute.xlu0 %729
        %731 = vrot.lane.b32.xlu0 %v660, 8
        %v732 = vpop.permute.xlu0 %731
        %733 = vrot.lane.b32.xlu0 %v662, 8
        %v734 = vpop.permute.xlu0 %733
        %735 = vrot.lane.b32.xlu0 %v665, 8
        %v736 = vpop.permute.xlu0 %735
        %737 = vrot.lane.b32.xlu0 %v667, 8
        %v738 = vpop.permute.xlu0 %737
        %739 = vrot.lane.b32.xlu0 %v670, 8
        %v740 = vpop.permute.xlu0 %739
        %741 = vrot.lane.b32.xlu0 %v672, 8
        %v742 = vpop.permute.xlu0 %741
        %743 = vrot.lane.b32.xlu0 %v675, 8
        %v744 = vpop.permute.xlu0 %743
        %745 = vrot.lane.b32.xlu0 %v677, 8
        %v746 = vpop.permute.xlu0 %745
        %747 = vrot.lane.b32.xlu0 %v680, 8
        %v748 = vpop.permute.xlu0 %747
        %749 = vrot.lane.b32.xlu0 %v682, 8
        %v750 = vpop.permute.xlu0 %749
        %751 = vrot.lane.b32.xlu0 %v685, 8
        %v752 = vpop.permute.xlu0 %751
        %753 = vrot.lane.b32.xlu0 %v687, 8
        %v754 = vpop.permute.xlu0 %753
        %755 = vrot.lane.b32.xlu0 %v690, 8
        %v756 = vpop.permute.xlu0 %755
        %757 = vrot.lane.b32.xlu0 %v692, 8
        %v758 = vpop.permute.xlu0 %757
        %759 = vrot.lane.b32.xlu0 %v695, 8
        %v760 = vpop.permute.xlu0 %759
        %761 = vrot.lane.b32.xlu0 %v697, 8
        %v762 = vpop.permute.xlu0 %761
        %763 = vrot.lane.b32.xlu0 %v700, 8
        %v764 = vpop.permute.xlu0 %763
        %765 = vrot.lane.b32.xlu0 %v702, 8
        %v766 = vpop.permute.xlu0 %765
        %vm799 = vcmask 97344
        %800 = vst.msk [vmem:[#allocation2] sm:$0xff] %vm799, %v704
        %801 = vst.msk [vmem:[#allocation2 + $0x8] sm:$0xff] %vm799, %v706
        %802 = vst.msk [vmem:[#allocation2 + $0x10] sm:$0xff] %vm799, %v708
        %803 = vst.msk [vmem:[#allocation2 + $0x18] sm:$0xff] %vm799, %v710
        %804 = vst.msk [vmem:[#allocation2 + $0x20] sm:$0xff] %vm799, %v712
        %805 = vst.msk [vmem:[#allocation2 + $0x28] sm:$0xff] %vm799, %v714
        %806 = vst.msk [vmem:[#allocation2 + $0x30] sm:$0xff] %vm799, %v716
        %807 = vst.msk [vmem:[#allocation2 + $0x38] sm:$0xff] %vm799, %v718
        %808 = vst.msk [vmem:[#allocation2 + $0x40] sm:$0xff] %vm799, %v720
        %809 = vst.msk [vmem:[#allocation2 + $0x48] sm:$0xff] %vm799, %v722
        %810 = vst.msk [vmem:[#allocation2 + $0x50] sm:$0xff] %vm799, %v724
        %811 = vst.msk [vmem:[#allocation2 + $0x58] sm:$0xff] %vm799, %v726
        %812 = vst.msk [vmem:[#allocation2 + $0x60] sm:$0xff] %vm799, %v728
        %813 = vst.msk [vmem:[#allocation2 + $0x68] sm:$0xff] %vm799, %v730
        %814 = vst.msk [vmem:[#allocation2 + $0x70] sm:$0xff] %vm799, %v732
        %815 = vst.msk [vmem:[#allocation2 + $0x78] sm:$0xff] %vm799, %v734
        %816 = vst.msk [vmem:[#allocation2 + $0x80] sm:$0xff] %vm799, %v736
        %817 = vst.msk [vmem:[#allocation2 + $0x88] sm:$0xff] %vm799, %v738
        %818 = vst.msk [vmem:[#allocation2 + $0x90] sm:$0xff] %vm799, %v740
        %819 = vst.msk [vmem:[#allocation2 + $0x98] sm:$0xff] %vm799, %v742
        %820 = vst.msk [vmem:[#allocation2 + $0xa0] sm:$0xff] %vm799, %v744
        %821 = vst.msk [vmem:[#allocation2 + $0xa8] sm:$0xff] %vm799, %v746
        %822 = vst.msk [vmem:[#allocation2 + $0xb0] sm:$0xff] %vm799, %v748
        %823 = vst.msk [vmem:[#allocation2 + $0xb8] sm:$0xff] %vm799, %v750
        %824 = vst.msk [vmem:[#allocation2 + $0xc0] sm:$0xff] %vm799, %v752
        %825 = vst.msk [vmem:[#allocation2 + $0xc8] sm:$0xff] %vm799, %v754
        %826 = vst.msk [vmem:[#allocation2 + $0xd0] sm:$0xff] %vm799, %v756
        %827 = vst.msk [vmem:[#allocation2 + $0xd8] sm:$0xff] %vm799, %v758
        %828 = vst.msk [vmem:[#allocation2 + $0xe0] sm:$0xff] %vm799, %v760
        %829 = vst.msk [vmem:[#allocation2 + $0xe8] sm:$0xff] %vm799, %v762
        %830 = vst.msk [vmem:[#allocation2 + $0xf0] sm:$0xff] %vm799, %v764
        %831 = vst.msk [vmem:[#allocation2 + $0xf8] sm:$0xff] %vm799, %v766
        %834 = vrot.lane.b32.xlu0 %v280, 12
        %v835 = vpop.permute.xlu0 %834
        %836 = vrot.lane.b32.xlu0 %v281, 12
        %v837 = vpop.permute.xlu0 %836
        %838 = vrot.lane.b32.xlu0 %v283, 12
        %v839 = vpop.permute.xlu0 %838
        %840 = vrot.lane.b32.xlu0 %v284, 12
        %v841 = vpop.permute.xlu0 %840
        %842 = vrot.lane.b32.xlu0 %v286, 12
        %v843 = vpop.permute.xlu0 %842
        %844 = vrot.lane.b32.xlu0 %v287, 12
        %v845 = vpop.permute.xlu0 %844
        %846 = vrot.lane.b32.xlu0 %v289, 12
        %v847 = vpop.permute.xlu0 %846
        %848 = vrot.lane.b32.xlu0 %v290, 12
        %v849 = vpop.permute.xlu0 %848
        %850 = vrot.lane.b32.xlu0 %v292, 12
        %v851 = vpop.permute.xlu0 %850
        %852 = vrot.lane.b32.xlu0 %v293, 12
        %v853 = vpop.permute.xlu0 %852
        %854 = vrot.lane.b32.xlu0 %v295, 12
        %v855 = vpop.permute.xlu0 %854
        %856 = vrot.lane.b32.xlu0 %v296, 12
        %v857 = vpop.permute.xlu0 %856
        %858 = vrot.lane.b32.xlu0 %v298, 12
        %v859 = vpop.permute.xlu0 %858
        %860 = vrot.lane.b32.xlu0 %v299, 12
        %v861 = vpop.permute.xlu0 %860
        %862 = vrot.lane.b32.xlu0 %v301, 12
        %v863 = vpop.permute.xlu0 %862
        %864 = vrot.lane.b32.xlu0 %v302, 12
        %v865 = vpop.permute.xlu0 %864
        %866 = vrot.lane.b32.xlu0 %v304, 12
        %v867 = vpop.permute.xlu0 %866
        %868 = vrot.lane.b32.xlu0 %v305, 12
        %v869 = vpop.permute.xlu0 %868
        %870 = vrot.lane.b32.xlu0 %v307, 12
        %v871 = vpop.permute.xlu0 %870
        %872 = vrot.lane.b32.xlu0 %v308, 12
        %v873 = vpop.permute.xlu0 %872
        %874 = vrot.lane.b32.xlu0 %v310, 12
        %v875 = vpop.permute.xlu0 %874
        %876 = vrot.lane.b32.xlu0 %v311, 12
        %v877 = vpop.permute.xlu0 %876
        %878 = vrot.lane.b32.xlu0 %v313, 12
        %v879 = vpop.permute.xlu0 %878
        %880 = vrot.lane.b32.xlu0 %v314, 12
        %v881 = vpop.permute.xlu0 %880
        %882 = vrot.lane.b32.xlu0 %v316, 12
        %v883 = vpop.permute.xlu0 %882
        %884 = vrot.lane.b32.xlu0 %v317, 12
        %v885 = vpop.permute.xlu0 %884
        %886 = vrot.lane.b32.xlu0 %v319, 12
        %v887 = vpop.permute.xlu0 %886
        %888 = vrot.lane.b32.xlu0 %v320, 12
        %v889 = vpop.permute.xlu0 %888
        %890 = vrot.lane.b32.xlu0 %v322, 12
        %v891 = vpop.permute.xlu0 %890
        %892 = vrot.lane.b32.xlu0 %v323, 12
        %v893 = vpop.permute.xlu0 %892
        %894 = vrot.lane.b32.xlu0 %v325, 12
        %v895 = vpop.permute.xlu0 %894
        %896 = vrot.lane.b32.xlu0 %v326, 12
        %v897 = vpop.permute.xlu0 %896
        %vm930 = vcmask 130144
        %931 = vst.msk [vmem:[#allocation2] sm:$0xff] %vm930, %v835
        %932 = vst.msk [vmem:[#allocation2 + $0x8] sm:$0xff] %vm930, %v837
        %933 = vst.msk [vmem:[#allocation2 + $0x10] sm:$0xff] %vm930, %v839
        %934 = vst.msk [vmem:[#allocation2 + $0x18] sm:$0xff] %vm930, %v841
        %935 = vst.msk [vmem:[#allocation2 + $0x20] sm:$0xff] %vm930, %v843
        %936 = vst.msk [vmem:[#allocation2 + $0x28] sm:$0xff] %vm930, %v845
        %937 = vst.msk [vmem:[#allocation2 + $0x30] sm:$0xff] %vm930, %v847
        %938 = vst.msk [vmem:[#allocation2 + $0x38] sm:$0xff] %vm930, %v849
        %939 = vst.msk [vmem:[#allocation2 + $0x40] sm:$0xff] %vm930, %v851
        %940 = vst.msk [vmem:[#allocation2 + $0x48] sm:$0xff] %vm930, %v853
        %941 = vst.msk [vmem:[#allocation2 + $0x50] sm:$0xff] %vm930, %v855
        %942 = vst.msk [vmem:[#allocation2 + $0x58] sm:$0xff] %vm930, %v857
        %943 = vst.msk [vmem:[#allocation2 + $0x60] sm:$0xff] %vm930, %v859
        %944 = vst.msk [vmem:[#allocation2 + $0x68] sm:$0xff] %vm930, %v861
        %945 = vst.msk [vmem:[#allocation2 + $0x70] sm:$0xff] %vm930, %v863
        %946 = vst.msk [vmem:[#allocation2 + $0x78] sm:$0xff] %vm930, %v865
        %947 = vst.msk [vmem:[#allocation2 + $0x80] sm:$0xff] %vm930, %v867
        %948 = vst.msk [vmem:[#allocation2 + $0x88] sm:$0xff] %vm930, %v869
        %949 = vst.msk [vmem:[#allocation2 + $0x90] sm:$0xff] %vm930, %v871
        %950 = vst.msk [vmem:[#allocation2 + $0x98] sm:$0xff] %vm930, %v873
        %951 = vst.msk [vmem:[#allocation2 + $0xa0] sm:$0xff] %vm930, %v875
        %952 = vst.msk [vmem:[#allocation2 + $0xa8] sm:$0xff] %vm930, %v877
        %953 = vst.msk [vmem:[#allocation2 + $0xb0] sm:$0xff] %vm930, %v879
        %954 = vst.msk [vmem:[#allocation2 + $0xb8] sm:$0xff] %vm930, %v881
        %955 = vst.msk [vmem:[#allocation2 + $0xc0] sm:$0xff] %vm930, %v883
        %956 = vst.msk [vmem:[#allocation2 + $0xc8] sm:$0xff] %vm930, %v885
        %957 = vst.msk [vmem:[#allocation2 + $0xd0] sm:$0xff] %vm930, %v887
        %958 = vst.msk [vmem:[#allocation2 + $0xd8] sm:$0xff] %vm930, %v889
        %959 = vst.msk [vmem:[#allocation2 + $0xe0] sm:$0xff] %vm930, %v891
        %960 = vst.msk [vmem:[#allocation2 + $0xe8] sm:$0xff] %vm930, %v893
        %961 = vst.msk [vmem:[#allocation2 + $0xf0] sm:$0xff] %vm930, %v895
        %962 = vst.msk [vmem:[#allocation2 + $0xf8] sm:$0xff] %vm930, %v897
        %v964 = vrot.slane %v325, 1
        %v965 = vrot.slane %v326, 1
        %v966 = vsel %vm412, %v964, %v965
        %v967 = vrot.slane %v327, 1
        %v968 = vsel %vm412, %v965, %v967
        %969 = vrot.lane.b32.xlu0 %v420, 16
        %v970 = vpop.permute.xlu0 %969
        %971 = vrot.lane.b32.xlu0 %v422, 16
        %v972 = vpop.permute.xlu0 %971
        %973 = vrot.lane.b32.xlu0 %v425, 16
        %v974 = vpop.permute.xlu0 %973
        %975 = vrot.lane.b32.xlu0 %v427, 16
        %v976 = vpop.permute.xlu0 %975
        %977 = vrot.lane.b32.xlu0 %v430, 16
        %v978 = vpop.permute.xlu0 %977
        %979 = vrot.lane.b32.xlu0 %v432, 16
        %v980 = vpop.permute.xlu0 %979
        %981 = vrot.lane.b32.xlu0 %v435, 16
        %v982 = vpop.permute.xlu0 %981
        %983 = vrot.lane.b32.xlu0 %v437, 16
        %v984 = vpop.permute.xlu0 %983
        %985 = vrot.lane.b32.xlu0 %v440, 16
        %v986 = vpop.permute.xlu0 %985
        %987 = vrot.lane.b32.xlu0 %v442, 16
        %v988 = vpop.permute.xlu0 %987
        %989 = vrot.lane.b32.xlu0 %v445, 16
        %v990 = vpop.permute.xlu0 %989
        %991 = vrot.lane.b32.xlu0 %v447, 16
        %v992 = vpop.permute.xlu0 %991
        %993 = vrot.lane.b32.xlu0 %v450, 16
        %v994 = vpop.permute.xlu0 %993
        %995 = vrot.lane.b32.xlu0 %v452, 16
        %v996 = vpop.permute.xlu0 %995
        %997 = vrot.lane.b32.xlu0 %v455, 16
        %v998 = vpop.permute.xlu0 %997
        %999 = vrot.lane.b32.xlu0 %v457, 16
        %v1000 = vpop.permute.xlu0 %999
        %1001 = vrot.lane.b32.xlu0 %v460, 16
        %v1002 = vpop.permute.xlu0 %1001
        %1003 = vrot.lane.b32.xlu0 %v462, 16
        %v1004 = vpop.permute.xlu0 %1003
        %1005 = vrot.lane.b32.xlu0 %v465, 16
        %v1006 = vpop.permute.xlu0 %1005
        %1007 = vrot.lane.b32.xlu0 %v467, 16
        %v1008 = vpop.permute.xlu0 %1007
        %1009 = vrot.lane.b32.xlu0 %v470, 16
        %v1010 = vpop.permute.xlu0 %1009
        %1011 = vrot.lane.b32.xlu0 %v472, 16
        %v1012 = vpop.permute.xlu0 %1011
        %1013 = vrot.lane.b32.xlu0 %v475, 16
        %v1014 = vpop.permute.xlu0 %1013
        %1015 = vrot.lane.b32.xlu0 %v477, 16
        %v1016 = vpop.permute.xlu0 %1015
        %1017 = vrot.lane.b32.xlu0 %v480, 16
        %v1018 = vpop.permute.xlu0 %1017
        %1019 = vrot.lane.b32.xlu0 %v482, 16
        %v1020 = vpop.permute.xlu0 %1019
        %1021 = vrot.lane.b32.xlu0 %v485, 16
        %v1022 = vpop.permute.xlu0 %1021
        %1023 = vrot.lane.b32.xlu0 %v487, 16
        %v1024 = vpop.permute.xlu0 %1023
        %1025 = vrot.lane.b32.xlu0 %v490, 16
        %v1026 = vpop.permute.xlu0 %1025
        %1027 = vrot.lane.b32.xlu0 %v492, 16
        %v1028 = vpop.permute.xlu0 %1027
        %1029 = vrot.lane.b32.xlu0 %v966, 16
        %v1030 = vpop.permute.xlu0 %1029
        %1031 = vrot.lane.b32.xlu0 %v968, 16
        %v1032 = vpop.permute.xlu0 %1031
        %vm1065 = vcmask 162944
        %1066 = vst.msk [vmem:[#allocation2] sm:$0xff] %vm1065, %v970
        %1067 = vst.msk [vmem:[#allocation2 + $0x8] sm:$0xff] %vm1065, %v972
        %1068 = vst.msk [vmem:[#allocation2 + $0x10] sm:$0xff] %vm1065, %v974
        %1069 = vst.msk [vmem:[#allocation2 + $0x18] sm:$0xff] %vm1065, %v976
        %1070 = vst.msk [vmem:[#allocation2 + $0x20] sm:$0xff] %vm1065, %v978
        %1071 = vst.msk [vmem:[#allocation2 + $0x28] sm:$0xff] %vm1065, %v980
        %1072 = vst.msk [vmem:[#allocation2 + $0x30] sm:$0xff] %vm1065, %v982
        %1073 = vst.msk [vmem:[#allocation2 + $0x38] sm:$0xff] %vm1065, %v984
        %1074 = vst.msk [vmem:[#allocation2 + $0x40] sm:$0xff] %vm1065, %v986
        %1075 = vst.msk [vmem:[#allocation2 + $0x48] sm:$0xff] %vm1065, %v988
        %1076 = vst.msk [vmem:[#allocation2 + $0x50] sm:$0xff] %vm1065, %v990
        %1077 = vst.msk [vmem:[#allocation2 + $0x58] sm:$0xff] %vm1065, %v992
        %1078 = vst.msk [vmem:[#allocation2 + $0x60] sm:$0xff] %vm1065, %v994
        %1079 = vst.msk [vmem:[#allocation2 + $0x68] sm:$0xff] %vm1065, %v996
        %1080 = vst.msk [vmem:[#allocation2 + $0x70] sm:$0xff] %vm1065, %v998
        %1081 = vst.msk [vmem:[#allocation2 + $0x78] sm:$0xff] %vm1065, %v1000
        %1082 = vst.msk [vmem:[#allocation2 + $0x80] sm:$0xff] %vm1065, %v1002
        %1083 = vst.msk [vmem:[#allocation2 + $0x88] sm:$0xff] %vm1065, %v1004
        %1084 = vst.msk [vmem:[#allocation2 + $0x90] sm:$0xff] %vm1065, %v1006
        %1085 = vst.msk [vmem:[#allocation2 + $0x98] sm:$0xff] %vm1065, %v1008
        %1086 = vst.msk [vmem:[#allocation2 + $0xa0] sm:$0xff] %vm1065, %v1010
        %1087 = vst.msk [vmem:[#allocation2 + $0xa8] sm:$0xff] %vm1065, %v1012
        %1088 = vst.msk [vmem:[#allocation2 + $0xb0] sm:$0xff] %vm1065, %v1014
        %1089 = vst.msk [vmem:[#allocation2 + $0xb8] sm:$0xff] %vm1065, %v1016
        %1090 = vst.msk [vmem:[#allocation2 + $0xc0] sm:$0xff] %vm1065, %v1018
        %1091 = vst.msk [vmem:[#allocation2 + $0xc8] sm:$0xff] %vm1065, %v1020
        %1092 = vst.msk [vmem:[#allocation2 + $0xd0] sm:$0xff] %vm1065, %v1022
        %1093 = vst.msk [vmem:[#allocation2 + $0xd8] sm:$0xff] %vm1065, %v1024
        %1094 = vst.msk [vmem:[#allocation2 + $0xe0] sm:$0xff] %vm1065, %v1026
        %1095 = vst.msk [vmem:[#allocation2 + $0xe8] sm:$0xff] %vm1065, %v1028
        %1096 = vst.msk [vmem:[#allocation2 + $0xf0] sm:$0xff] %vm1065, %v1030
        %1097 = vst.msk [vmem:[#allocation2 + $0xf8] sm:$0xff] %vm1065, %v1032
        %v1098 = vrot.slane %v325, 2
        %v1099 = vrot.slane %v326, 2
        %v1100 = vsel %vm622, %v1098, %v1099
        %v1101 = vrot.slane %v327, 2
        %v1102 = vsel %vm622, %v1099, %v1101
        %1103 = vrot.lane.b32.xlu0 %v630, 20
        %v1104 = vpop.permute.xlu0 %1103
        %1105 = vrot.lane.b32.xlu0 %v632, 20
        %v1106 = vpop.permute.xlu0 %1105
        %1107 = vrot.lane.b32.xlu0 %v635, 20
        %v1108 = vpop.permute.xlu0 %1107
        %1109 = vrot.lane.b32.xlu0 %v637, 20
        %v1110 = vpop.permute.xlu0 %1109
        %1111 = vrot.lane.b32.xlu0 %v640, 20
        %v1112 = vpop.permute.xlu0 %1111
        %1113 = vrot.lane.b32.xlu0 %v642, 20
        %v1114 = vpop.permute.xlu0 %1113
        %1115 = vrot.lane.b32.xlu0 %v645, 20
        %v1116 = vpop.permute.xlu0 %1115
        %1117 = vrot.lane.b32.xlu0 %v647, 20
        %v1118 = vpop.permute.xlu0 %1117
        %1119 = vrot.lane.b32.xlu0 %v650, 20
        %v1120 = vpop.permute.xlu0 %1119
        %1121 = vrot.lane.b32.xlu0 %v652, 20
        %v1122 = vpop.permute.xlu0 %1121
        %1123 = vrot.lane.b32.xlu0 %v655, 20
        %v1124 = vpop.permute.xlu0 %1123
        %1125 = vrot.lane.b32.xlu0 %v657, 20
        %v1126 = vpop.permute.xlu0 %1125
        %1127 = vrot.lane.b32.xlu0 %v660, 20
        %v1128 = vpop.permute.xlu0 %1127
        %1129 = vrot.lane.b32.xlu0 %v662, 20
        %v1130 = vpop.permute.xlu0 %1129
        %1131 = vrot.lane.b32.xlu0 %v665, 20
        %v1132 = vpop.permute.xlu0 %1131
        %1133 = vrot.lane.b32.xlu0 %v667, 20
        %v1134 = vpop.permute.xlu0 %1133
        %1135 = vrot.lane.b32.xlu0 %v670, 20
        %v1136 = vpop.permute.xlu0 %1135
        %1137 = vrot.lane.b32.xlu0 %v672, 20
        %v1138 = vpop.permute.xlu0 %1137
        %1139 = vrot.lane.b32.xlu0 %v675, 20
        %v1140 = vpop.permute.xlu0 %1139
        %1141 = vrot.lane.b32.xlu0 %v677, 20
        %v1142 = vpop.permute.xlu0 %1141
        %1143 = vrot.lane.b32.xlu0 %v680, 20
        %v1144 = vpop.permute.xlu0 %1143
        %1145 = vrot.lane.b32.xlu0 %v682, 20
        %v1146 = vpop.permute.xlu0 %1145
        %1147 = vrot.lane.b32.xlu0 %v685, 20
        %v1148 = vpop.permute.xlu0 %1147
        %1149 = vrot.lane.b32.xlu0 %v687, 20
        %v1150 = vpop.permute.xlu0 %1149
        %1151 = vrot.lane.b32.xlu0 %v690, 20
        %v1152 = vpop.permute.xlu0 %1151
        %1153 = vrot.lane.b32.xlu0 %v692, 20
        %v1154 = vpop.permute.xlu0 %1153
        %1155 = vrot.lane.b32.xlu0 %v695, 20
        %v1156 = vpop.permute.xlu0 %1155
        %1157 = vrot.lane.b32.xlu0 %v697, 20
        %v1158 = vpop.permute.xlu0 %1157
        %1159 = vrot.lane.b32.xlu0 %v700, 20
        %v1160 = vpop.permute.xlu0 %1159
        %1161 = vrot.lane.b32.xlu0 %v702, 20
        %v1162 = vpop.permute.xlu0 %1161
        %1163 = vrot.lane.b32.xlu0 %v1100, 20
        %v1164 = vpop.permute.xlu0 %1163
        %1165 = vrot.lane.b32.xlu0 %v1102, 20
        %v1166 = vpop.permute.xlu0 %1165
        %vm1199 = vcmask 195744
        %1200 = vst.msk [vmem:[#allocation2] sm:$0xff] %vm1199, %v1104
        %1201 = vst.msk [vmem:[#allocation2 + $0x8] sm:$0xff] %vm1199, %v1106
        %1202 = vst.msk [vmem:[#allocation2 + $0x10] sm:$0xff] %vm1199, %v1108
        %1203 = vst.msk [vmem:[#allocation2 + $0x18] sm:$0xff] %vm1199, %v1110
        %1204 = vst.msk [vmem:[#allocation2 + $0x20] sm:$0xff] %vm1199, %v1112
        %1205 = vst.msk [vmem:[#allocation2 + $0x28] sm:$0xff] %vm1199, %v1114
        %1206 = vst.msk [vmem:[#allocation2 + $0x30] sm:$0xff] %vm1199, %v1116
        %1207 = vst.msk [vmem:[#allocation2 + $0x38] sm:$0xff] %vm1199, %v1118
        %1208 = vst.msk [vmem:[#allocation2 + $0x40] sm:$0xff] %vm1199, %v1120
        %1209 = vst.msk [vmem:[#allocation2 + $0x48] sm:$0xff] %vm1199, %v1122
        %1210 = vst.msk [vmem:[#allocation2 + $0x50] sm:$0xff] %vm1199, %v1124
        %1211 = vst.msk [vmem:[#allocation2 + $0x58] sm:$0xff] %vm1199, %v1126
        %1212 = vst.msk [vmem:[#allocation2 + $0x60] sm:$0xff] %vm1199, %v1128
        %1213 = vst.msk [vmem:[#allocation2 + $0x68] sm:$0xff] %vm1199, %v1130
        %1214 = vst.msk [vmem:[#allocation2 + $0x70] sm:$0xff] %vm1199, %v1132
        %1215 = vst.msk [vmem:[#allocation2 + $0x78] sm:$0xff] %vm1199, %v1134
        %1216 = vst.msk [vmem:[#allocation2 + $0x80] sm:$0xff] %vm1199, %v1136
        %1217 = vst.msk [vmem:[#allocation2 + $0x88] sm:$0xff] %vm1199, %v1138
        %1218 = vst.msk [vmem:[#allocation2 + $0x90] sm:$0xff] %vm1199, %v1140
        %1219 = vst.msk [vmem:[#allocation2 + $0x98] sm:$0xff] %vm1199, %v1142
        %1220 = vst.msk [vmem:[#allocation2 + $0xa0] sm:$0xff] %vm1199, %v1144
        %1221 = vst.msk [vmem:[#allocation2 + $0xa8] sm:$0xff] %vm1199, %v1146
        %1222 = vst.msk [vmem:[#allocation2 + $0xb0] sm:$0xff] %vm1199, %v1148
        %1223 = vst.msk [vmem:[#allocation2 + $0xb8] sm:$0xff] %vm1199, %v1150
        %1224 = vst.msk [vmem:[#allocation2 + $0xc0] sm:$0xff] %vm1199, %v1152
        %1225 = vst.msk [vmem:[#allocation2 + $0xc8] sm:$0xff] %vm1199, %v1154
        %1226 = vst.msk [vmem:[#allocation2 + $0xd0] sm:$0xff] %vm1199, %v1156
        %1227 = vst.msk [vmem:[#allocation2 + $0xd8] sm:$0xff] %vm1199, %v1158
        %1228 = vst.msk [vmem:[#allocation2 + $0xe0] sm:$0xff] %vm1199, %v1160
        %1229 = vst.msk [vmem:[#allocation2 + $0xe8] sm:$0xff] %vm1199, %v1162
        %1230 = vst.msk [vmem:[#allocation2 + $0xf0] sm:$0xff] %vm1199, %v1164
        %1231 = vst.msk [vmem:[#allocation2 + $0xf8] sm:$0xff] %vm1199, %v1166
        %1234 = vrot.lane.b32.xlu0 %v283, 24
        %v1235 = vpop.permute.xlu0 %1234
        %1236 = vrot.lane.b32.xlu0 %v284, 24
        %v1237 = vpop.permute.xlu0 %1236
        %1238 = vrot.lane.b32.xlu0 %v286, 24
        %v1239 = vpop.permute.xlu0 %1238
        %1240 = vrot.lane.b32.xlu0 %v287, 24
        %v1241 = vpop.permute.xlu0 %1240
        %1242 = vrot.lane.b32.xlu0 %v289, 24
        %v1243 = vpop.permute.xlu0 %1242
        %1244 = vrot.lane.b32.xlu0 %v290, 24
        %v1245 = vpop.permute.xlu0 %1244
        %1246 = vrot.lane.b32.xlu0 %v292, 24
        %v1247 = vpop.permute.xlu0 %1246
        %1248 = vrot.lane.b32.xlu0 %v293, 24
        %v1249 = vpop.permute.xlu0 %1248
        %1250 = vrot.lane.b32.xlu0 %v295, 24
        %v1251 = vpop.permute.xlu0 %1250
        %1252 = vrot.lane.b32.xlu0 %v296, 24
        %v1253 = vpop.permute.xlu0 %1252
        %1254 = vrot.lane.b32.xlu0 %v298, 24
        %v1255 = vpop.permute.xlu0 %1254
        %1256 = vrot.lane.b32.xlu0 %v299, 24
        %v1257 = vpop.permute.xlu0 %1256
        %1258 = vrot.lane.b32.xlu0 %v301, 24
        %v1259 = vpop.permute.xlu0 %1258
        %1260 = vrot.lane.b32.xlu0 %v302, 24
        %v1261 = vpop.permute.xlu0 %1260
        %1262 = vrot.lane.b32.xlu0 %v304, 24
        %v1263 = vpop.permute.xlu0 %1262
        %1264 = vrot.lane.b32.xlu0 %v305, 24
        %v1265 = vpop.permute.xlu0 %1264
        %1266 = vrot.lane.b32.xlu0 %v307, 24
        %v1267 = vpop.permute.xlu0 %1266
        %1268 = vrot.lane.b32.xlu0 %v308, 24
        %v1269 = vpop.permute.xlu0 %1268
        %1270 = vrot.lane.b32.xlu0 %v310, 24
        %v1271 = vpop.permute.xlu0 %1270
        %1272 = vrot.lane.b32.xlu0 %v311, 24
        %v1273 = vpop.permute.xlu0 %1272
        %1274 = vrot.lane.b32.xlu0 %v313, 24
        %v1275 = vpop.permute.xlu0 %1274
        %1276 = vrot.lane.b32.xlu0 %v314, 24
        %v1277 = vpop.permute.xlu0 %1276
        %1278 = vrot.lane.b32.xlu0 %v316, 24
        %v1279 = vpop.permute.xlu0 %1278
        %1280 = vrot.lane.b32.xlu0 %v317, 24
        %v1281 = vpop.permute.xlu0 %1280
        %1282 = vrot.lane.b32.xlu0 %v319, 24
        %v1283 = vpop.permute.xlu0 %1282
        %1284 = vrot.lane.b32.xlu0 %v320, 24
        %v1285 = vpop.permute.xlu0 %1284
        %1286 = vrot.lane.b32.xlu0 %v322, 24
        %v1287 = vpop.permute.xlu0 %1286
        %1288 = vrot.lane.b32.xlu0 %v323, 24
        %v1289 = vpop.permute.xlu0 %1288
        %1290 = vrot.lane.b32.xlu0 %v325, 24
        %v1291 = vpop.permute.xlu0 %1290
        %1292 = vrot.lane.b32.xlu0 %v326, 24
        %v1293 = vpop.permute.xlu0 %1292
        %1294 = vrot.lane.b32.xlu0 %v328, 24
        %v1295 = vpop.permute.xlu0 %1294
        %1296 = vrot.lane.b32.xlu0 %v329, 24
        %v1297 = vpop.permute.xlu0 %1296
        %vm1330 = vcmask 228544
        %1331 = vst.msk [vmem:[#allocation2] sm:$0xff] %vm1330, %v1235
        %1332 = vst.msk [vmem:[#allocation2 + $0x8] sm:$0xff] %vm1330, %v1237
        %1333 = vst.msk [vmem:[#allocation2 + $0x10] sm:$0xff] %vm1330, %v1239
        %1334 = vst.msk [vmem:[#allocation2 + $0x18] sm:$0xff] %vm1330, %v1241
        %1335 = vst.msk [vmem:[#allocation2 + $0x20] sm:$0xff] %vm1330, %v1243
        %1336 = vst.msk [vmem:[#allocation2 + $0x28] sm:$0xff] %vm1330, %v1245
        %1337 = vst.msk [vmem:[#allocation2 + $0x30] sm:$0xff] %vm1330, %v1247
        %1338 = vst.msk [vmem:[#allocation2 + $0x38] sm:$0xff] %vm1330, %v1249
        %1339 = vst.msk [vmem:[#allocation2 + $0x40] sm:$0xff] %vm1330, %v1251
        %1340 = vst.msk [vmem:[#allocation2 + $0x48] sm:$0xff] %vm1330, %v1253
        %1341 = vst.msk [vmem:[#allocation2 + $0x50] sm:$0xff] %vm1330, %v1255
        %1342 = vst.msk [vmem:[#allocation2 + $0x58] sm:$0xff] %vm1330, %v1257
        %1343 = vst.msk [vmem:[#allocation2 + $0x60] sm:$0xff] %vm1330, %v1259
        %1344 = vst.msk [vmem:[#allocation2 + $0x68] sm:$0xff] %vm1330, %v1261
        %1345 = vst.msk [vmem:[#allocation2 + $0x70] sm:$0xff] %vm1330, %v1263
        %1346 = vst.msk [vmem:[#allocation2 + $0x78] sm:$0xff] %vm1330, %v1265
        %1347 = vst.msk [vmem:[#allocation2 + $0x80] sm:$0xff] %vm1330, %v1267
        %1348 = vst.msk [vmem:[#allocation2 + $0x88] sm:$0xff] %vm1330, %v1269
        %1349 = vst.msk [vmem:[#allocation2 + $0x90] sm:$0xff] %vm1330, %v1271
        %1350 = vst.msk [vmem:[#allocation2 + $0x98] sm:$0xff] %vm1330, %v1273
        %1351 = vst.msk [vmem:[#allocation2 + $0xa0] sm:$0xff] %vm1330, %v1275
        %1352 = vst.msk [vmem:[#allocation2 + $0xa8] sm:$0xff] %vm1330, %v1277
        %1353 = vst.msk [vmem:[#allocation2 + $0xb0] sm:$0xff] %vm1330, %v1279
        %1354 = vst.msk [vmem:[#allocation2 + $0xb8] sm:$0xff] %vm1330, %v1281
        %1355 = vst.msk [vmem:[#allocation2 + $0xc0] sm:$0xff] %vm1330, %v1283
        %1356 = vst.msk [vmem:[#allocation2 + $0xc8] sm:$0xff] %vm1330, %v1285
        %1357 = vst.msk [vmem:[#allocation2 + $0xd0] sm:$0xff] %vm1330, %v1287
        %1358 = vst.msk [vmem:[#allocation2 + $0xd8] sm:$0xff] %vm1330, %v1289
        %1359 = vst.msk [vmem:[#allocation2 + $0xe0] sm:$0xff] %vm1330, %v1291
        %1360 = vst.msk [vmem:[#allocation2 + $0xe8] sm:$0xff] %vm1330, %v1293
        %1361 = vst.msk [vmem:[#allocation2 + $0xf0] sm:$0xff] %vm1330, %v1295
        %1362 = vst.msk [vmem:[#allocation2 + $0xf8] sm:$0xff] %vm1330, %v1297
        %v1364 = vrot.slane %v328, 1
        %v1365 = vrot.slane %v329, 1
        %v1366 = vsel %vm412, %v1364, %v1365
        %v1367 = vrot.slane %v330, 1
        %v1368 = vsel %vm412, %v1365, %v1367
        %1369 = vrot.lane.b32.xlu0 %v425, 28
        %v1370 = vpop.permute.xlu0 %1369
        %1371 = vrot.lane.b32.xlu0 %v427, 28
        %v1372 = vpop.permute.xlu0 %1371
        %1373 = vrot.lane.b32.xlu0 %v430, 28
        %v1374 = vpop.permute.xlu0 %1373
        %1375 = vrot.lane.b32.xlu0 %v432, 28
        %v1376 = vpop.permute.xlu0 %1375
        %1377 = vrot.lane.b32.xlu0 %v435, 28
        %v1378 = vpop.permute.xlu0 %1377
        %1379 = vrot.lane.b32.xlu0 %v437, 28
        %v1380 = vpop.permute.xlu0 %1379
        %1381 = vrot.lane.b32.xlu0 %v440, 28
        %v1382 = vpop.permute.xlu0 %1381
        %1383 = vrot.lane.b32.xlu0 %v442, 28
        %v1384 = vpop.permute.xlu0 %1383
        %1385 = vrot.lane.b32.xlu0 %v445, 28
        %v1386 = vpop.permute.xlu0 %1385
        %1387 = vrot.lane.b32.xlu0 %v447, 28
        %v1388 = vpop.permute.xlu0 %1387
        %1389 = vrot.lane.b32.xlu0 %v450, 28
        %v1390 = vpop.permute.xlu0 %1389
        %1391 = vrot.lane.b32.xlu0 %v452, 28
        %v1392 = vpop.permute.xlu0 %1391
        %1393 = vrot.lane.b32.xlu0 %v455, 28
        %v1394 = vpop.permute.xlu0 %1393
        %1395 = vrot.lane.b32.xlu0 %v457, 28
        %v1396 = vpop.permute.xlu0 %1395
        %1397 = vrot.lane.b32.xlu0 %v460, 28
        %v1398 = vpop.permute.xlu0 %1397
        %1399 = vrot.lane.b32.xlu0 %v462, 28
        %v1400 = vpop.permute.xlu0 %1399
        %1401 = vrot.lane.b32.xlu0 %v465, 28
        %v1402 = vpop.permute.xlu0 %1401
        %1403 = vrot.lane.b32.xlu0 %v467, 28
        %v1404 = vpop.permute.xlu0 %1403
        %1405 = vrot.lane.b32.xlu0 %v470, 28
        %v1406 = vpop.permute.xlu0 %1405
        %1407 = vrot.lane.b32.xlu0 %v472, 28
        %v1408 = vpop.permute.xlu0 %1407
        %1409 = vrot.lane.b32.xlu0 %v475, 28
        %v1410 = vpop.permute.xlu0 %1409
        %1411 = vrot.lane.b32.xlu0 %v477, 28
        %v1412 = vpop.permute.xlu0 %1411
        %1413 = vrot.lane.b32.xlu0 %v480, 28
        %v1414 = vpop.permute.xlu0 %1413
        %1415 = vrot.lane.b32.xlu0 %v482, 28
        %v1416 = vpop.permute.xlu0 %1415
        %1417 = vrot.lane.b32.xlu0 %v485, 28
        %v1418 = vpop.permute.xlu0 %1417
        %1419 = vrot.lane.b32.xlu0 %v487, 28
        %v1420 = vpop.permute.xlu0 %1419
        %1421 = vrot.lane.b32.xlu0 %v490, 28
        %v1422 = vpop.permute.xlu0 %1421
        %1423 = vrot.lane.b32.xlu0 %v492, 28
        %v1424 = vpop.permute.xlu0 %1423
        %1425 = vrot.lane.b32.xlu0 %v966, 28
        %v1426 = vpop.permute.xlu0 %1425
        %1427 = vrot.lane.b32.xlu0 %v968, 28
        %v1428 = vpop.permute.xlu0 %1427
        %1429 = vrot.lane.b32.xlu0 %v1366, 28
        %v1430 = vpop.permute.xlu0 %1429
        %1431 = vrot.lane.b32.xlu0 %v1368, 28
        %v1432 = vpop.permute.xlu0 %1431
        %vm1465 = vcmask 261344
        %1466 = vst.msk [vmem:[#allocation2] sm:$0xff] %vm1465, %v1370
        %1467 = vst.msk [vmem:[#allocation2 + $0x8] sm:$0xff] %vm1465, %v1372
        %1468 = vst.msk [vmem:[#allocation2 + $0x10] sm:$0xff] %vm1465, %v1374
        %1469 = vst.msk [vmem:[#allocation2 + $0x18] sm:$0xff] %vm1465, %v1376
        %1470 = vst.msk [vmem:[#allocation2 + $0x20] sm:$0xff] %vm1465, %v1378
        %1471 = vst.msk [vmem:[#allocation2 + $0x28] sm:$0xff] %vm1465, %v1380
        %1472 = vst.msk [vmem:[#allocation2 + $0x30] sm:$0xff] %vm1465, %v1382
        %1473 = vst.msk [vmem:[#allocation2 + $0x38] sm:$0xff] %vm1465, %v1384
        %1474 = vst.msk [vmem:[#allocation2 + $0x40] sm:$0xff] %vm1465, %v1386
        %1475 = vst.msk [vmem:[#allocation2 + $0x48] sm:$0xff] %vm1465, %v1388
        %1476 = vst.msk [vmem:[#allocation2 + $0x50] sm:$0xff] %vm1465, %v1390
        %1477 = vst.msk [vmem:[#allocation2 + $0x58] sm:$0xff] %vm1465, %v1392
        %1478 = vst.msk [vmem:[#allocation2 + $0x60] sm:$0xff] %vm1465, %v1394
        %1479 = vst.msk [vmem:[#allocation2 + $0x68] sm:$0xff] %vm1465, %v1396
        %1480 = vst.msk [vmem:[#allocation2 + $0x70] sm:$0xff] %vm1465, %v1398
        %1481 = vst.msk [vmem:[#allocation2 + $0x78] sm:$0xff] %vm1465, %v1400
        %1482 = vst.msk [vmem:[#allocation2 + $0x80] sm:$0xff] %vm1465, %v1402
        %1483 = vst.msk [vmem:[#allocation2 + $0x88] sm:$0xff] %vm1465, %v1404
        %1484 = vst.msk [vmem:[#allocation2 + $0x90] sm:$0xff] %vm1465, %v1406
        %1485 = vst.msk [vmem:[#allocation2 + $0x98] sm:$0xff] %vm1465, %v1408
        %1486 = vst.msk [vmem:[#allocation2 + $0xa0] sm:$0xff] %vm1465, %v1410
        %1487 = vst.msk [vmem:[#allocation2 + $0xa8] sm:$0xff] %vm1465, %v1412
        %1488 = vst.msk [vmem:[#allocation2 + $0xb0] sm:$0xff] %vm1465, %v1414
        %1489 = vst.msk [vmem:[#allocation2 + $0xb8] sm:$0xff] %vm1465, %v1416
        %1490 = vst.msk [vmem:[#allocation2 + $0xc0] sm:$0xff] %vm1465, %v1418
        %1491 = vst.msk [vmem:[#allocation2 + $0xc8] sm:$0xff] %vm1465, %v1420
        %1492 = vst.msk [vmem:[#allocation2 + $0xd0] sm:$0xff] %vm1465, %v1422
        %1493 = vst.msk [vmem:[#allocation2 + $0xd8] sm:$0xff] %vm1465, %v1424
        %1494 = vst.msk [vmem:[#allocation2 + $0xe0] sm:$0xff] %vm1465, %v1426
        %1495 = vst.msk [vmem:[#allocation2 + $0xe8] sm:$0xff] %vm1465, %v1428
        %1496 = vst.msk [vmem:[#allocation2 + $0xf0] sm:$0xff] %vm1465, %v1430
        %1497 = vst.msk [vmem:[#allocation2 + $0xf8] sm:$0xff] %vm1465, %v1432
        %v1498 = vrot.slane %v328, 2
        %v1499 = vrot.slane %v329, 2
        %v1500 = vsel %vm622, %v1498, %v1499
        %v1501 = vrot.slane %v330, 2
        %v1502 = vsel %vm622, %v1499, %v1501
        %1503 = vrot.lane.b32.xlu0 %v635, 32
        %v1504 = vpop.permute.xlu0 %1503
        %1505 = vrot.lane.b32.xlu0 %v637, 32
        %v1506 = vpop.permute.xlu0 %1505
        %1507 = vrot.lane.b32.xlu0 %v640, 32
        %v1508 = vpop.permute.xlu0 %1507
        %1509 = vrot.lane.b32.xlu0 %v642, 32
        %v1510 = vpop.permute.xlu0 %1509
        %1511 = vrot.lane.b32.xlu0 %v645, 32
        %v1512 = vpop.permute.xlu0 %1511
        %1513 = vrot.lane.b32.xlu0 %v647, 32
        %v1514 = vpop.permute.xlu0 %1513
        %1515 = vrot.lane.b32.xlu0 %v650, 32
        %v1516 = vpop.permute.xlu0 %1515
        %1517 = vrot.lane.b32.xlu0 %v652, 32
        %v1518 = vpop.permute.xlu0 %1517
        %1519 = vrot.lane.b32.xlu0 %v655, 32
        %v1520 = vpop.permute.xlu0 %1519
        %1521 = vrot.lane.b32.xlu0 %v657, 32
        %v1522 = vpop.permute.xlu0 %1521
        %1523 = vrot.lane.b32.xlu0 %v660, 32
        %v1524 = vpop.permute.xlu0 %1523
        %1525 = vrot.lane.b32.xlu0 %v662, 32
        %v1526 = vpop.permute.xlu0 %1525
        %1527 = vrot.lane.b32.xlu0 %v665, 32
        %v1528 = vpop.permute.xlu0 %1527
        %1529 = vrot.lane.b32.xlu0 %v667, 32
        %v1530 = vpop.permute.xlu0 %1529
        %1531 = vrot.lane.b32.xlu0 %v670, 32
        %v1532 = vpop.permute.xlu0 %1531
        %1533 = vrot.lane.b32.xlu0 %v672, 32
        %v1534 = vpop.permute.xlu0 %1533
        %1535 = vrot.lane.b32.xlu0 %v675, 32
        %v1536 = vpop.permute.xlu0 %1535
        %1537 = vrot.lane.b32.xlu0 %v677, 32
        %v1538 = vpop.permute.xlu0 %1537
        %1539 = vrot.lane.b32.xlu0 %v680, 32
        %v1540 = vpop.permute.xlu0 %1539
        %1541 = vrot.lane.b32.xlu0 %v682, 32
        %v1542 = vpop.permute.xlu0 %1541
        %1543 = vrot.lane.b32.xlu0 %v685, 32
        %v1544 = vpop.permute.xlu0 %1543
        %1545 = vrot.lane.b32.xlu0 %v687, 32
        %v1546 = vpop.permute.xlu0 %1545
        %1547 = vrot.lane.b32.xlu0 %v690, 32
        %v1548 = vpop.permute.xlu0 %1547
        %1549 = vrot.lane.b32.xlu0 %v692, 32
        %v1550 = vpop.permute.xlu0 %1549
        %1551 = vrot.lane.b32.xlu0 %v695, 32
        %v1552 = vpop.permute.xlu0 %1551
        %1553 = vrot.lane.b32.xlu0 %v697, 32
        %v1554 = vpop.permute.xlu0 %1553
        %1555 = vrot.lane.b32.xlu0 %v700, 32
        %v1556 = vpop.permute.xlu0 %1555
        %1557 = vrot.lane.b32.xlu0 %v702, 32
        %v1558 = vpop.permute.xlu0 %1557
        %1559 = vrot.lane.b32.xlu0 %v1100, 32
        %v1560 = vpop.permute.xlu0 %1559
        %1561 = vrot.lane.b32.xlu0 %v1102, 32
        %v1562 = vpop.permute.xlu0 %1561
        %1563 = vrot.lane.b32.xlu0 %v1500, 32
        %v1564 = vpop.permute.xlu0 %1563
        %1565 = vrot.lane.b32.xlu0 %v1502, 32
        %v1566 = vpop.permute.xlu0 %1565
        %vm1599 = vcmask 294144
        %1600 = vst.msk [vmem:[#allocation2] sm:$0xff] %vm1599, %v1504
        %1601 = vst.msk [vmem:[#allocation2 + $0x8] sm:$0xff] %vm1599, %v1506
        %1602 = vst.msk [vmem:[#allocation2 + $0x10] sm:$0xff] %vm1599, %v1508
        %1603 = vst.msk [vmem:[#allocation2 + $0x18] sm:$0xff] %vm1599, %v1510
        %1604 = vst.msk [vmem:[#allocation2 + $0x20] sm:$0xff] %vm1599, %v1512
        %1605 = vst.msk [vmem:[#allocation2 + $0x28] sm:$0xff] %vm1599, %v1514
        %1606 = vst.msk [vmem:[#allocation2 + $0x30] sm:$0xff] %vm1599, %v1516
        %1607 = vst.msk [vmem:[#allocation2 + $0x38] sm:$0xff] %vm1599, %v1518
        %1608 = vst.msk [vmem:[#allocation2 + $0x40] sm:$0xff] %vm1599, %v1520
        %1609 = vst.msk [vmem:[#allocation2 + $0x48] sm:$0xff] %vm1599, %v1522
        %1610 = vst.msk [vmem:[#allocation2 + $0x50] sm:$0xff] %vm1599, %v1524
        %1611 = vst.msk [vmem:[#allocation2 + $0x58] sm:$0xff] %vm1599, %v1526
        %1612 = vst.msk [vmem:[#allocation2 + $0x60] sm:$0xff] %vm1599, %v1528
        %1613 = vst.msk [vmem:[#allocation2 + $0x68] sm:$0xff] %vm1599, %v1530
        %1614 = vst.msk [vmem:[#allocation2 + $0x70] sm:$0xff] %vm1599, %v1532
        %1615 = vst.msk [vmem:[#allocation2 + $0x78] sm:$0xff] %vm1599, %v1534
        %1616 = vst.msk [vmem:[#allocation2 + $0x80] sm:$0xff] %vm1599, %v1536
        %1617 = vst.msk [vmem:[#allocation2 + $0x88] sm:$0xff] %vm1599, %v1538
        %1618 = vst.msk [vmem:[#allocation2 + $0x90] sm:$0xff] %vm1599, %v1540
        %1619 = vst.msk [vmem:[#allocation2 + $0x98] sm:$0xff] %vm1599, %v1542
        %1620 = vst.msk [vmem:[#allocation2 + $0xa0] sm:$0xff] %vm1599, %v1544
        %1621 = vst.msk [vmem:[#allocation2 + $0xa8] sm:$0xff] %vm1599, %v1546
        %1622 = vst.msk [vmem:[#allocation2 + $0xb0] sm:$0xff] %vm1599, %v1548
        %1623 = vst.msk [vmem:[#allocation2 + $0xb8] sm:$0xff] %vm1599, %v1550
        %1624 = vst.msk [vmem:[#allocation2 + $0xc0] sm:$0xff] %vm1599, %v1552
        %1625 = vst.msk [vmem:[#allocation2 + $0xc8] sm:$0xff] %vm1599, %v1554
        %1626 = vst.msk [vmem:[#allocation2 + $0xd0] sm:$0xff] %vm1599, %v1556
        %1627 = vst.msk [vmem:[#allocation2 + $0xd8] sm:$0xff] %vm1599, %v1558
        %1628 = vst.msk [vmem:[#allocation2 + $0xe0] sm:$0xff] %vm1599, %v1560
        %1629 = vst.msk [vmem:[#allocation2 + $0xe8] sm:$0xff] %vm1599, %v1562
        %1630 = vst.msk [vmem:[#allocation2 + $0xf0] sm:$0xff] %vm1599, %v1564
        %1631 = vst.msk [vmem:[#allocation2 + $0xf8] sm:$0xff] %vm1599, %v1566
        %v1632 = vld [vmem:[#allocation2] sm:$0xff]
        %v1633 = vld [vmem:[#allocation2 + $0x8] sm:$0xff]
        %v1634 = vld [vmem:[#allocation2 + $0x10] sm:$0xff]
        %v1635 = vld [vmem:[#allocation2 + $0x18] sm:$0xff]
        %v1636 = vld [vmem:[#allocation2 + $0x20] sm:$0xff]
        %v1637 = vld [vmem:[#allocation2 + $0x28] sm:$0xff]
        %v1638 = vld [vmem:[#allocation2 + $0x30] sm:$0xff]
        %v1639 = vld [vmem:[#allocation2 + $0x38] sm:$0xff]
        %v1640 = vld [vmem:[#allocation2 + $0x40] sm:$0xff]
        %v1641 = vld [vmem:[#allocation2 + $0x48] sm:$0xff]
        %v1642 = vld [vmem:[#allocation2 + $0x50] sm:$0xff]
        %v1643 = vld [vmem:[#allocation2 + $0x58] sm:$0xff]
        %v1644 = vld [vmem:[#allocation2 + $0x60] sm:$0xff]
        %v1645 = vld [vmem:[#allocation2 + $0x68] sm:$0xff]
        %v1646 = vld [vmem:[#allocation2 + $0x70] sm:$0xff]
        %v1647 = vld [vmem:[#allocation2 + $0x78] sm:$0xff]
        %v1648 = vld [vmem:[#allocation2 + $0x80] sm:$0xff]
        %v1649 = vld [vmem:[#allocation2 + $0x88] sm:$0xff]
        %v1650 = vld [vmem:[#allocation2 + $0x90] sm:$0xff]
        %v1651 = vld [vmem:[#allocation2 + $0x98] sm:$0xff]
        %v1652 = vld [vmem:[#allocation2 + $0xa0] sm:$0xff]
        %v1653 = vld [vmem:[#allocation2 + $0xa8] sm:$0xff]
        %v1654 = vld [vmem:[#allocation2 + $0xb0] sm:$0xff]
        %v1655 = vld [vmem:[#allocation2 + $0xb8] sm:$0xff]
        %v1656 = vld [vmem:[#allocation2 + $0xc0] sm:$0xff]
        %v1657 = vld [vmem:[#allocation2 + $0xc8] sm:$0xff]
        %v1658 = vld [vmem:[#allocation2 + $0xd0] sm:$0xff]
        %v1659 = vld [vmem:[#allocation2 + $0xd8] sm:$0xff]
        %v1660 = vld [vmem:[#allocation2 + $0xe0] sm:$0xff]
        %v1661 = vld [vmem:[#allocation2 + $0xe8] sm:$0xff]
        %v1662 = vld [vmem:[#allocation2 + $0xf0] sm:$0xff]
        %v1663 = vld [vmem:[#allocation2 + $0xf8] sm:$0xff]
        %v1664 = vld [vmem:[%s1] sm:$0xff]
        %v1665 = vld [vmem:[%s1 + $0x8] sm:$0xff]
        %v1666 = vld [vmem:[%s1 + $0x10] sm:$0xff]
        %v1667 = vld [vmem:[%s1 + $0x18] sm:$0xff]
        %v1668 = vld [vmem:[%s1 + $0x20] sm:$0xf]
        %v1669 = vld [vmem:[%s2] sm:$0x1]
        %v1671 = vlaneseq
        %v1672 = vshrl.u32 %v1671, 7
        %v1673 = vsub.s32 0, %v1672
        %v1674 = vrot.slane %v1669, %v1673
        %vm1676 = vcmask 293888
        %v1678 = vsel %vm1676, %v1632, 0
        %v1681 = vsel %vm1676, %v1633, 0
        %v1684 = vsel %vm1676, %v1634, 0
        %v1687 = vsel %vm1676, %v1635, 0
        %v1690 = vsel %vm1676, %v1636, 0
        %v1693 = vsel %vm1676, %v1637, 0
        %v1696 = vsel %vm1676, %v1638, 0
        %v1699 = vsel %vm1676, %v1639, 0
        %v1702 = vsel %vm1676, %v1640, 0
        %v1705 = vsel %vm1676, %v1641, 0
        %v1708 = vsel %vm1676, %v1642, 0
        %v1711 = vsel %vm1676, %v1643, 0
        %v1714 = vsel %vm1676, %v1644, 0
        %v1717 = vsel %vm1676, %v1645, 0
        %v1720 = vsel %vm1676, %v1646, 0
        %v1723 = vsel %vm1676, %v1647, 0
        %v1726 = vsel %vm1676, %v1648, 0
        %v1729 = vsel %vm1676, %v1649, 0
        %v1732 = vsel %vm1676, %v1650, 0
        %v1735 = vsel %vm1676, %v1651, 0
        %v1738 = vsel %vm1676, %v1652, 0
        %v1741 = vsel %vm1676, %v1653, 0
        %v1744 = vsel %vm1676, %v1654, 0
        %v1747 = vsel %vm1676, %v1655, 0
        %v1750 = vsel %vm1676, %v1656, 0
        %v1753 = vsel %vm1676, %v1657, 0
        %v1756 = vsel %vm1676, %v1658, 0
        %v1759 = vsel %vm1676, %v1659, 0
        %v1762 = vsel %vm1676, %v1660, 0
        %v1765 = vsel %vm1676, %v1661, 0
        %v1768 = vsel %vm1676, %v1662, 0
        %v1771 = vsel %vm1676, %v1663, 0
        %vm1773 = vcmask 1043456
        %v1775 = vsel %vm1773, %v1668, 0
        %1777 = vmatprep.subr.mxu0 0.0
        %1778 = vmatpush1.msra.mxu0 %v1664
        %1779 = vmatprep.subr.mxu0 0.0
        %1780 = vmatpush1.msra.mxu0 %v1665
        %1781 = vmatprep.subr.mxu0 0.0
        %1782 = vmatpush1.msra.mxu0 %v1666
        %1783 = vmatprep.subr.mxu0 0.0
        %1784 = vmatpush1.msra.mxu0 %v1667
        %1785 = vmatprep.subr.mxu0 0.0
        %1786 = vmatpush1.msra.mxu0 %v1775
        %1787 = vmatprep.subr.mxu0 0.0
        %1788 = vmatpush1.msra.mxu0 0.0
        %1789 = vmatprep.subr.mxu0 0.0
        %1790 = vmatpush1.msra.mxu0 0.0
        %1791 = vmatprep.subr.mxu0 0.0
        %1792 = vmatpush1.msra.mxu0 0.0
        %1793 = vmatprep.subr.mxu0 0.0
        %1794 = vmatpush1.msra.mxu0 0.0
        %1795 = vmatprep.subr.mxu0 0.0
        %1796 = vmatpush1.msra.mxu0 0.0
        %1797 = vmatprep.subr.mxu0 0.0
        %1798 = vmatpush1.msra.mxu0 0.0
        %1799 = vmatprep.subr.mxu0 0.0
        %1800 = vmatpush1.msra.mxu0 0.0
        %1801 = vmatprep.subr.mxu0 0.0
        %1802 = vmatpush1.msra.mxu0 0.0
        %1803 = vmatprep.subr.mxu0 0.0
        %1804 = vmatpush1.msra.mxu0 0.0
        %1805 = vmatprep.subr.mxu0 0.0
        %1806 = vmatpush1.msra.mxu0 0.0
        %1807 = vmatprep.subr.mxu0 0.0
        %1808 = vmatpush1.msra.mxu0 0.0
        %1809 = vmatprep.subr.mxu0 0.0
        %1810 = vmatpush1.msra.mxu0 0.0
        %1811 = vmatprep.subr.mxu0 0.0
        %1812 = vmatpush1.msra.mxu0 0.0
        %1813 = vmatprep.subr.mxu0 0.0
        %1814 = vmatpush1.msra.mxu0 0.0
        %1815 = vmatprep.subr.mxu0 0.0
        %1816 = vmatpush1.msra.mxu0 0.0
        %1817 = vmatprep.subr.mxu0 0.0
        %1818 = vmatpush1.msra.mxu0 0.0
        %1819 = vmatprep.subr.mxu0 0.0
        %1820 = vmatpush1.msra.mxu0 0.0
        %1821 = vmatprep.subr.mxu0 0.0
        %1822 = vmatpush1.msra.mxu0 0.0
        %1823 = vmatprep.subr.mxu0 0.0
        %1824 = vmatpush1.msra.mxu0 0.0
        %1825 = vmatprep.subr.mxu0 0.0
        %1826 = vmatpush1.msra.mxu0 0.0
        %1827 = vmatprep.subr.mxu0 0.0
        %1828 = vmatpush1.msra.mxu0 0.0
        %1829 = vmatprep.subr.mxu0 0.0
        %1830 = vmatpush1.msra.mxu0 0.0
        %1831 = vmatprep.subr.mxu0 0.0
        %1832 = vmatpush1.msra.mxu0 0.0
        %1833 = vmatprep.subr.mxu0 0.0
        %1834 = vmatpush1.msra.mxu0 0.0
        %1835 = vmatprep.subr.mxu0 0.0
        %1836 = vmatpush1.msra.mxu0 0.0
        %1837 = vmatprep.subr.mxu0 0.0
        %1838 = vmatpush1.msra.mxu0 0.0
        %1839 = vmatprep.subr.mxu0 0.0
        %1840 = vmatpush1.msra.mxu0 0.0
        %1841 = vmatprep.mubr.f32.mxu0 0.0
        %1842 = vmatmul.mubr.f32.gmra.mrb[0].mxu0 %v1678
        %v1843 = vpop.f32.mrb[0].mxu0
        %v1844 = vadd.f32 %v1674, %v1843
        %v1845 = vpop.f32.mrb[0].mxu0
        %1846 = vmatprep.mubr.f32.mxu0 0.0
        %1847 = vmatmul.mubr.f32.gmra.mrb[0].mxu0 %v1681
        %v1848 = vpop.f32.mrb[0].mxu0
        %v1849 = vadd.f32 %v1674, %v1848
        %v1850 = vpop.f32.mrb[0].mxu0
        %1851 = vmatprep.mubr.f32.mxu0 0.0
        %1852 = vmatmul.mubr.f32.gmra.mrb[0].mxu0 %v1684
        %v1853 = vpop.f32.mrb[0].mxu0
        %v1854 = vadd.f32 %v1674, %v1853
        %v1855 = vpop.f32.mrb[0].mxu0
        %1856 = vmatprep.mubr.f32.mxu0 0.0
        %1857 = vmatmul.mubr.f32.gmra.mrb[0].mxu0 %v1687
        %v1858 = vpop.f32.mrb[0].mxu0
        %v1859 = vadd.f32 %v1674, %v1858
        %v1860 = vpop.f32.mrb[0].mxu0
        %1861 = vmatprep.mubr.f32.mxu0 0.0
        %1862 = vmatmul.mubr.f32.gmra.mrb[0].mxu0 %v1690
        %v1863 = vpop.f32.mrb[0].mxu0
        %v1864 = vadd.f32 %v1674, %v1863
        %v1865 = vpop.f32.mrb[0].mxu0
        %1866 = vmatprep.mubr.f32.mxu0 0.0
        %1867 = vmatmul.mubr.f32.gmra.mrb[0].mxu0 %v1693
        %v1868 = vpop.f32.mrb[0].mxu0
        %v1869 = vadd.f32 %v1674, %v1868
        %v1870 = vpop.f32.mrb[0].mxu0
        %1871 = vmatprep.mubr.f32.mxu0 0.0
        %1872 = vmatmul.mubr.f32.gmra.mrb[0].mxu0 %v1696
        %v1873 = vpop.f32.mrb[0].mxu0
        %v1874 = vadd.f32 %v1674, %v1873
        %v1875 = vpop.f32.mrb[0].mxu0
        %1876 = vmatprep.mubr.f32.mxu0 0.0
        %1877 = vmatmul.mubr.f32.gmra.mrb[0].mxu0 %v1699
        %v1878 = vpop.f32.mrb[0].mxu0
        %v1879 = vadd.f32 %v1674, %v1878
        %v1880 = vpop.f32.mrb[0].mxu0
        %1881 = vmatprep.mubr.f32.mxu0 0.0
        %1882 = vmatmul.mubr.f32.gmra.mrb[0].mxu0 %v1702
        %v1883 = vpop.f32.mrb[0].mxu0
        %v1884 = vadd.f32 %v1674, %v1883
        %v1885 = vpop.f32.mrb[0].mxu0
        %1886 = vmatprep.mubr.f32.mxu0 0.0
        %1887 = vmatmul.mubr.f32.gmra.mrb[0].mxu0 %v1705
        %v1888 = vpop.f32.mrb[0].mxu0
        %v1889 = vadd.f32 %v1674, %v1888
        %v1890 = vpop.f32.mrb[0].mxu0
        %1891 = vmatprep.mubr.f32.mxu0 0.0
        %1892 = vmatmul.mubr.f32.gmra.mrb[0].mxu0 %v1708
        %v1893 = vpop.f32.mrb[0].mxu0
        %v1894 = vadd.f32 %v1674, %v1893
        %v1895 = vpop.f32.mrb[0].mxu0
        %1896 = vmatprep.mubr.f32.mxu0 0.0
        %1897 = vmatmul.mubr.f32.gmra.mrb[0].mxu0 %v1711
        %v1898 = vpop.f32.mrb[0].mxu0
        %v1899 = vadd.f32 %v1674, %v1898
        %v1900 = vpop.f32.mrb[0].mxu0
        %1901 = vmatprep.mubr.f32.mxu0 0.0
        %1902 = vmatmul.mubr.f32.gmra.mrb[0].mxu0 %v1714
        %v1903 = vpop.f32.mrb[0].mxu0
        %v1904 = vadd.f32 %v1674, %v1903
        %v1905 = vpop.f32.mrb[0].mxu0
        %1906 = vmatprep.mubr.f32.mxu0 0.0
        %1907 = vmatmul.mubr.f32.gmra.mrb[0].mxu0 %v1717
        %v1908 = vpop.f32.mrb[0].mxu0
        %v1909 = vadd.f32 %v1674, %v1908
        %v1910 = vpop.f32.mrb[0].mxu0
        %1911 = vmatprep.mubr.f32.mxu0 0.0
        %1912 = vmatmul.mubr.f32.gmra.mrb[0].mxu0 %v1720
        %v1913 = vpop.f32.mrb[0].mxu0
        %v1914 = vadd.f32 %v1674, %v1913
        %v1915 = vpop.f32.mrb[0].mxu0
        %1916 = vmatprep.mubr.f32.mxu0 0.0
        %1917 = vmatmul.mubr.f32.gmra.mrb[0].mxu0 %v1723
        %v1918 = vpop.f32.mrb[0].mxu0
        %v1919 = vadd.f32 %v1674, %v1918
        %v1920 = vpop.f32.mrb[0].mxu0
        %1921 = vmatprep.mubr.f32.mxu0 0.0
        %1922 = vmatmul.mubr.f32.gmra.mrb[0].mxu0 %v1726
        %v1923 = vpop.f32.mrb[0].mxu0
        %v1924 = vadd.f32 %v1674, %v1923
        %v1925 = vpop.f32.mrb[0].mxu0
        %1926 = vmatprep.mubr.f32.mxu0 0.0
        %1927 = vmatmul.mubr.f32.gmra.mrb[0].mxu0 %v1729
        %v1928 = vpop.f32.mrb[0].mxu0
        %v1929 = vadd.f32 %v1674, %v1928
        %v1930 = vpop.f32.mrb[0].mxu0
        %1931 = vmatprep.mubr.f32.mxu0 0.0
        %1932 = vmatmul.mubr.f32.gmra.mrb[0].mxu0 %v1732
        %v1933 = vpop.f32.mrb[0].mxu0
        %v1934 = vadd.f32 %v1674, %v1933
        %v1935 = vpop.f32.mrb[0].mxu0
        %1936 = vmatprep.mubr.f32.mxu0 0.0
        %1937 = vmatmul.mubr.f32.gmra.mrb[0].mxu0 %v1735
        %v1938 = vpop.f32.mrb[0].mxu0
        %v1939 = vadd.f32 %v1674, %v1938
        %v1940 = vpop.f32.mrb[0].mxu0
        %1941 = vmatprep.mubr.f32.mxu0 0.0
        %1942 = vmatmul.mubr.f32.gmra.mrb[0].mxu0 %v1738
        %v1943 = vpop.f32.mrb[0].mxu0
        %v1944 = vadd.f32 %v1674, %v1943
        %v1945 = vpop.f32.mrb[0].mxu0
        %1946 = vmatprep.mubr.f32.mxu0 0.0
        %1947 = vmatmul.mubr.f32.gmra.mrb[0].mxu0 %v1741
        %v1948 = vpop.f32.mrb[0].mxu0
        %v1949 = vadd.f32 %v1674, %v1948
        %v1950 = vpop.f32.mrb[0].mxu0
        %1951 = vmatprep.mubr.f32.mxu0 0.0
        %1952 = vmatmul.mubr.f32.gmra.mrb[0].mxu0 %v1744
        %v1953 = vpop.f32.mrb[0].mxu0
        %v1954 = vadd.f32 %v1674, %v1953
        %v1955 = vpop.f32.mrb[0].mxu0
        %1956 = vmatprep.mubr.f32.mxu0 0.0
        %1957 = vmatmul.mubr.f32.gmra.mrb[0].mxu0 %v1747
        %v1958 = vpop.f32.mrb[0].mxu0
        %v1959 = vadd.f32 %v1674, %v1958
        %v1960 = vpop.f32.mrb[0].mxu0
        %1961 = vmatprep.mubr.f32.mxu0 0.0
        %1962 = vmatmul.mubr.f32.gmra.mrb[0].mxu0 %v1750
        %v1963 = vpop.f32.mrb[0].mxu0
        %v1964 = vadd.f32 %v1674, %v1963
        %v1965 = vpop.f32.mrb[0].mxu0
        %1966 = vmatprep.mubr.f32.mxu0 0.0
        %1967 = vmatmul.mubr.f32.gmra.mrb[0].mxu0 %v1753
        %v1968 = vpop.f32.mrb[0].mxu0
        %v1969 = vadd.f32 %v1674, %v1968
        %v1970 = vpop.f32.mrb[0].mxu0
        %1971 = vmatprep.mubr.f32.mxu0 0.0
        %1972 = vmatmul.mubr.f32.gmra.mrb[0].mxu0 %v1756
        %v1973 = vpop.f32.mrb[0].mxu0
        %v1974 = vadd.f32 %v1674, %v1973
        %v1975 = vpop.f32.mrb[0].mxu0
        %1976 = vmatprep.mubr.f32.mxu0 0.0
        %1977 = vmatmul.mubr.f32.gmra.mrb[0].mxu0 %v1759
        %v1978 = vpop.f32.mrb[0].mxu0
        %v1979 = vadd.f32 %v1674, %v1978
        %v1980 = vpop.f32.mrb[0].mxu0
        %1981 = vmatprep.mubr.f32.mxu0 0.0
        %1982 = vmatmul.mubr.f32.gmra.mrb[0].mxu0 %v1762
        %v1983 = vpop.f32.mrb[0].mxu0
        %v1984 = vadd.f32 %v1674, %v1983
        %v1985 = vpop.f32.mrb[0].mxu0
        %1986 = vmatprep.mubr.f32.mxu0 0.0
        %1987 = vmatmul.mubr.f32.gmra.mrb[0].mxu0 %v1765
        %v1988 = vpop.f32.mrb[0].mxu0
        %v1989 = vadd.f32 %v1674, %v1988
        %v1990 = vpop.f32.mrb[0].mxu0
        %1991 = vmatprep.mubr.f32.mxu0 0.0
        %1992 = vmatmul.mubr.f32.gmra.mrb[0].mxu0 %v1768
        %v1993 = vpop.f32.mrb[0].mxu0
        %v1994 = vadd.f32 %v1674, %v1993
        %v1995 = vpop.f32.mrb[0].mxu0
        %1996 = vmatprep.mubr.f32.mxu0 0.0
        %1997 = vmatmul.mubr.f32.gmra.mrb[0].mxu0 %v1771
        %v1998 = vpop.f32.mrb[0].mxu0
        %v1999 = vadd.f32 %v1674, %v1998
        %v2000 = vpop.f32.mrb[0].mxu0
        %2001 = vdwg.mxu0
        %vm2002 = vcmp.gt.f32.partialorder %v1844, 0.0
        %vm2003 = vcmp.gt.f32.partialorder %v1849, 0.0
        %vm2004 = vcmp.gt.f32.partialorder %v1854, 0.0
        %vm2005 = vcmp.gt.f32.partialorder %v1859, 0.0
        %vm2006 = vcmp.gt.f32.partialorder %v1864, 0.0
        %vm2007 = vcmp.gt.f32.partialorder %v1869, 0.0
        %vm2008 = vcmp.gt.f32.partialorder %v1874, 0.0
        %vm2009 = vcmp.gt.f32.partialorder %v1879, 0.0
        %vm2010 = vcmp.gt.f32.partialorder %v1884, 0.0
        %vm2011 = vcmp.gt.f32.partialorder %v1889, 0.0
        %vm2012 = vcmp.gt.f32.partialorder %v1894, 0.0
        %vm2013 = vcmp.gt.f32.partialorder %v1899, 0.0
        %vm2014 = vcmp.gt.f32.partialorder %v1904, 0.0
        %vm2015 = vcmp.gt.f32.partialorder %v1909, 0.0
        %vm2016 = vcmp.gt.f32.partialorder %v1914, 0.0
        %vm2017 = vcmp.gt.f32.partialorder %v1919, 0.0
        %vm2018 = vcmp.gt.f32.partialorder %v1924, 0.0
        %vm2019 = vcmp.gt.f32.partialorder %v1929, 0.0
        %vm2020 = vcmp.gt.f32.partialorder %v1934, 0.0
        %vm2021 = vcmp.gt.f32.partialorder %v1939, 0.0
        %vm2022 = vcmp.gt.f32.partialorder %v1944, 0.0
        %vm2023 = vcmp.gt.f32.partialorder %v1949, 0.0
        %vm2024 = vcmp.gt.f32.partialorder %v1954, 0.0
        %vm2025 = vcmp.gt.f32.partialorder %v1959, 0.0
        %vm2026 = vcmp.gt.f32.partialorder %v1964, 0.0
        %vm2027 = vcmp.gt.f32.partialorder %v1969, 0.0
        %vm2028 = vcmp.gt.f32.partialorder %v1974, 0.0
        %vm2029 = vcmp.gt.f32.partialorder %v1979, 0.0
        %vm2030 = vcmp.gt.f32.partialorder %v1984, 0.0
        %vm2031 = vcmp.gt.f32.partialorder %v1989, 0.0
        %vm2032 = vcmp.gt.f32.partialorder %v1994, 0.0
        %vm2033 = vcmp.gt.f32.partialorder %v1999, 0.0
        %v2034 = vmul.f32 %v1844, 0.01
        %v2035 = vmul.f32 %v1849, 0.01
        %v2036 = vmul.f32 %v1854, 0.01
        %v2037 = vmul.f32 %v1859, 0.01
        %v2038 = vmul.f32 %v1864, 0.01
        %v2039 = vmul.f32 %v1869, 0.01
        %v2040 = vmul.f32 %v1874, 0.01
        %v2041 = vmul.f32 %v1879, 0.01
        %v2042 = vmul.f32 %v1884, 0.01
        %v2043 = vmul.f32 %v1889, 0.01
        %v2044 = vmul.f32 %v1894, 0.01
        %v2045 = vmul.f32 %v1899, 0.01
        %v2046 = vmul.f32 %v1904, 0.01
        %v2047 = vmul.f32 %v1909, 0.01
        %v2048 = vmul.f32 %v1914, 0.01
        %v2049 = vmul.f32 %v1919, 0.01
        %v2050 = vmul.f32 %v1924, 0.01
        %v2051 = vmul.f32 %v1929, 0.01
        %v2052 = vmul.f32 %v1934, 0.01
        %v2053 = vmul.f32 %v1939, 0.01
        %v2054 = vmul.f32 %v1944, 0.01
        %v2055 = vmul.f32 %v1949, 0.01
        %v2056 = vmul.f32 %v1954, 0.01
        %v2057 = vmul.f32 %v1959, 0.01
        %v2058 = vmul.f32 %v1964, 0.01
        %v2059 = vmul.f32 %v1969, 0.01
        %v2060 = vmul.f32 %v1974, 0.01
        %v2061 = vmul.f32 %v1979, 0.01
        %v2062 = vmul.f32 %v1984, 0.01
        %v2063 = vmul.f32 %v1989, 0.01
        %v2064 = vmul.f32 %v1994, 0.01
        %v2065 = vmul.f32 %v1999, 0.01
        %v2066 = vsel %vm2002, %v1844, %v2034
        %v2067 = vsel %vm2003, %v1849, %v2035
        %v2068 = vsel %vm2004, %v1854, %v2036
        %v2069 = vsel %vm2005, %v1859, %v2037
        %v2070 = vsel %vm2006, %v1864, %v2038
        %v2071 = vsel %vm2007, %v1869, %v2039
        %v2072 = vsel %vm2008, %v1874, %v2040
        %v2073 = vsel %vm2009, %v1879, %v2041
        %v2074 = vsel %vm2010, %v1884, %v2042
        %v2075 = vsel %vm2011, %v1889, %v2043
        %v2076 = vsel %vm2012, %v1894, %v2044
        %v2077 = vsel %vm2013, %v1899, %v2045
        %v2078 = vsel %vm2014, %v1904, %v2046
        %v2079 = vsel %vm2015, %v1909, %v2047
        %v2080 = vsel %vm2016, %v1914, %v2048
        %v2081 = vsel %vm2017, %v1919, %v2049
        %v2082 = vsel %vm2018, %v1924, %v2050
        %v2083 = vsel %vm2019, %v1929, %v2051
        %v2084 = vsel %vm2020, %v1934, %v2052
        %v2085 = vsel %vm2021, %v1939, %v2053
        %v2086 = vsel %vm2022, %v1944, %v2054
        %v2087 = vsel %vm2023, %v1949, %v2055
        %v2088 = vsel %vm2024, %v1954, %v2056
        %v2089 = vsel %vm2025, %v1959, %v2057
        %v2090 = vsel %vm2026, %v1964, %v2058
        %v2091 = vsel %vm2027, %v1969, %v2059
        %v2092 = vsel %vm2028, %v1974, %v2060
        %v2093 = vsel %vm2029, %v1979, %v2061
        %v2094 = vsel %vm2030, %v1984, %v2062
        %v2095 = vsel %vm2031, %v1989, %v2063
        %v2096 = vsel %vm2032, %v1994, %v2064
        %v2097 = vsel %vm2033, %v1999, %v2065
        %v2098 = vld [vmem:[%s3] sm:$0xf]
        %v2099 = vld [vmem:[%s4] sm:$0xf]
        %2101 = vset.pattern.permute.xlu0 0
        %2102 = vperm.xlu0 %2101, %v2099
        %v2103 = vpop.permute.xlu0 %2102
        %v2106 = vsel %vm1676, %v2098, 0
        %2108 = vmatprep.subr.mxu0 0.0
        %2109 = vmatpush1.xpose.msra.mxu0 %v1678
        %2110 = vmatprep.subr.mxu0 0.0
        %2111 = vmatpush1.xpose.msra.mxu0 %v1681
        %2112 = vmatprep.subr.mxu0 0.0
        %2113 = vmatpush1.xpose.msra.mxu0 %v1684
        %2114 = vmatprep.subr.mxu0 0.0
        %2115 = vmatpush1.xpose.msra.mxu0 %v1687
        %2116 = vmatprep.subr.mxu0 0.0
        %2117 = vmatpush1.xpose.msra.mxu0 %v1690
        %2118 = vmatprep.subr.mxu0 0.0
        %2119 = vmatpush1.xpose.msra.mxu0 %v1693
        %2120 = vmatprep.subr.mxu0 0.0
        %2121 = vmatpush1.xpose.msra.mxu0 %v1696
        %2122 = vmatprep.subr.mxu0 0.0
        %2123 = vmatpush1.xpose.msra.mxu0 %v1699
        %2124 = vmatprep.subr.mxu0 0.0
        %2125 = vmatpush1.xpose.msra.mxu0 %v1702
        %2126 = vmatprep.subr.mxu0 0.0
        %2127 = vmatpush1.xpose.msra.mxu0 %v1705
        %2128 = vmatprep.subr.mxu0 0.0
        %2129 = vmatpush1.xpose.msra.mxu0 %v1708
        %2130 = vmatprep.subr.mxu0 0.0
        %2131 = vmatpush1.xpose.msra.mxu0 %v1711
        %2132 = vmatprep.subr.mxu0 0.0
        %2133 = vmatpush1.xpose.msra.mxu0 %v1714
        %2134 = vmatprep.subr.mxu0 0.0
        %2135 = vmatpush1.xpose.msra.mxu0 %v1717
        %2136 = vmatprep.subr.mxu0 0.0
        %2137 = vmatpush1.xpose.msra.mxu0 %v1720
        %2138 = vmatprep.subr.mxu0 0.0
        %2139 = vmatpush1.xpose.msra.mxu0 %v1723
        %2140 = vmatprep.subr.mxu0 0.0
        %2141 = vmatpush1.xpose.msra.mxu0 %v1726
        %2142 = vmatprep.subr.mxu0 0.0
        %2143 = vmatpush1.xpose.msra.mxu0 %v1729
        %2144 = vmatprep.subr.mxu0 0.0
        %2145 = vmatpush1.xpose.msra.mxu0 %v1732
        %2146 = vmatprep.subr.mxu0 0.0
        %2147 = vmatpush1.xpose.msra.mxu0 %v1735
        %2148 = vmatprep.subr.mxu0 0.0
        %2149 = vmatpush1.xpose.msra.mxu0 %v1738
        %2150 = vmatprep.subr.mxu0 0.0
        %2151 = vmatpush1.xpose.msra.mxu0 %v1741
        %2152 = vmatprep.subr.mxu0 0.0
        %2153 = vmatpush1.xpose.msra.mxu0 %v1744
        %2154 = vmatprep.subr.mxu0 0.0
        %2155 = vmatpush1.xpose.msra.mxu0 %v1747
        %2156 = vmatprep.subr.mxu0 0.0
        %2157 = vmatpush1.xpose.msra.mxu0 %v1750
        %2158 = vmatprep.subr.mxu0 0.0
        %2159 = vmatpush1.xpose.msra.mxu0 %v1753
        %2160 = vmatprep.subr.mxu0 0.0
        %2161 = vmatpush1.xpose.msra.mxu0 %v1756
        %2162 = vmatprep.subr.mxu0 0.0
        %2163 = vmatpush1.xpose.msra.mxu0 %v1759
        %2164 = vmatprep.subr.mxu0 0.0
        %2165 = vmatpush1.xpose.msra.mxu0 %v1762
        %2166 = vmatprep.subr.mxu0 0.0
        %2167 = vmatpush1.xpose.msra.mxu0 %v1765
        %2168 = vmatprep.subr.mxu0 0.0
        %2169 = vmatpush1.xpose.msra.mxu0 %v1768
        %2170 = vmatprep.subr.mxu0 0.0
        %2171 = vmatpush1.xpose.msra.mxu0 %v1771
        %2172 = vmatprep.mubr.f32.mxu0 0.0
        %2173 = vmatmul.mubr.f32.gmra.mrb[0].mxu0 %v2106
        %v2174 = vpop.f32.mrb[0].mxu0
        %v2175 = vadd.f32 %v2103, %v2174
        %v2176 = vpop.f32.mrb[0].mxu0
        %v2177 = vadd.f32 %v2103, %v2176
        %2178 = vdwg.mxu0
        %vm2179 = vcmp.gt.f32.partialorder %v2175, 0.0
        %vm2180 = vcmp.gt.f32.partialorder %v2177, 0.0
        %v2181 = vmul.f32 %v2175, 0.01
        %v2182 = vmul.f32 %v2177, 0.01
        %v2183 = vsel %vm2179, %v2175, %v2181
        %v2184 = vsel %vm2180, %v2177, %v2182
        %vm2185 = vcmask 24576
        %2186 = vst.msk [vmem:[#allocation4] sm:$0x1] %vm2185, 0.0
        %2187 = vst.msk [vmem:[#allocation4 + $0x18] sm:$0x1] %vm2185, 0.0
        %2188 = vst.msk [vmem:[#allocation4 + $0x30] sm:$0x1] %vm2185, 0.0
        %2189 = vst.msk [vmem:[#allocation4 + $0x48] sm:$0x1] %vm2185, 0.0
        %2190 = vst.msk [vmem:[#allocation4 + $0x60] sm:$0x1] %vm2185, 0.0
        %2191 = vst.msk [vmem:[#allocation4 + $0x78] sm:$0x1] %vm2185, 0.0
        %2192 = vst.msk [vmem:[#allocation4 + $0x90] sm:$0x1] %vm2185, 0.0
        %2193 = vst.msk [vmem:[#allocation4 + $0xa8] sm:$0x1] %vm2185, 0.0
        %2194 = vst.msk [vmem:[#allocation4 + $0xc0] sm:$0x1] %vm2185, 0.0
        %2195 = vst.msk [vmem:[#allocation4 + $0xd8] sm:$0x1] %vm2185, 0.0
        %2196 = vst.msk [vmem:[#allocation4 + $0xf0] sm:$0x1] %vm2185, 0.0
        %2197 = vst.msk [vmem:[#allocation4 + $0x108] sm:$0x1] %vm2185, 0.0
        %2198 = vst.msk [vmem:[#allocation4 + $0x120] sm:$0x1] %vm2185, 0.0
        %2199 = vst.msk [vmem:[#allocation4 + $0x138] sm:$0x1] %vm2185, 0.0
        %2200 = vst.msk [vmem:[#allocation4 + $0x150] sm:$0x1] %vm2185, 0.0
        %2201 = vst.msk [vmem:[#allocation4 + $0x168] sm:$0x1] %vm2185, 0.0
        %2202 = vst.msk [vmem:[#allocation4 + $0x180] sm:$0x1] %vm2185, 0.0
        %2203 = vst.msk [vmem:[#allocation4 + $0x198] sm:$0x1] %vm2185, 0.0
        %2204 = vst.msk [vmem:[#allocation4 + $0x11] sm:$0x1] %vm2185, 0.0
        %2205 = vst.msk [vmem:[#allocation4 + $0x29] sm:$0x1] %vm2185, 0.0
        %2206 = vst.msk [vmem:[#allocation4 + $0x41] sm:$0x1] %vm2185, 0.0
        %2207 = vst.msk [vmem:[#allocation4 + $0x59] sm:$0x1] %vm2185, 0.0
        %2208 = vst.msk [vmem:[#allocation4 + $0x71] sm:$0x1] %vm2185, 0.0
        %2209 = vst.msk [vmem:[#allocation4 + $0x89] sm:$0x1] %vm2185, 0.0
        %2210 = vst.msk [vmem:[#allocation4 + $0xa1] sm:$0x1] %vm2185, 0.0
        %2211 = vst.msk [vmem:[#allocation4 + $0xb9] sm:$0x1] %vm2185, 0.0
        %2212 = vst.msk [vmem:[#allocation4 + $0xd1] sm:$0x1] %vm2185, 0.0
        %2213 = vst.msk [vmem:[#allocation4 + $0xe9] sm:$0x1] %vm2185, 0.0
        %2214 = vst.msk [vmem:[#allocation4 + $0x101] sm:$0x1] %vm2185, 0.0
        %2215 = vst.msk [vmem:[#allocation4 + $0x119] sm:$0x1] %vm2185, 0.0
        %2216 = vst.msk [vmem:[#allocation4 + $0x131] sm:$0x1] %vm2185, 0.0
        %2217 = vst.msk [vmem:[#allocation4 + $0x149] sm:$0x1] %vm2185, 0.0
        %2218 = vst.msk [vmem:[#allocation4 + $0x161] sm:$0x1] %vm2185, 0.0
        %2219 = vst.msk [vmem:[#allocation4 + $0x179] sm:$0x1] %vm2185, 0.0
        %2220 = vst.msk [vmem:[#allocation4 + $0x191] sm:$0x1] %vm2185, 0.0
        %2221 = vst.msk [vmem:[#allocation4 + $0x1a9] sm:$0x1] %vm2185, 0.0
        %2222 = vst.msk [vmem:[#allocation4] sm:$0xff] %vm331, 0.0
        %2223 = vst.msk [vmem:[#allocation4 + $0x8] sm:$0xff] %vm331, 0.0
        %vm2224 = vcmask 25600
        %2225 = vst.msk [vmem:[#allocation4 + $0x10] sm:$0x3] %vm2224, 0.0
        %s2226 = scalar_lea.vmem [#allocation4], 408
        %2227 = vst.msk [vmem:[%s2226] sm:$0xff] %vm331, 0.0
        %2228 = vst.msk [vmem:[%s2226 + $0x8] sm:$0xff] %vm331, 0.0
        %2229 = vst.msk [vmem:[%s2226 + $0x10] sm:$0x3] %vm2224, 0.0
        %s2230 = scalar_lea.vmem [#allocation4], 24
        %2231 = vst.msk [vmem:[%s2230 + $0x1] sm:$0xff] %vm331, %v2066
        %2232 = vst.msk [vmem:[%s2230 + $0x9] sm:$0xff] %vm331, %v2067
        %2233 = vst.msk [vmem:[%s2230 + $0x19] sm:$0xff] %vm331, %v2068
        %2234 = vst.msk [vmem:[%s2230 + $0x21] sm:$0xff] %vm331, %v2069
        %2235 = vst.msk [vmem:[%s2230 + $0x31] sm:$0xff] %vm331, %v2070
        %2236 = vst.msk [vmem:[%s2230 + $0x39] sm:$0xff] %vm331, %v2071
        %2237 = vst.msk [vmem:[%s2230 + $0x49] sm:$0xff] %vm331, %v2072
        %2238 = vst.msk [vmem:[%s2230 + $0x51] sm:$0xff] %vm331, %v2073
        %2239 = vst.msk [vmem:[%s2230 + $0x61] sm:$0xff] %vm331, %v2074
        %2240 = vst.msk [vmem:[%s2230 + $0x69] sm:$0xff] %vm331, %v2075
        %2241 = vst.msk [vmem:[%s2230 + $0x79] sm:$0xff] %vm331, %v2076
        %2242 = vst.msk [vmem:[%s2230 + $0x81] sm:$0xff] %vm331, %v2077
        %2243 = vst.msk [vmem:[%s2230 + $0x91] sm:$0xff] %vm331, %v2078
        %2244 = vst.msk [vmem:[%s2230 + $0x99] sm:$0xff] %vm331, %v2079
        %2245 = vst.msk [vmem:[%s2230 + $0xa9] sm:$0xff] %vm331, %v2080
        %2246 = vst.msk [vmem:[%s2230 + $0xb1] sm:$0xff] %vm331, %v2081
        %2247 = vst.msk [vmem:[%s2230 + $0xc1] sm:$0xff] %vm331, %v2082
        %2248 = vst.msk [vmem:[%s2230 + $0xc9] sm:$0xff] %vm331, %v2083
        %2249 = vst.msk [vmem:[%s2230 + $0xd9] sm:$0xff] %vm331, %v2084
        %2250 = vst.msk [vmem:[%s2230 + $0xe1] sm:$0xff] %vm331, %v2085
        %2251 = vst.msk [vmem:[%s2230 + $0xf1] sm:$0xff] %vm331, %v2086
        %2252 = vst.msk [vmem:[%s2230 + $0xf9] sm:$0xff] %vm331, %v2087
        %2253 = vst.msk [vmem:[%s2230 + $0x109] sm:$0xff] %vm331, %v2088
        %2254 = vst.msk [vmem:[%s2230 + $0x111] sm:$0xff] %vm331, %v2089
        %2255 = vst.msk [vmem:[%s2230 + $0x121] sm:$0xff] %vm331, %v2090
        %2256 = vst.msk [vmem:[%s2230 + $0x129] sm:$0xff] %vm331, %v2091
        %2257 = vst.msk [vmem:[%s2230 + $0x139] sm:$0xff] %vm331, %v2092
        %2258 = vst.msk [vmem:[%s2230 + $0x141] sm:$0xff] %vm331, %v2093
        %2259 = vst.msk [vmem:[%s2230 + $0x151] sm:$0xff] %vm331, %v2094
        %2260 = vst.msk [vmem:[%s2230 + $0x159] sm:$0xff] %vm331, %v2095
        %2261 = vst.msk [vmem:[%s2230 + $0x169] sm:$0xff] %vm331, %v2096
        %2262 = vst.msk [vmem:[%s2230 + $0x171] sm:$0xff] %vm331, %v2097
        %v2263 = vld [vmem:[#allocation4] sm:$0xff]
        %v2264 = vld [vmem:[#allocation4 + $0x8] sm:$0xff]
        %v2265 = vld [vmem:[#allocation4 + $0x10] sm:$0x3]
        %v2266 = vld [vmem:[#allocation4 + $0x18] sm:$0xff]
        %v2267 = vld [vmem:[#allocation4 + $0x20] sm:$0xff]
        %v2268 = vld [vmem:[#allocation4 + $0x28] sm:$0x3]
        %v2269 = vld [vmem:[#allocation4 + $0x30] sm:$0xff]
        %v2270 = vld [vmem:[#allocation4 + $0x38] sm:$0xff]
        %v2271 = vld [vmem:[#allocation4 + $0x40] sm:$0x3]
        %v2272 = vld [vmem:[#allocation4 + $0x48] sm:$0xff]
        %v2273 = vld [vmem:[#allocation4 + $0x50] sm:$0xff]
        %v2274 = vld [vmem:[#allocation4 + $0x58] sm:$0x3]
        %v2275 = vld [vmem:[#allocation4 + $0x60] sm:$0xff]
        %v2276 = vld [vmem:[#allocation4 + $0x68] sm:$0xff]
        %v2277 = vld [vmem:[#allocation4 + $0x70] sm:$0x3]
        %v2278 = vld [vmem:[#allocation4 + $0x78] sm:$0xff]
        %v2279 = vld [vmem:[#allocation4 + $0x80] sm:$0xff]
        %v2280 = vld [vmem:[#allocation4 + $0x88] sm:$0x3]
        %v2281 = vld [vmem:[#allocation4 + $0x90] sm:$0xff]
        %v2282 = vld [vmem:[#allocation4 + $0x98] sm:$0xff]
        %v2283 = vld [vmem:[#allocation4 + $0xa0] sm:$0x3]
        %v2284 = vld [vmem:[#allocation4 + $0xa8] sm:$0xff]
        %v2285 = vld [vmem:[#allocation4 + $0xb0] sm:$0xff]
        %v2286 = vld [vmem:[#allocation4 + $0xb8] sm:$0x3]
        %v2287 = vld [vmem:[#allocation4 + $0xc0] sm:$0xff]
        %v2288 = vld [vmem:[#allocation4 + $0xc8] sm:$0xff]
        %v2289 = vld [vmem:[#allocation4 + $0xd0] sm:$0x3]
        %v2290 = vld [vmem:[#allocation4 + $0xd8] sm:$0xff]
        %v2291 = vld [vmem:[#allocation4 + $0xe0] sm:$0xff]
        %v2292 = vld [vmem:[#allocation4 + $0xe8] sm:$0x3]
        %v2293 = vld [vmem:[#allocation4 + $0xf0] sm:$0xff]
        %v2294 = vld [vmem:[#allocation4 + $0xf8] sm:$0xff]
        %v2295 = vld [vmem:[#allocation4 + $0x100] sm:$0x3]
        %v2296 = vld [vmem:[#allocation4 + $0x108] sm:$0xff]
        %v2297 = vld [vmem:[#allocation4 + $0x110] sm:$0xff]
        %v2298 = vld [vmem:[#allocation4 + $0x118] sm:$0x3]
        %v2299 = vld [vmem:[#allocation4 + $0x120] sm:$0xff]
        %v2300 = vld [vmem:[#allocation4 + $0x128] sm:$0xff]
        %v2301 = vld [vmem:[#allocation4 + $0x130] sm:$0x3]
        %v2302 = vld [vmem:[#allocation4 + $0x138] sm:$0xff]
        %v2303 = vld [vmem:[#allocation4 + $0x140] sm:$0xff]
        %v2304 = vld [vmem:[#allocation4 + $0x148] sm:$0x3]
        %v2305 = vld [vmem:[#allocation4 + $0x150] sm:$0xff]
        %v2306 = vld [vmem:[#allocation4 + $0x158] sm:$0xff]
        %v2307 = vld [vmem:[#allocation4 + $0x160] sm:$0x3]
        %v2308 = vld [vmem:[#allocation4 + $0x168] sm:$0xff]
        %v2309 = vld [vmem:[#allocation4 + $0x170] sm:$0xff]
        %v2310 = vld [vmem:[#allocation4 + $0x178] sm:$0x3]
        %v2311 = vld [vmem:[#allocation4 + $0x180] sm:$0xff]
        %v2312 = vld [vmem:[#allocation4 + $0x188] sm:$0xff]
        %v2313 = vld [vmem:[#allocation4 + $0x190] sm:$0x3]
        %v2314 = vld [vmem:[#allocation4 + $0x198] sm:$0xff]
        %v2315 = vld [vmem:[#allocation4 + $0x1a0] sm:$0xff]
        %v2316 = vld [vmem:[#allocation4 + $0x1a8] sm:$0x3]
        %2317 = vst.msk [vmem:[#allocation3] sm:$0xff] %vm331, %v2263
        %2318 = vst.msk [vmem:[#allocation3 + $0x8] sm:$0xff] %vm331, %v2264
        %2319 = vst.msk [vmem:[#allocation3 + $0x10] sm:$0xff] %vm331, %v2266
        %2320 = vst.msk [vmem:[#allocation3 + $0x18] sm:$0xff] %vm331, %v2267
        %2321 = vst.msk [vmem:[#allocation3 + $0x20] sm:$0xff] %vm331, %v2269
        %2322 = vst.msk [vmem:[#allocation3 + $0x28] sm:$0xff] %vm331, %v2270
        %2323 = vst.msk [vmem:[#allocation3 + $0x30] sm:$0xff] %vm331, %v2272
        %2324 = vst.msk [vmem:[#allocation3 + $0x38] sm:$0xff] %vm331, %v2273
        %2325 = vst.msk [vmem:[#allocation3 + $0x40] sm:$0xff] %vm331, %v2275
        %2326 = vst.msk [vmem:[#allocation3 + $0x48] sm:$0xff] %vm331, %v2276
        %2327 = vst.msk [vmem:[#allocation3 + $0x50] sm:$0xff] %vm331, %v2278
        %2328 = vst.msk [vmem:[#allocation3 + $0x58] sm:$0xff] %vm331, %v2279
        %2329 = vst.msk [vmem:[#allocation3 + $0x60] sm:$0xff] %vm331, %v2281
        %2330 = vst.msk [vmem:[#allocation3 + $0x68] sm:$0xff] %vm331, %v2282
        %2331 = vst.msk [vmem:[#allocation3 + $0x70] sm:$0xff] %vm331, %v2284
        %2332 = vst.msk [vmem:[#allocation3 + $0x78] sm:$0xff] %vm331, %v2285
        %2333 = vst.msk [vmem:[#allocation3 + $0x80] sm:$0xff] %vm331, %v2287
        %2334 = vst.msk [vmem:[#allocation3 + $0x88] sm:$0xff] %vm331, %v2288
        %2335 = vst.msk [vmem:[#allocation3 + $0x90] sm:$0xff] %vm331, %v2290
        %2336 = vst.msk [vmem:[#allocation3 + $0x98] sm:$0xff] %vm331, %v2291
        %2337 = vst.msk [vmem:[#allocation3 + $0xa0] sm:$0xff] %vm331, %v2293
        %2338 = vst.msk [vmem:[#allocation3 + $0xa8] sm:$0xff] %vm331, %v2294
        %2339 = vst.msk [vmem:[#allocation3 + $0xb0] sm:$0xff] %vm331, %v2296
        %2340 = vst.msk [vmem:[#allocation3 + $0xb8] sm:$0xff] %vm331, %v2297
        %2341 = vst.msk [vmem:[#allocation3 + $0xc0] sm:$0xff] %vm331, %v2299
        %2342 = vst.msk [vmem:[#allocation3 + $0xc8] sm:$0xff] %vm331, %v2300
        %2343 = vst.msk [vmem:[#allocation3 + $0xd0] sm:$0xff] %vm331, %v2302
        %2344 = vst.msk [vmem:[#allocation3 + $0xd8] sm:$0xff] %vm331, %v2303
        %2345 = vst.msk [vmem:[#allocation3 + $0xe0] sm:$0xff] %vm331, %v2305
        %2346 = vst.msk [vmem:[#allocation3 + $0xe8] sm:$0xff] %vm331, %v2306
        %2347 = vst.msk [vmem:[#allocation3 + $0xf0] sm:$0xff] %vm331, %v2308
        %2348 = vst.msk [vmem:[#allocation3 + $0xf8] sm:$0xff] %vm331, %v2309
        %v2397 = vrot.slane %v2263, 1
        %v2398 = vrot.slane %v2264, 1
        %v2399 = vsel %vm412, %v2397, %v2398
        %v2400 = vrot.slane %v2265, 1
        %v2401 = vsel %vm412, %v2398, %v2400
        %v2402 = vrot.slane %v2266, 1
        %v2403 = vrot.slane %v2267, 1
        %v2404 = vsel %vm412, %v2402, %v2403
        %v2405 = vrot.slane %v2268, 1
        %v2406 = vsel %vm412, %v2403, %v2405
        %v2407 = vrot.slane %v2269, 1
        %v2408 = vrot.slane %v2270, 1
        %v2409 = vsel %vm412, %v2407, %v2408
        %v2410 = vrot.slane %v2271, 1
        %v2411 = vsel %vm412, %v2408, %v2410
        %v2412 = vrot.slane %v2272, 1
        %v2413 = vrot.slane %v2273, 1
        %v2414 = vsel %vm412, %v2412, %v2413
        %v2415 = vrot.slane %v2274, 1
        %v2416 = vsel %vm412, %v2413, %v2415
        %v2417 = vrot.slane %v2275, 1
        %v2418 = vrot.slane %v2276, 1
        %v2419 = vsel %vm412, %v2417, %v2418
        %v2420 = vrot.slane %v2277, 1
        %v2421 = vsel %vm412, %v2418, %v2420
        %v2422 = vrot.slane %v2278, 1
        %v2423 = vrot.slane %v2279, 1
        %v2424 = vsel %vm412, %v2422, %v2423
        %v2425 = vrot.slane %v2280, 1
        %v2426 = vsel %vm412, %v2423, %v2425
        %v2427 = vrot.slane %v2281, 1
        %v2428 = vrot.slane %v2282, 1
        %v2429 = vsel %vm412, %v2427, %v2428
        %v2430 = vrot.slane %v2283, 1
        %v2431 = vsel %vm412, %v2428, %v2430
        %v2432 = vrot.slane %v2284, 1
        %v2433 = vrot.slane %v2285, 1
        %v2434 = vsel %vm412, %v2432, %v2433
        %v2435 = vrot.slane %v2286, 1
        %v2436 = vsel %vm412, %v2433, %v2435
        %v2437 = vrot.slane %v2287, 1
        %v2438 = vrot.slane %v2288, 1
        %v2439 = vsel %vm412, %v2437, %v2438
        %v2440 = vrot.slane %v2289, 1
        %v2441 = vsel %vm412, %v2438, %v2440
        %v2442 = vrot.slane %v2290, 1
        %v2443 = vrot.slane %v2291, 1
        %v2444 = vsel %vm412, %v2442, %v2443
        %v2445 = vrot.slane %v2292, 1
        %v2446 = vsel %vm412, %v2443, %v2445
        %v2447 = vrot.slane %v2293, 1
        %v2448 = vrot.slane %v2294, 1
        %v2449 = vsel %vm412, %v2447, %v2448
        %v2450 = vrot.slane %v2295, 1
        %v2451 = vsel %vm412, %v2448, %v2450
        %v2452 = vrot.slane %v2296, 1
        %v2453 = vrot.slane %v2297, 1
        %v2454 = vsel %vm412, %v2452, %v2453
        %v2455 = vrot.slane %v2298, 1
        %v2456 = vsel %vm412, %v2453, %v2455
        %v2457 = vrot.slane %v2299, 1
        %v2458 = vrot.slane %v2300, 1
        %v2459 = vsel %vm412, %v2457, %v2458
        %v2460 = vrot.slane %v2301, 1
        %v2461 = vsel %vm412, %v2458, %v2460
        %v2462 = vrot.slane %v2302, 1
        %v2463 = vrot.slane %v2303, 1
        %v2464 = vsel %vm412, %v2462, %v2463
        %v2465 = vrot.slane %v2304, 1
        %v2466 = vsel %vm412, %v2463, %v2465
        %v2467 = vrot.slane %v2305, 1
        %v2468 = vrot.slane %v2306, 1
        %v2469 = vsel %vm412, %v2467, %v2468
        %v2470 = vrot.slane %v2307, 1
        %v2471 = vsel %vm412, %v2468, %v2470
        %v2472 = vrot.slane %v2308, 1
        %v2473 = vrot.slane %v2309, 1
        %v2474 = vsel %vm412, %v2472, %v2473
        %v2475 = vrot.slane %v2310, 1
        %v2476 = vsel %vm412, %v2473, %v2475
        %2477 = vrot.lane.b32.xlu0 %v2399, 4
        %v2478 = vpop.permute.xlu0 %2477
        %2479 = vrot.lane.b32.xlu0 %v2401, 4
        %v2480 = vpop.permute.xlu0 %2479
        %2481 = vrot.lane.b32.xlu0 %v2404, 4
        %v2482 = vpop.permute.xlu0 %2481
        %2483 = vrot.lane.b32.xlu0 %v2406, 4
        %v2484 = vpop.permute.xlu0 %2483
        %2485 = vrot.lane.b32.xlu0 %v2409, 4
        %v2486 = vpop.permute.xlu0 %2485
        %2487 = vrot.lane.b32.xlu0 %v2411, 4
        %v2488 = vpop.permute.xlu0 %2487
        %2489 = vrot.lane.b32.xlu0 %v2414, 4
        %v2490 = vpop.permute.xlu0 %2489
        %2491 = vrot.lane.b32.xlu0 %v2416, 4
        %v2492 = vpop.permute.xlu0 %2491
        %2493 = vrot.lane.b32.xlu0 %v2419, 4
        %v2494 = vpop.permute.xlu0 %2493
        %2495 = vrot.lane.b32.xlu0 %v2421, 4
        %v2496 = vpop.permute.xlu0 %2495
        %2497 = vrot.lane.b32.xlu0 %v2424, 4
        %v2498 = vpop.permute.xlu0 %2497
        %2499 = vrot.lane.b32.xlu0 %v2426, 4
        %v2500 = vpop.permute.xlu0 %2499
        %2501 = vrot.lane.b32.xlu0 %v2429, 4
        %v2502 = vpop.permute.xlu0 %2501
        %2503 = vrot.lane.b32.xlu0 %v2431, 4
        %v2504 = vpop.permute.xlu0 %2503
        %2505 = vrot.lane.b32.xlu0 %v2434, 4
        %v2506 = vpop.permute.xlu0 %2505
        %2507 = vrot.lane.b32.xlu0 %v2436, 4
        %v2508 = vpop.permute.xlu0 %2507
        %2509 = vrot.lane.b32.xlu0 %v2439, 4
        %v2510 = vpop.permute.xlu0 %2509
        %2511 = vrot.lane.b32.xlu0 %v2441, 4
        %v2512 = vpop.permute.xlu0 %2511
        %2513 = vrot.lane.b32.xlu0 %v2444, 4
        %v2514 = vpop.permute.xlu0 %2513
        %2515 = vrot.lane.b32.xlu0 %v2446, 4
        %v2516 = vpop.permute.xlu0 %2515
        %2517 = vrot.lane.b32.xlu0 %v2449, 4
        %v2518 = vpop.permute.xlu0 %2517
        %2519 = vrot.lane.b32.xlu0 %v2451, 4
        %v2520 = vpop.permute.xlu0 %2519
        %2521 = vrot.lane.b32.xlu0 %v2454, 4
        %v2522 = vpop.permute.xlu0 %2521
        %2523 = vrot.lane.b32.xlu0 %v2456, 4
        %v2524 = vpop.permute.xlu0 %2523
        %2525 = vrot.lane.b32.xlu0 %v2459, 4
        %v2526 = vpop.permute.xlu0 %2525
        %2527 = vrot.lane.b32.xlu0 %v2461, 4
        %v2528 = vpop.permute.xlu0 %2527
        %2529 = vrot.lane.b32.xlu0 %v2464, 4
        %v2530 = vpop.permute.xlu0 %2529
        %2531 = vrot.lane.b32.xlu0 %v2466, 4
        %v2532 = vpop.permute.xlu0 %2531
        %2533 = vrot.lane.b32.xlu0 %v2469, 4
        %v2534 = vpop.permute.xlu0 %2533
        %2535 = vrot.lane.b32.xlu0 %v2471, 4
        %v2536 = vpop.permute.xlu0 %2535
        %2537 = vrot.lane.b32.xlu0 %v2474, 4
        %v2538 = vpop.permute.xlu0 %2537
        %2539 = vrot.lane.b32.xlu0 %v2476, 4
        %v2540 = vpop.permute.xlu0 %2539
        %2573 = vst.msk [vmem:[#allocation3] sm:$0xff] %vm589, %v2478
        %2574 = vst.msk [vmem:[#allocation3 + $0x8] sm:$0xff] %vm589, %v2480
        %2575 = vst.msk [vmem:[#allocation3 + $0x10] sm:$0xff] %vm589, %v2482
        %2576 = vst.msk [vmem:[#allocation3 + $0x18] sm:$0xff] %vm589, %v2484
        %2577 = vst.msk [vmem:[#allocation3 + $0x20] sm:$0xff] %vm589, %v2486
        %2578 = vst.msk [vmem:[#allocation3 + $0x28] sm:$0xff] %vm589, %v2488
        %2579 = vst.msk [vmem:[#allocation3 + $0x30] sm:$0xff] %vm589, %v2490
        %2580 = vst.msk [vmem:[#allocation3 + $0x38] sm:$0xff] %vm589, %v2492
        %2581 = vst.msk [vmem:[#allocation3 + $0x40] sm:$0xff] %vm589, %v2494
        %2582 = vst.msk [vmem:[#allocation3 + $0x48] sm:$0xff] %vm589, %v2496
        %2583 = vst.msk [vmem:[#allocation3 + $0x50] sm:$0xff] %vm589, %v2498
        %2584 = vst.msk [vmem:[#allocation3 + $0x58] sm:$0xff] %vm589, %v2500
        %2585 = vst.msk [vmem:[#allocation3 + $0x60] sm:$0xff] %vm589, %v2502
        %2586 = vst.msk [vmem:[#allocation3 + $0x68] sm:$0xff] %vm589, %v2504
        %2587 = vst.msk [vmem:[#allocation3 + $0x70] sm:$0xff] %vm589, %v2506
        %2588 = vst.msk [vmem:[#allocation3 + $0x78] sm:$0xff] %vm589, %v2508
        %2589 = vst.msk [vmem:[#allocation3 + $0x80] sm:$0xff] %vm589, %v2510
        %2590 = vst.msk [vmem:[#allocation3 + $0x88] sm:$0xff] %vm589, %v2512
        %2591 = vst.msk [vmem:[#allocation3 + $0x90] sm:$0xff] %vm589, %v2514
        %2592 = vst.msk [vmem:[#allocation3 + $0x98] sm:$0xff] %vm589, %v2516
        %2593 = vst.msk [vmem:[#allocation3 + $0xa0] sm:$0xff] %vm589, %v2518
        %2594 = vst.msk [vmem:[#allocation3 + $0xa8] sm:$0xff] %vm589, %v2520
        %2595 = vst.msk [vmem:[#allocation3 + $0xb0] sm:$0xff] %vm589, %v2522
        %2596 = vst.msk [vmem:[#allocation3 + $0xb8] sm:$0xff] %vm589, %v2524
        %2597 = vst.msk [vmem:[#allocation3 + $0xc0] sm:$0xff] %vm589, %v2526
        %2598 = vst.msk [vmem:[#allocation3 + $0xc8] sm:$0xff] %vm589, %v2528
        %2599 = vst.msk [vmem:[#allocation3 + $0xd0] sm:$0xff] %vm589, %v2530
        %2600 = vst.msk [vmem:[#allocation3 + $0xd8] sm:$0xff] %vm589, %v2532
        %2601 = vst.msk [vmem:[#allocation3 + $0xe0] sm:$0xff] %vm589, %v2534
        %2602 = vst.msk [vmem:[#allocation3 + $0xe8] sm:$0xff] %vm589, %v2536
        %2603 = vst.msk [vmem:[#allocation3 + $0xf0] sm:$0xff] %vm589, %v2538
        %2604 = vst.msk [vmem:[#allocation3 + $0xf8] sm:$0xff] %vm589, %v2540
        %v2605 = vrot.slane %v2263, 2
        %v2606 = vrot.slane %v2264, 2
        %v2607 = vsel %vm622, %v2605, %v2606
        %v2608 = vrot.slane %v2265, 2
        %v2609 = vsel %vm622, %v2606, %v2608
        %v2610 = vrot.slane %v2266, 2
        %v2611 = vrot.slane %v2267, 2
        %v2612 = vsel %vm622, %v2610, %v2611
        %v2613 = vrot.slane %v2268, 2
        %v2614 = vsel %vm622, %v2611, %v2613
        %v2615 = vrot.slane %v2269, 2
        %v2616 = vrot.slane %v2270, 2
        %v2617 = vsel %vm622, %v2615, %v2616
        %v2618 = vrot.slane %v2271, 2
        %v2619 = vsel %vm622, %v2616, %v2618
        %v2620 = vrot.slane %v2272, 2
        %v2621 = vrot.slane %v2273, 2
        %v2622 = vsel %vm622, %v2620, %v2621
        %v2623 = vrot.slane %v2274, 2
        %v2624 = vsel %vm622, %v2621, %v2623
        %v2625 = vrot.slane %v2275, 2
        %v2626 = vrot.slane %v2276, 2
        %v2627 = vsel %vm622, %v2625, %v2626
        %v2628 = vrot.slane %v2277, 2
        %v2629 = vsel %vm622, %v2626, %v2628
        %v2630 = vrot.slane %v2278, 2
        %v2631 = vrot.slane %v2279, 2
        %v2632 = vsel %vm622, %v2630, %v2631
        %v2633 = vrot.slane %v2280, 2
        %v2634 = vsel %vm622, %v2631, %v2633
        %v2635 = vrot.slane %v2281, 2
        %v2636 = vrot.slane %v2282, 2
        %v2637 = vsel %vm622, %v2635, %v2636
        %v2638 = vrot.slane %v2283, 2
        %v2639 = vsel %vm622, %v2636, %v2638
        %v2640 = vrot.slane %v2284, 2
        %v2641 = vrot.slane %v2285, 2
        %v2642 = vsel %vm622, %v2640, %v2641
        %v2643 = vrot.slane %v2286, 2
        %v2644 = vsel %vm622, %v2641, %v2643
        %v2645 = vrot.slane %v2287, 2
        %v2646 = vrot.slane %v2288, 2
        %v2647 = vsel %vm622, %v2645, %v2646
        %v2648 = vrot.slane %v2289, 2
        %v2649 = vsel %vm622, %v2646, %v2648
        %v2650 = vrot.slane %v2290, 2
        %v2651 = vrot.slane %v2291, 2
        %v2652 = vsel %vm622, %v2650, %v2651
        %v2653 = vrot.slane %v2292, 2
        %v2654 = vsel %vm622, %v2651, %v2653
        %v2655 = vrot.slane %v2293, 2
        %v2656 = vrot.slane %v2294, 2
        %v2657 = vsel %vm622, %v2655, %v2656
        %v2658 = vrot.slane %v2295, 2
        %v2659 = vsel %vm622, %v2656, %v2658
        %v2660 = vrot.slane %v2296, 2
        %v2661 = vrot.slane %v2297, 2
        %v2662 = vsel %vm622, %v2660, %v2661
        %v2663 = vrot.slane %v2298, 2
        %v2664 = vsel %vm622, %v2661, %v2663
        %v2665 = vrot.slane %v2299, 2
        %v2666 = vrot.slane %v2300, 2
        %v2667 = vsel %vm622, %v2665, %v2666
        %v2668 = vrot.slane %v2301, 2
        %v2669 = vsel %vm622, %v2666, %v2668
        %v2670 = vrot.slane %v2302, 2
        %v2671 = vrot.slane %v2303, 2
        %v2672 = vsel %vm622, %v2670, %v2671
        %v2673 = vrot.slane %v2304, 2
        %v2674 = vsel %vm622, %v2671, %v2673
        %v2675 = vrot.slane %v2305, 2
        %v2676 = vrot.slane %v2306, 2
        %v2677 = vsel %vm622, %v2675, %v2676
        %v2678 = vrot.slane %v2307, 2
        %v2679 = vsel %vm622, %v2676, %v2678
        %v2680 = vrot.slane %v2308, 2
        %v2681 = vrot.slane %v2309, 2
        %v2682 = vsel %vm622, %v2680, %v2681
        %v2683 = vrot.slane %v2310, 2
        %v2684 = vsel %vm622, %v2681, %v2683
        %2685 = vrot.lane.b32.xlu0 %v2607, 8
        %v2686 = vpop.permute.xlu0 %2685
        %2687 = vrot.lane.b32.xlu0 %v2609, 8
        %v2688 = vpop.permute.xlu0 %2687
        %2689 = vrot.lane.b32.xlu0 %v2612, 8
        %v2690 = vpop.permute.xlu0 %2689
        %2691 = vrot.lane.b32.xlu0 %v2614, 8
        %v2692 = vpop.permute.xlu0 %2691
        %2693 = vrot.lane.b32.xlu0 %v2617, 8
        %v2694 = vpop.permute.xlu0 %2693
        %2695 = vrot.lane.b32.xlu0 %v2619, 8
        %v2696 = vpop.permute.xlu0 %2695
        %2697 = vrot.lane.b32.xlu0 %v2622, 8
        %v2698 = vpop.permute.xlu0 %2697
        %2699 = vrot.lane.b32.xlu0 %v2624, 8
        %v2700 = vpop.permute.xlu0 %2699
        %2701 = vrot.lane.b32.xlu0 %v2627, 8
        %v2702 = vpop.permute.xlu0 %2701
        %2703 = vrot.lane.b32.xlu0 %v2629, 8
        %v2704 = vpop.permute.xlu0 %2703
        %2705 = vrot.lane.b32.xlu0 %v2632, 8
        %v2706 = vpop.permute.xlu0 %2705
        %2707 = vrot.lane.b32.xlu0 %v2634, 8
        %v2708 = vpop.permute.xlu0 %2707
        %2709 = vrot.lane.b32.xlu0 %v2637, 8
        %v2710 = vpop.permute.xlu0 %2709
        %2711 = vrot.lane.b32.xlu0 %v2639, 8
        %v2712 = vpop.permute.xlu0 %2711
        %2713 = vrot.lane.b32.xlu0 %v2642, 8
        %v2714 = vpop.permute.xlu0 %2713
        %2715 = vrot.lane.b32.xlu0 %v2644, 8
        %v2716 = vpop.permute.xlu0 %2715
        %2717 = vrot.lane.b32.xlu0 %v2647, 8
        %v2718 = vpop.permute.xlu0 %2717
        %2719 = vrot.lane.b32.xlu0 %v2649, 8
        %v2720 = vpop.permute.xlu0 %2719
        %2721 = vrot.lane.b32.xlu0 %v2652, 8
        %v2722 = vpop.permute.xlu0 %2721
        %2723 = vrot.lane.b32.xlu0 %v2654, 8
        %v2724 = vpop.permute.xlu0 %2723
        %2725 = vrot.lane.b32.xlu0 %v2657, 8
        %v2726 = vpop.permute.xlu0 %2725
        %2727 = vrot.lane.b32.xlu0 %v2659, 8
        %v2728 = vpop.permute.xlu0 %2727
        %2729 = vrot.lane.b32.xlu0 %v2662, 8
        %v2730 = vpop.permute.xlu0 %2729
        %2731 = vrot.lane.b32.xlu0 %v2664, 8
        %v2732 = vpop.permute.xlu0 %2731
        %2733 = vrot.lane.b32.xlu0 %v2667, 8
        %v2734 = vpop.permute.xlu0 %2733
        %2735 = vrot.lane.b32.xlu0 %v2669, 8
        %v2736 = vpop.permute.xlu0 %2735
        %2737 = vrot.lane.b32.xlu0 %v2672, 8
        %v2738 = vpop.permute.xlu0 %2737
        %2739 = vrot.lane.b32.xlu0 %v2674, 8
        %v2740 = vpop.permute.xlu0 %2739
        %2741 = vrot.lane.b32.xlu0 %v2677, 8
        %v2742 = vpop.permute.xlu0 %2741
        %2743 = vrot.lane.b32.xlu0 %v2679, 8
        %v2744 = vpop.permute.xlu0 %2743
        %2745 = vrot.lane.b32.xlu0 %v2682, 8
        %v2746 = vpop.permute.xlu0 %2745
        %2747 = vrot.lane.b32.xlu0 %v2684, 8
        %v2748 = vpop.permute.xlu0 %2747
        %2781 = vst.msk [vmem:[#allocation3] sm:$0xff] %vm799, %v2686
        %2782 = vst.msk [vmem:[#allocation3 + $0x8] sm:$0xff] %vm799, %v2688
        %2783 = vst.msk [vmem:[#allocation3 + $0x10] sm:$0xff] %vm799, %v2690
        %2784 = vst.msk [vmem:[#allocation3 + $0x18] sm:$0xff] %vm799, %v2692
        %2785 = vst.msk [vmem:[#allocation3 + $0x20] sm:$0xff] %vm799, %v2694
        %2786 = vst.msk [vmem:[#allocation3 + $0x28] sm:$0xff] %vm799, %v2696
        %2787 = vst.msk [vmem:[#allocation3 + $0x30] sm:$0xff] %vm799, %v2698
        %2788 = vst.msk [vmem:[#allocation3 + $0x38] sm:$0xff] %vm799, %v2700
        %2789 = vst.msk [vmem:[#allocation3 + $0x40] sm:$0xff] %vm799, %v2702
        %2790 = vst.msk [vmem:[#allocation3 + $0x48] sm:$0xff] %vm799, %v2704
        %2791 = vst.msk [vmem:[#allocation3 + $0x50] sm:$0xff] %vm799, %v2706
        %2792 = vst.msk [vmem:[#allocation3 + $0x58] sm:$0xff] %vm799, %v2708
        %2793 = vst.msk [vmem:[#allocation3 + $0x60] sm:$0xff] %vm799, %v2710
        %2794 = vst.msk [vmem:[#allocation3 + $0x68] sm:$0xff] %vm799, %v2712
        %2795 = vst.msk [vmem:[#allocation3 + $0x70] sm:$0xff] %vm799, %v2714
        %2796 = vst.msk [vmem:[#allocation3 + $0x78] sm:$0xff] %vm799, %v2716
        %2797 = vst.msk [vmem:[#allocation3 + $0x80] sm:$0xff] %vm799, %v2718
        %2798 = vst.msk [vmem:[#allocation3 + $0x88] sm:$0xff] %vm799, %v2720
        %2799 = vst.msk [vmem:[#allocation3 + $0x90] sm:$0xff] %vm799, %v2722
        %2800 = vst.msk [vmem:[#allocation3 + $0x98] sm:$0xff] %vm799, %v2724
        %2801 = vst.msk [vmem:[#allocation3 + $0xa0] sm:$0xff] %vm799, %v2726
        %2802 = vst.msk [vmem:[#allocation3 + $0xa8] sm:$0xff] %vm799, %v2728
        %2803 = vst.msk [vmem:[#allocation3 + $0xb0] sm:$0xff] %vm799, %v2730
        %2804 = vst.msk [vmem:[#allocation3 + $0xb8] sm:$0xff] %vm799, %v2732
        %2805 = vst.msk [vmem:[#allocation3 + $0xc0] sm:$0xff] %vm799, %v2734
        %2806 = vst.msk [vmem:[#allocation3 + $0xc8] sm:$0xff] %vm799, %v2736
        %2807 = vst.msk [vmem:[#allocation3 + $0xd0] sm:$0xff] %vm799, %v2738
        %2808 = vst.msk [vmem:[#allocation3 + $0xd8] sm:$0xff] %vm799, %v2740
        %2809 = vst.msk [vmem:[#allocation3 + $0xe0] sm:$0xff] %vm799, %v2742
        %2810 = vst.msk [vmem:[#allocation3 + $0xe8] sm:$0xff] %vm799, %v2744
        %2811 = vst.msk [vmem:[#allocation3 + $0xf0] sm:$0xff] %vm799, %v2746
        %2812 = vst.msk [vmem:[#allocation3 + $0xf8] sm:$0xff] %vm799, %v2748
        %2815 = vrot.lane.b32.xlu0 %v2266, 12
        %v2816 = vpop.permute.xlu0 %2815
        %2817 = vrot.lane.b32.xlu0 %v2267, 12
        %v2818 = vpop.permute.xlu0 %2817
        %2819 = vrot.lane.b32.xlu0 %v2269, 12
        %v2820 = vpop.permute.xlu0 %2819
        %2821 = vrot.lane.b32.xlu0 %v2270, 12
        %v2822 = vpop.permute.xlu0 %2821
        %2823 = vrot.lane.b32.xlu0 %v2272, 12
        %v2824 = vpop.permute.xlu0 %2823
        %2825 = vrot.lane.b32.xlu0 %v2273, 12
        %v2826 = vpop.permute.xlu0 %2825
        %2827 = vrot.lane.b32.xlu0 %v2275, 12
        %v2828 = vpop.permute.xlu0 %2827
        %2829 = vrot.lane.b32.xlu0 %v2276, 12
        %v2830 = vpop.permute.xlu0 %2829
        %2831 = vrot.lane.b32.xlu0 %v2278, 12
        %v2832 = vpop.permute.xlu0 %2831
        %2833 = vrot.lane.b32.xlu0 %v2279, 12
        %v2834 = vpop.permute.xlu0 %2833
        %2835 = vrot.lane.b32.xlu0 %v2281, 12
        %v2836 = vpop.permute.xlu0 %2835
        %2837 = vrot.lane.b32.xlu0 %v2282, 12
        %v2838 = vpop.permute.xlu0 %2837
        %2839 = vrot.lane.b32.xlu0 %v2284, 12
        %v2840 = vpop.permute.xlu0 %2839
        %2841 = vrot.lane.b32.xlu0 %v2285, 12
        %v2842 = vpop.permute.xlu0 %2841
        %2843 = vrot.lane.b32.xlu0 %v2287, 12
        %v2844 = vpop.permute.xlu0 %2843
        %2845 = vrot.lane.b32.xlu0 %v2288, 12
        %v2846 = vpop.permute.xlu0 %2845
        %2847 = vrot.lane.b32.xlu0 %v2290, 12
        %v2848 = vpop.permute.xlu0 %2847
        %2849 = vrot.lane.b32.xlu0 %v2291, 12
        %v2850 = vpop.permute.xlu0 %2849
        %2851 = vrot.lane.b32.xlu0 %v2293, 12
        %v2852 = vpop.permute.xlu0 %2851
        %2853 = vrot.lane.b32.xlu0 %v2294, 12
        %v2854 = vpop.permute.xlu0 %2853
        %2855 = vrot.lane.b32.xlu0 %v2296, 12
        %v2856 = vpop.permute.xlu0 %2855
        %2857 = vrot.lane.b32.xlu0 %v2297, 12
        %v2858 = vpop.permute.xlu0 %2857
        %2859 = vrot.lane.b32.xlu0 %v2299, 12
        %v2860 = vpop.permute.xlu0 %2859
        %2861 = vrot.lane.b32.xlu0 %v2300, 12
        %v2862 = vpop.permute.xlu0 %2861
        %2863 = vrot.lane.b32.xlu0 %v2302, 12
        %v2864 = vpop.permute.xlu0 %2863
        %2865 = vrot.lane.b32.xlu0 %v2303, 12
        %v2866 = vpop.permute.xlu0 %2865
        %2867 = vrot.lane.b32.xlu0 %v2305, 12
        %v2868 = vpop.permute.xlu0 %2867
        %2869 = vrot.lane.b32.xlu0 %v2306, 12
        %v2870 = vpop.permute.xlu0 %2869
        %2871 = vrot.lane.b32.xlu0 %v2308, 12
        %v2872 = vpop.permute.xlu0 %2871
        %2873 = vrot.lane.b32.xlu0 %v2309, 12
        %v2874 = vpop.permute.xlu0 %2873
        %2875 = vrot.lane.b32.xlu0 %v2311, 12
        %v2876 = vpop.permute.xlu0 %2875
        %2877 = vrot.lane.b32.xlu0 %v2312, 12
        %v2878 = vpop.permute.xlu0 %2877
        %2911 = vst.msk [vmem:[#allocation3] sm:$0xff] %vm930, %v2816
        %2912 = vst.msk [vmem:[#allocation3 + $0x8] sm:$0xff] %vm930, %v2818
        %2913 = vst.msk [vmem:[#allocation3 + $0x10] sm:$0xff] %vm930, %v2820
        %2914 = vst.msk [vmem:[#allocation3 + $0x18] sm:$0xff] %vm930, %v2822
        %2915 = vst.msk [vmem:[#allocation3 + $0x20] sm:$0xff] %vm930, %v2824
        %2916 = vst.msk [vmem:[#allocation3 + $0x28] sm:$0xff] %vm930, %v2826
        %2917 = vst.msk [vmem:[#allocation3 + $0x30] sm:$0xff] %vm930, %v2828
        %2918 = vst.msk [vmem:[#allocation3 + $0x38] sm:$0xff] %vm930, %v2830
        %2919 = vst.msk [vmem:[#allocation3 + $0x40] sm:$0xff] %vm930, %v2832
        %2920 = vst.msk [vmem:[#allocation3 + $0x48] sm:$0xff] %vm930, %v2834
        %2921 = vst.msk [vmem:[#allocation3 + $0x50] sm:$0xff] %vm930, %v2836
        %2922 = vst.msk [vmem:[#allocation3 + $0x58] sm:$0xff] %vm930, %v2838
        %2923 = vst.msk [vmem:[#allocation3 + $0x60] sm:$0xff] %vm930, %v2840
        %2924 = vst.msk [vmem:[#allocation3 + $0x68] sm:$0xff] %vm930, %v2842
        %2925 = vst.msk [vmem:[#allocation3 + $0x70] sm:$0xff] %vm930, %v2844
        %2926 = vst.msk [vmem:[#allocation3 + $0x78] sm:$0xff] %vm930, %v2846
        %2927 = vst.msk [vmem:[#allocation3 + $0x80] sm:$0xff] %vm930, %v2848
        %2928 = vst.msk [vmem:[#allocation3 + $0x88] sm:$0xff] %vm930, %v2850
        %2929 = vst.msk [vmem:[#allocation3 + $0x90] sm:$0xff] %vm930, %v2852
        %2930 = vst.msk [vmem:[#allocation3 + $0x98] sm:$0xff] %vm930, %v2854
        %2931 = vst.msk [vmem:[#allocation3 + $0xa0] sm:$0xff] %vm930, %v2856
        %2932 = vst.msk [vmem:[#allocation3 + $0xa8] sm:$0xff] %vm930, %v2858
        %2933 = vst.msk [vmem:[#allocation3 + $0xb0] sm:$0xff] %vm930, %v2860
        %2934 = vst.msk [vmem:[#allocation3 + $0xb8] sm:$0xff] %vm930, %v2862
        %2935 = vst.msk [vmem:[#allocation3 + $0xc0] sm:$0xff] %vm930, %v2864
        %2936 = vst.msk [vmem:[#allocation3 + $0xc8] sm:$0xff] %vm930, %v2866
        %2937 = vst.msk [vmem:[#allocation3 + $0xd0] sm:$0xff] %vm930, %v2868
        %2938 = vst.msk [vmem:[#allocation3 + $0xd8] sm:$0xff] %vm930, %v2870
        %2939 = vst.msk [vmem:[#allocation3 + $0xe0] sm:$0xff] %vm930, %v2872
        %2940 = vst.msk [vmem:[#allocation3 + $0xe8] sm:$0xff] %vm930, %v2874
        %2941 = vst.msk [vmem:[#allocation3 + $0xf0] sm:$0xff] %vm930, %v2876
        %2942 = vst.msk [vmem:[#allocation3 + $0xf8] sm:$0xff] %vm930, %v2878
        %v2944 = vrot.slane %v2311, 1
        %v2945 = vrot.slane %v2312, 1
        %v2946 = vsel %vm412, %v2944, %v2945
        %v2947 = vrot.slane %v2313, 1
        %v2948 = vsel %vm412, %v2945, %v2947
        %2949 = vrot.lane.b32.xlu0 %v2404, 16
        %v2950 = vpop.permute.xlu0 %2949
        %2951 = vrot.lane.b32.xlu0 %v2406, 16
        %v2952 = vpop.permute.xlu0 %2951
        %2953 = vrot.lane.b32.xlu0 %v2409, 16
        %v2954 = vpop.permute.xlu0 %2953
        %2955 = vrot.lane.b32.xlu0 %v2411, 16
        %v2956 = vpop.permute.xlu0 %2955
        %2957 = vrot.lane.b32.xlu0 %v2414, 16
        %v2958 = vpop.permute.xlu0 %2957
        %2959 = vrot.lane.b32.xlu0 %v2416, 16
        %v2960 = vpop.permute.xlu0 %2959
        %2961 = vrot.lane.b32.xlu0 %v2419, 16
        %v2962 = vpop.permute.xlu0 %2961
        %2963 = vrot.lane.b32.xlu0 %v2421, 16
        %v2964 = vpop.permute.xlu0 %2963
        %2965 = vrot.lane.b32.xlu0 %v2424, 16
        %v2966 = vpop.permute.xlu0 %2965
        %2967 = vrot.lane.b32.xlu0 %v2426, 16
        %v2968 = vpop.permute.xlu0 %2967
        %2969 = vrot.lane.b32.xlu0 %v2429, 16
        %v2970 = vpop.permute.xlu0 %2969
        %2971 = vrot.lane.b32.xlu0 %v2431, 16
        %v2972 = vpop.permute.xlu0 %2971
        %2973 = vrot.lane.b32.xlu0 %v2434, 16
        %v2974 = vpop.permute.xlu0 %2973
        %2975 = vrot.lane.b32.xlu0 %v2436, 16
        %v2976 = vpop.permute.xlu0 %2975
        %2977 = vrot.lane.b32.xlu0 %v2439, 16
        %v2978 = vpop.permute.xlu0 %2977
        %2979 = vrot.lane.b32.xlu0 %v2441, 16
        %v2980 = vpop.permute.xlu0 %2979
        %2981 = vrot.lane.b32.xlu0 %v2444, 16
        %v2982 = vpop.permute.xlu0 %2981
        %2983 = vrot.lane.b32.xlu0 %v2446, 16
        %v2984 = vpop.permute.xlu0 %2983
        %2985 = vrot.lane.b32.xlu0 %v2449, 16
        %v2986 = vpop.permute.xlu0 %2985
        %2987 = vrot.lane.b32.xlu0 %v2451, 16
        %v2988 = vpop.permute.xlu0 %2987
        %2989 = vrot.lane.b32.xlu0 %v2454, 16
        %v2990 = vpop.permute.xlu0 %2989
        %2991 = vrot.lane.b32.xlu0 %v2456, 16
        %v2992 = vpop.permute.xlu0 %2991
        %2993 = vrot.lane.b32.xlu0 %v2459, 16
        %v2994 = vpop.permute.xlu0 %2993
        %2995 = vrot.lane.b32.xlu0 %v2461, 16
        %v2996 = vpop.permute.xlu0 %2995
        %2997 = vrot.lane.b32.xlu0 %v2464, 16
        %v2998 = vpop.permute.xlu0 %2997
        %2999 = vrot.lane.b32.xlu0 %v2466, 16
        %v3000 = vpop.permute.xlu0 %2999
        %3001 = vrot.lane.b32.xlu0 %v2469, 16
        %v3002 = vpop.permute.xlu0 %3001
        %3003 = vrot.lane.b32.xlu0 %v2471, 16
        %v3004 = vpop.permute.xlu0 %3003
        %3005 = vrot.lane.b32.xlu0 %v2474, 16
        %v3006 = vpop.permute.xlu0 %3005
        %3007 = vrot.lane.b32.xlu0 %v2476, 16
        %v3008 = vpop.permute.xlu0 %3007
        %3009 = vrot.lane.b32.xlu0 %v2946, 16
        %v3010 = vpop.permute.xlu0 %3009
        %3011 = vrot.lane.b32.xlu0 %v2948, 16
        %v3012 = vpop.permute.xlu0 %3011
        %3045 = vst.msk [vmem:[#allocation3] sm:$0xff] %vm1065, %v2950
        %3046 = vst.msk [vmem:[#allocation3 + $0x8] sm:$0xff] %vm1065, %v2952
        %3047 = vst.msk [vmem:[#allocation3 + $0x10] sm:$0xff] %vm1065, %v2954
        %3048 = vst.msk [vmem:[#allocation3 + $0x18] sm:$0xff] %vm1065, %v2956
        %3049 = vst.msk [vmem:[#allocation3 + $0x20] sm:$0xff] %vm1065, %v2958
        %3050 = vst.msk [vmem:[#allocation3 + $0x28] sm:$0xff] %vm1065, %v2960
        %3051 = vst.msk [vmem:[#allocation3 + $0x30] sm:$0xff] %vm1065, %v2962
        %3052 = vst.msk [vmem:[#allocation3 + $0x38] sm:$0xff] %vm1065, %v2964
        %3053 = vst.msk [vmem:[#allocation3 + $0x40] sm:$0xff] %vm1065, %v2966
        %3054 = vst.msk [vmem:[#allocation3 + $0x48] sm:$0xff] %vm1065, %v2968
        %3055 = vst.msk [vmem:[#allocation3 + $0x50] sm:$0xff] %vm1065, %v2970
        %3056 = vst.msk [vmem:[#allocation3 + $0x58] sm:$0xff] %vm1065, %v2972
        %3057 = vst.msk [vmem:[#allocation3 + $0x60] sm:$0xff] %vm1065, %v2974
        %3058 = vst.msk [vmem:[#allocation3 + $0x68] sm:$0xff] %vm1065, %v2976
        %3059 = vst.msk [vmem:[#allocation3 + $0x70] sm:$0xff] %vm1065, %v2978
        %3060 = vst.msk [vmem:[#allocation3 + $0x78] sm:$0xff] %vm1065, %v2980
        %3061 = vst.msk [vmem:[#allocation3 + $0x80] sm:$0xff] %vm1065, %v2982
        %3062 = vst.msk [vmem:[#allocation3 + $0x88] sm:$0xff] %vm1065, %v2984
        %3063 = vst.msk [vmem:[#allocation3 + $0x90] sm:$0xff] %vm1065, %v2986
        %3064 = vst.msk [vmem:[#allocation3 + $0x98] sm:$0xff] %vm1065, %v2988
        %3065 = vst.msk [vmem:[#allocation3 + $0xa0] sm:$0xff] %vm1065, %v2990
        %3066 = vst.msk [vmem:[#allocation3 + $0xa8] sm:$0xff] %vm1065, %v2992
        %3067 = vst.msk [vmem:[#allocation3 + $0xb0] sm:$0xff] %vm1065, %v2994
        %3068 = vst.msk [vmem:[#allocation3 + $0xb8] sm:$0xff] %vm1065, %v2996
        %3069 = vst.msk [vmem:[#allocation3 + $0xc0] sm:$0xff] %vm1065, %v2998
        %3070 = vst.msk [vmem:[#allocation3 + $0xc8] sm:$0xff] %vm1065, %v3000
        %3071 = vst.msk [vmem:[#allocation3 + $0xd0] sm:$0xff] %vm1065, %v3002
        %3072 = vst.msk [vmem:[#allocation3 + $0xd8] sm:$0xff] %vm1065, %v3004
        %3073 = vst.msk [vmem:[#allocation3 + $0xe0] sm:$0xff] %vm1065, %v3006
        %3074 = vst.msk [vmem:[#allocation3 + $0xe8] sm:$0xff] %vm1065, %v3008
        %3075 = vst.msk [vmem:[#allocation3 + $0xf0] sm:$0xff] %vm1065, %v3010
        %3076 = vst.msk [vmem:[#allocation3 + $0xf8] sm:$0xff] %vm1065, %v3012
        %v3077 = vrot.slane %v2311, 2
        %v3078 = vrot.slane %v2312, 2
        %v3079 = vsel %vm622, %v3077, %v3078
        %v3080 = vrot.slane %v2313, 2
        %v3081 = vsel %vm622, %v3078, %v3080
        %3082 = vrot.lane.b32.xlu0 %v2612, 20
        %v3083 = vpop.permute.xlu0 %3082
        %3084 = vrot.lane.b32.xlu0 %v2614, 20
        %v3085 = vpop.permute.xlu0 %3084
        %3086 = vrot.lane.b32.xlu0 %v2617, 20
        %v3087 = vpop.permute.xlu0 %3086
        %3088 = vrot.lane.b32.xlu0 %v2619, 20
        %v3089 = vpop.permute.xlu0 %3088
        %3090 = vrot.lane.b32.xlu0 %v2622, 20
        %v3091 = vpop.permute.xlu0 %3090
        %3092 = vrot.lane.b32.xlu0 %v2624, 20
        %v3093 = vpop.permute.xlu0 %3092
        %3094 = vrot.lane.b32.xlu0 %v2627, 20
        %v3095 = vpop.permute.xlu0 %3094
        %3096 = vrot.lane.b32.xlu0 %v2629, 20
        %v3097 = vpop.permute.xlu0 %3096
        %3098 = vrot.lane.b32.xlu0 %v2632, 20
        %v3099 = vpop.permute.xlu0 %3098
        %3100 = vrot.lane.b32.xlu0 %v2634, 20
        %v3101 = vpop.permute.xlu0 %3100
        %3102 = vrot.lane.b32.xlu0 %v2637, 20
        %v3103 = vpop.permute.xlu0 %3102
        %3104 = vrot.lane.b32.xlu0 %v2639, 20
        %v3105 = vpop.permute.xlu0 %3104
        %3106 = vrot.lane.b32.xlu0 %v2642, 20
        %v3107 = vpop.permute.xlu0 %3106
        %3108 = vrot.lane.b32.xlu0 %v2644, 20
        %v3109 = vpop.permute.xlu0 %3108
        %3110 = vrot.lane.b32.xlu0 %v2647, 20
        %v3111 = vpop.permute.xlu0 %3110
        %3112 = vrot.lane.b32.xlu0 %v2649, 20
        %v3113 = vpop.permute.xlu0 %3112
        %3114 = vrot.lane.b32.xlu0 %v2652, 20
        %v3115 = vpop.permute.xlu0 %3114
        %3116 = vrot.lane.b32.xlu0 %v2654, 20
        %v3117 = vpop.permute.xlu0 %3116
        %3118 = vrot.lane.b32.xlu0 %v2657, 20
        %v3119 = vpop.permute.xlu0 %3118
        %3120 = vrot.lane.b32.xlu0 %v2659, 20
        %v3121 = vpop.permute.xlu0 %3120
        %3122 = vrot.lane.b32.xlu0 %v2662, 20
        %v3123 = vpop.permute.xlu0 %3122
        %3124 = vrot.lane.b32.xlu0 %v2664, 20
        %v3125 = vpop.permute.xlu0 %3124
        %3126 = vrot.lane.b32.xlu0 %v2667, 20
        %v3127 = vpop.permute.xlu0 %3126
        %3128 = vrot.lane.b32.xlu0 %v2669, 20
        %v3129 = vpop.permute.xlu0 %3128
        %3130 = vrot.lane.b32.xlu0 %v2672, 20
        %v3131 = vpop.permute.xlu0 %3130
        %3132 = vrot.lane.b32.xlu0 %v2674, 20
        %v3133 = vpop.permute.xlu0 %3132
        %3134 = vrot.lane.b32.xlu0 %v2677, 20
        %v3135 = vpop.permute.xlu0 %3134
        %3136 = vrot.lane.b32.xlu0 %v2679, 20
        %v3137 = vpop.permute.xlu0 %3136
        %3138 = vrot.lane.b32.xlu0 %v2682, 20
        %v3139 = vpop.permute.xlu0 %3138
        %3140 = vrot.lane.b32.xlu0 %v2684, 20
        %v3141 = vpop.permute.xlu0 %3140
        %3142 = vrot.lane.b32.xlu0 %v3079, 20
        %v3143 = vpop.permute.xlu0 %3142
        %3144 = vrot.lane.b32.xlu0 %v3081, 20
        %v3145 = vpop.permute.xlu0 %3144
        %3178 = vst.msk [vmem:[#allocation3] sm:$0xff] %vm1199, %v3083
        %3179 = vst.msk [vmem:[#allocation3 + $0x8] sm:$0xff] %vm1199, %v3085
        %3180 = vst.msk [vmem:[#allocation3 + $0x10] sm:$0xff] %vm1199, %v3087
        %3181 = vst.msk [vmem:[#allocation3 + $0x18] sm:$0xff] %vm1199, %v3089
        %3182 = vst.msk [vmem:[#allocation3 + $0x20] sm:$0xff] %vm1199, %v3091
        %3183 = vst.msk [vmem:[#allocation3 + $0x28] sm:$0xff] %vm1199, %v3093
        %3184 = vst.msk [vmem:[#allocation3 + $0x30] sm:$0xff] %vm1199, %v3095
        %3185 = vst.msk [vmem:[#allocation3 + $0x38] sm:$0xff] %vm1199, %v3097
        %3186 = vst.msk [vmem:[#allocation3 + $0x40] sm:$0xff] %vm1199, %v3099
        %3187 = vst.msk [vmem:[#allocation3 + $0x48] sm:$0xff] %vm1199, %v3101
        %3188 = vst.msk [vmem:[#allocation3 + $0x50] sm:$0xff] %vm1199, %v3103
        %3189 = vst.msk [vmem:[#allocation3 + $0x58] sm:$0xff] %vm1199, %v3105
        %3190 = vst.msk [vmem:[#allocation3 + $0x60] sm:$0xff] %vm1199, %v3107
        %3191 = vst.msk [vmem:[#allocation3 + $0x68] sm:$0xff] %vm1199, %v3109
        %3192 = vst.msk [vmem:[#allocation3 + $0x70] sm:$0xff] %vm1199, %v3111
        %3193 = vst.msk [vmem:[#allocation3 + $0x78] sm:$0xff] %vm1199, %v3113
        %3194 = vst.msk [vmem:[#allocation3 + $0x80] sm:$0xff] %vm1199, %v3115
        %3195 = vst.msk [vmem:[#allocation3 + $0x88] sm:$0xff] %vm1199, %v3117
        %3196 = vst.msk [vmem:[#allocation3 + $0x90] sm:$0xff] %vm1199, %v3119
        %3197 = vst.msk [vmem:[#allocation3 + $0x98] sm:$0xff] %vm1199, %v3121
        %3198 = vst.msk [vmem:[#allocation3 + $0xa0] sm:$0xff] %vm1199, %v3123
        %3199 = vst.msk [vmem:[#allocation3 + $0xa8] sm:$0xff] %vm1199, %v3125
        %3200 = vst.msk [vmem:[#allocation3 + $0xb0] sm:$0xff] %vm1199, %v3127
        %3201 = vst.msk [vmem:[#allocation3 + $0xb8] sm:$0xff] %vm1199, %v3129
        %3202 = vst.msk [vmem:[#allocation3 + $0xc0] sm:$0xff] %vm1199, %v3131
        %3203 = vst.msk [vmem:[#allocation3 + $0xc8] sm:$0xff] %vm1199, %v3133
        %3204 = vst.msk [vmem:[#allocation3 + $0xd0] sm:$0xff] %vm1199, %v3135
        %3205 = vst.msk [vmem:[#allocation3 + $0xd8] sm:$0xff] %vm1199, %v3137
        %3206 = vst.msk [vmem:[#allocation3 + $0xe0] sm:$0xff] %vm1199, %v3139
        %3207 = vst.msk [vmem:[#allocation3 + $0xe8] sm:$0xff] %vm1199, %v3141
        %3208 = vst.msk [vmem:[#allocation3 + $0xf0] sm:$0xff] %vm1199, %v3143
        %3209 = vst.msk [vmem:[#allocation3 + $0xf8] sm:$0xff] %vm1199, %v3145
        %3212 = vrot.lane.b32.xlu0 %v2269, 24
        %v3213 = vpop.permute.xlu0 %3212
        %3214 = vrot.lane.b32.xlu0 %v2270, 24
        %v3215 = vpop.permute.xlu0 %3214
        %3216 = vrot.lane.b32.xlu0 %v2272, 24
        %v3217 = vpop.permute.xlu0 %3216
        %3218 = vrot.lane.b32.xlu0 %v2273, 24
        %v3219 = vpop.permute.xlu0 %3218
        %3220 = vrot.lane.b32.xlu0 %v2275, 24
        %v3221 = vpop.permute.xlu0 %3220
        %3222 = vrot.lane.b32.xlu0 %v2276, 24
        %v3223 = vpop.permute.xlu0 %3222
        %3224 = vrot.lane.b32.xlu0 %v2278, 24
        %v3225 = vpop.permute.xlu0 %3224
        %3226 = vrot.lane.b32.xlu0 %v2279, 24
        %v3227 = vpop.permute.xlu0 %3226
        %3228 = vrot.lane.b32.xlu0 %v2281, 24
        %v3229 = vpop.permute.xlu0 %3228
        %3230 = vrot.lane.b32.xlu0 %v2282, 24
        %v3231 = vpop.permute.xlu0 %3230
        %3232 = vrot.lane.b32.xlu0 %v2284, 24
        %v3233 = vpop.permute.xlu0 %3232
        %3234 = vrot.lane.b32.xlu0 %v2285, 24
        %v3235 = vpop.permute.xlu0 %3234
        %3236 = vrot.lane.b32.xlu0 %v2287, 24
        %v3237 = vpop.permute.xlu0 %3236
        %3238 = vrot.lane.b32.xlu0 %v2288, 24
        %v3239 = vpop.permute.xlu0 %3238
        %3240 = vrot.lane.b32.xlu0 %v2290, 24
        %v3241 = vpop.permute.xlu0 %3240
        %3242 = vrot.lane.b32.xlu0 %v2291, 24
        %v3243 = vpop.permute.xlu0 %3242
        %3244 = vrot.lane.b32.xlu0 %v2293, 24
        %v3245 = vpop.permute.xlu0 %3244
        %3246 = vrot.lane.b32.xlu0 %v2294, 24
        %v3247 = vpop.permute.xlu0 %3246
        %3248 = vrot.lane.b32.xlu0 %v2296, 24
        %v3249 = vpop.permute.xlu0 %3248
        %3250 = vrot.lane.b32.xlu0 %v2297, 24
        %v3251 = vpop.permute.xlu0 %3250
        %3252 = vrot.lane.b32.xlu0 %v2299, 24
        %v3253 = vpop.permute.xlu0 %3252
        %3254 = vrot.lane.b32.xlu0 %v2300, 24
        %v3255 = vpop.permute.xlu0 %3254
        %3256 = vrot.lane.b32.xlu0 %v2302, 24
        %v3257 = vpop.permute.xlu0 %3256
        %3258 = vrot.lane.b32.xlu0 %v2303, 24
        %v3259 = vpop.permute.xlu0 %3258
        %3260 = vrot.lane.b32.xlu0 %v2305, 24
        %v3261 = vpop.permute.xlu0 %3260
        %3262 = vrot.lane.b32.xlu0 %v2306, 24
        %v3263 = vpop.permute.xlu0 %3262
        %3264 = vrot.lane.b32.xlu0 %v2308, 24
        %v3265 = vpop.permute.xlu0 %3264
        %3266 = vrot.lane.b32.xlu0 %v2309, 24
        %v3267 = vpop.permute.xlu0 %3266
        %3268 = vrot.lane.b32.xlu0 %v2311, 24
        %v3269 = vpop.permute.xlu0 %3268
        %3270 = vrot.lane.b32.xlu0 %v2312, 24
        %v3271 = vpop.permute.xlu0 %3270
        %3272 = vrot.lane.b32.xlu0 %v2314, 24
        %v3273 = vpop.permute.xlu0 %3272
        %3274 = vrot.lane.b32.xlu0 %v2315, 24
        %v3275 = vpop.permute.xlu0 %3274
        %3308 = vst.msk [vmem:[#allocation3] sm:$0xff] %vm1330, %v3213
        %3309 = vst.msk [vmem:[#allocation3 + $0x8] sm:$0xff] %vm1330, %v3215
        %3310 = vst.msk [vmem:[#allocation3 + $0x10] sm:$0xff] %vm1330, %v3217
        %3311 = vst.msk [vmem:[#allocation3 + $0x18] sm:$0xff] %vm1330, %v3219
        %3312 = vst.msk [vmem:[#allocation3 + $0x20] sm:$0xff] %vm1330, %v3221
        %3313 = vst.msk [vmem:[#allocation3 + $0x28] sm:$0xff] %vm1330, %v3223
        %3314 = vst.msk [vmem:[#allocation3 + $0x30] sm:$0xff] %vm1330, %v3225
        %3315 = vst.msk [vmem:[#allocation3 + $0x38] sm:$0xff] %vm1330, %v3227
        %3316 = vst.msk [vmem:[#allocation3 + $0x40] sm:$0xff] %vm1330, %v3229
        %3317 = vst.msk [vmem:[#allocation3 + $0x48] sm:$0xff] %vm1330, %v3231
        %3318 = vst.msk [vmem:[#allocation3 + $0x50] sm:$0xff] %vm1330, %v3233
        %3319 = vst.msk [vmem:[#allocation3 + $0x58] sm:$0xff] %vm1330, %v3235
        %3320 = vst.msk [vmem:[#allocation3 + $0x60] sm:$0xff] %vm1330, %v3237
        %3321 = vst.msk [vmem:[#allocation3 + $0x68] sm:$0xff] %vm1330, %v3239
        %3322 = vst.msk [vmem:[#allocation3 + $0x70] sm:$0xff] %vm1330, %v3241
        %3323 = vst.msk [vmem:[#allocation3 + $0x78] sm:$0xff] %vm1330, %v3243
        %3324 = vst.msk [vmem:[#allocation3 + $0x80] sm:$0xff] %vm1330, %v3245
        %3325 = vst.msk [vmem:[#allocation3 + $0x88] sm:$0xff] %vm1330, %v3247
        %3326 = vst.msk [vmem:[#allocation3 + $0x90] sm:$0xff] %vm1330, %v3249
        %3327 = vst.msk [vmem:[#allocation3 + $0x98] sm:$0xff] %vm1330, %v3251
        %3328 = vst.msk [vmem:[#allocation3 + $0xa0] sm:$0xff] %vm1330, %v3253
        %3329 = vst.msk [vmem:[#allocation3 + $0xa8] sm:$0xff] %vm1330, %v3255
        %3330 = vst.msk [vmem:[#allocation3 + $0xb0] sm:$0xff] %vm1330, %v3257
        %3331 = vst.msk [vmem:[#allocation3 + $0xb8] sm:$0xff] %vm1330, %v3259
        %3332 = vst.msk [vmem:[#allocation3 + $0xc0] sm:$0xff] %vm1330, %v3261
        %3333 = vst.msk [vmem:[#allocation3 + $0xc8] sm:$0xff] %vm1330, %v3263
        %3334 = vst.msk [vmem:[#allocation3 + $0xd0] sm:$0xff] %vm1330, %v3265
        %3335 = vst.msk [vmem:[#allocation3 + $0xd8] sm:$0xff] %vm1330, %v3267
        %3336 = vst.msk [vmem:[#allocation3 + $0xe0] sm:$0xff] %vm1330, %v3269
        %3337 = vst.msk [vmem:[#allocation3 + $0xe8] sm:$0xff] %vm1330, %v3271
        %3338 = vst.msk [vmem:[#allocation3 + $0xf0] sm:$0xff] %vm1330, %v3273
        %3339 = vst.msk [vmem:[#allocation3 + $0xf8] sm:$0xff] %vm1330, %v3275
        %v3341 = vrot.slane %v2314, 1
        %v3342 = vrot.slane %v2315, 1
        %v3343 = vsel %vm412, %v3341, %v3342
        %v3344 = vrot.slane %v2316, 1
        %v3345 = vsel %vm412, %v3342, %v3344
        %3346 = vrot.lane.b32.xlu0 %v2409, 28
        %v3347 = vpop.permute.xlu0 %3346
        %3348 = vrot.lane.b32.xlu0 %v2411, 28
        %v3349 = vpop.permute.xlu0 %3348
        %3350 = vrot.lane.b32.xlu0 %v2414, 28
        %v3351 = vpop.permute.xlu0 %3350
        %3352 = vrot.lane.b32.xlu0 %v2416, 28
        %v3353 = vpop.permute.xlu0 %3352
        %3354 = vrot.lane.b32.xlu0 %v2419, 28
        %v3355 = vpop.permute.xlu0 %3354
        %3356 = vrot.lane.b32.xlu0 %v2421, 28
        %v3357 = vpop.permute.xlu0 %3356
        %3358 = vrot.lane.b32.xlu0 %v2424, 28
        %v3359 = vpop.permute.xlu0 %3358
        %3360 = vrot.lane.b32.xlu0 %v2426, 28
        %v3361 = vpop.permute.xlu0 %3360
        %3362 = vrot.lane.b32.xlu0 %v2429, 28
        %v3363 = vpop.permute.xlu0 %3362
        %3364 = vrot.lane.b32.xlu0 %v2431, 28
        %v3365 = vpop.permute.xlu0 %3364
        %3366 = vrot.lane.b32.xlu0 %v2434, 28
        %v3367 = vpop.permute.xlu0 %3366
        %3368 = vrot.lane.b32.xlu0 %v2436, 28
        %v3369 = vpop.permute.xlu0 %3368
        %3370 = vrot.lane.b32.xlu0 %v2439, 28
        %v3371 = vpop.permute.xlu0 %3370
        %3372 = vrot.lane.b32.xlu0 %v2441, 28
        %v3373 = vpop.permute.xlu0 %3372
        %3374 = vrot.lane.b32.xlu0 %v2444, 28
        %v3375 = vpop.permute.xlu0 %3374
        %3376 = vrot.lane.b32.xlu0 %v2446, 28
        %v3377 = vpop.permute.xlu0 %3376
        %3378 = vrot.lane.b32.xlu0 %v2449, 28
        %v3379 = vpop.permute.xlu0 %3378
        %3380 = vrot.lane.b32.xlu0 %v2451, 28
        %v3381 = vpop.permute.xlu0 %3380
        %3382 = vrot.lane.b32.xlu0 %v2454, 28
        %v3383 = vpop.permute.xlu0 %3382
        %3384 = vrot.lane.b32.xlu0 %v2456, 28
        %v3385 = vpop.permute.xlu0 %3384
        %3386 = vrot.lane.b32.xlu0 %v2459, 28
        %v3387 = vpop.permute.xlu0 %3386
        %3388 = vrot.lane.b32.xlu0 %v2461, 28
        %v3389 = vpop.permute.xlu0 %3388
        %3390 = vrot.lane.b32.xlu0 %v2464, 28
        %v3391 = vpop.permute.xlu0 %3390
        %3392 = vrot.lane.b32.xlu0 %v2466, 28
        %v3393 = vpop.permute.xlu0 %3392
        %3394 = vrot.lane.b32.xlu0 %v2469, 28
        %v3395 = vpop.permute.xlu0 %3394
        %3396 = vrot.lane.b32.xlu0 %v2471, 28
        %v3397 = vpop.permute.xlu0 %3396
        %3398 = vrot.lane.b32.xlu0 %v2474, 28
        %v3399 = vpop.permute.xlu0 %3398
        %3400 = vrot.lane.b32.xlu0 %v2476, 28
        %v3401 = vpop.permute.xlu0 %3400
        %3402 = vrot.lane.b32.xlu0 %v2946, 28
        %v3403 = vpop.permute.xlu0 %3402
        %3404 = vrot.lane.b32.xlu0 %v2948, 28
        %v3405 = vpop.permute.xlu0 %3404
        %3406 = vrot.lane.b32.xlu0 %v3343, 28
        %v3407 = vpop.permute.xlu0 %3406
        %3408 = vrot.lane.b32.xlu0 %v3345, 28
        %v3409 = vpop.permute.xlu0 %3408
        %3442 = vst.msk [vmem:[#allocation3] sm:$0xff] %vm1465, %v3347
        %3443 = vst.msk [vmem:[#allocation3 + $0x8] sm:$0xff] %vm1465, %v3349
        %3444 = vst.msk [vmem:[#allocation3 + $0x10] sm:$0xff] %vm1465, %v3351
        %3445 = vst.msk [vmem:[#allocation3 + $0x18] sm:$0xff] %vm1465, %v3353
        %3446 = vst.msk [vmem:[#allocation3 + $0x20] sm:$0xff] %vm1465, %v3355
        %3447 = vst.msk [vmem:[#allocation3 + $0x28] sm:$0xff] %vm1465, %v3357
        %3448 = vst.msk [vmem:[#allocation3 + $0x30] sm:$0xff] %vm1465, %v3359
        %3449 = vst.msk [vmem:[#allocation3 + $0x38] sm:$0xff] %vm1465, %v3361
        %3450 = vst.msk [vmem:[#allocation3 + $0x40] sm:$0xff] %vm1465, %v3363
        %3451 = vst.msk [vmem:[#allocation3 + $0x48] sm:$0xff] %vm1465, %v3365
        %3452 = vst.msk [vmem:[#allocation3 + $0x50] sm:$0xff] %vm1465, %v3367
        %3453 = vst.msk [vmem:[#allocation3 + $0x58] sm:$0xff] %vm1465, %v3369
        %3454 = vst.msk [vmem:[#allocation3 + $0x60] sm:$0xff] %vm1465, %v3371
        %3455 = vst.msk [vmem:[#allocation3 + $0x68] sm:$0xff] %vm1465, %v3373
        %3456 = vst.msk [vmem:[#allocation3 + $0x70] sm:$0xff] %vm1465, %v3375
        %3457 = vst.msk [vmem:[#allocation3 + $0x78] sm:$0xff] %vm1465, %v3377
        %3458 = vst.msk [vmem:[#allocation3 + $0x80] sm:$0xff] %vm1465, %v3379
        %3459 = vst.msk [vmem:[#allocation3 + $0x88] sm:$0xff] %vm1465, %v3381
        %3460 = vst.msk [vmem:[#allocation3 + $0x90] sm:$0xff] %vm1465, %v3383
        %3461 = vst.msk [vmem:[#allocation3 + $0x98] sm:$0xff] %vm1465, %v3385
        %3462 = vst.msk [vmem:[#allocation3 + $0xa0] sm:$0xff] %vm1465, %v3387
        %3463 = vst.msk [vmem:[#allocation3 + $0xa8] sm:$0xff] %vm1465, %v3389
        %3464 = vst.msk [vmem:[#allocation3 + $0xb0] sm:$0xff] %vm1465, %v3391
        %3465 = vst.msk [vmem:[#allocation3 + $0xb8] sm:$0xff] %vm1465, %v3393
        %3466 = vst.msk [vmem:[#allocation3 + $0xc0] sm:$0xff] %vm1465, %v3395
        %3467 = vst.msk [vmem:[#allocation3 + $0xc8] sm:$0xff] %vm1465, %v3397
        %3468 = vst.msk [vmem:[#allocation3 + $0xd0] sm:$0xff] %vm1465, %v3399
        %3469 = vst.msk [vmem:[#allocation3 + $0xd8] sm:$0xff] %vm1465, %v3401
        %3470 = vst.msk [vmem:[#allocation3 + $0xe0] sm:$0xff] %vm1465, %v3403
        %3471 = vst.msk [vmem:[#allocation3 + $0xe8] sm:$0xff] %vm1465, %v3405
        %3472 = vst.msk [vmem:[#allocation3 + $0xf0] sm:$0xff] %vm1465, %v3407
        %3473 = vst.msk [vmem:[#allocation3 + $0xf8] sm:$0xff] %vm1465, %v3409
        %v3474 = vrot.slane %v2314, 2
        %v3475 = vrot.slane %v2315, 2
        %v3476 = vsel %vm622, %v3474, %v3475
        %v3477 = vrot.slane %v2316, 2
        %v3478 = vsel %vm622, %v3475, %v3477
        %3479 = vrot.lane.b32.xlu0 %v2617, 32
        %v3480 = vpop.permute.xlu0 %3479
        %3481 = vrot.lane.b32.xlu0 %v2619, 32
        %v3482 = vpop.permute.xlu0 %3481
        %3483 = vrot.lane.b32.xlu0 %v2622, 32
        %v3484 = vpop.permute.xlu0 %3483
        %3485 = vrot.lane.b32.xlu0 %v2624, 32
        %v3486 = vpop.permute.xlu0 %3485
        %3487 = vrot.lane.b32.xlu0 %v2627, 32
        %v3488 = vpop.permute.xlu0 %3487
        %3489 = vrot.lane.b32.xlu0 %v2629, 32
        %v3490 = vpop.permute.xlu0 %3489
        %3491 = vrot.lane.b32.xlu0 %v2632, 32
        %v3492 = vpop.permute.xlu0 %3491
        %3493 = vrot.lane.b32.xlu0 %v2634, 32
        %v3494 = vpop.permute.xlu0 %3493
        %3495 = vrot.lane.b32.xlu0 %v2637, 32
        %v3496 = vpop.permute.xlu0 %3495
        %3497 = vrot.lane.b32.xlu0 %v2639, 32
        %v3498 = vpop.permute.xlu0 %3497
        %3499 = vrot.lane.b32.xlu0 %v2642, 32
        %v3500 = vpop.permute.xlu0 %3499
        %3501 = vrot.lane.b32.xlu0 %v2644, 32
        %v3502 = vpop.permute.xlu0 %3501
        %3503 = vrot.lane.b32.xlu0 %v2647, 32
        %v3504 = vpop.permute.xlu0 %3503
        %3505 = vrot.lane.b32.xlu0 %v2649, 32
        %v3506 = vpop.permute.xlu0 %3505
        %3507 = vrot.lane.b32.xlu0 %v2652, 32
        %v3508 = vpop.permute.xlu0 %3507
        %3509 = vrot.lane.b32.xlu0 %v2654, 32
        %v3510 = vpop.permute.xlu0 %3509
        %3511 = vrot.lane.b32.xlu0 %v2657, 32
        %v3512 = vpop.permute.xlu0 %3511
        %3513 = vrot.lane.b32.xlu0 %v2659, 32
        %v3514 = vpop.permute.xlu0 %3513
        %3515 = vrot.lane.b32.xlu0 %v2662, 32
        %v3516 = vpop.permute.xlu0 %3515
        %3517 = vrot.lane.b32.xlu0 %v2664, 32
        %v3518 = vpop.permute.xlu0 %3517
        %3519 = vrot.lane.b32.xlu0 %v2667, 32
        %v3520 = vpop.permute.xlu0 %3519
        %3521 = vrot.lane.b32.xlu0 %v2669, 32
        %v3522 = vpop.permute.xlu0 %3521
        %3523 = vrot.lane.b32.xlu0 %v2672, 32
        %v3524 = vpop.permute.xlu0 %3523
        %3525 = vrot.lane.b32.xlu0 %v2674, 32
        %v3526 = vpop.permute.xlu0 %3525
        %3527 = vrot.lane.b32.xlu0 %v2677, 32
        %v3528 = vpop.permute.xlu0 %3527
        %3529 = vrot.lane.b32.xlu0 %v2679, 32
        %v3530 = vpop.permute.xlu0 %3529
        %3531 = vrot.lane.b32.xlu0 %v2682, 32
        %v3532 = vpop.permute.xlu0 %3531
        %3533 = vrot.lane.b32.xlu0 %v2684, 32
        %v3534 = vpop.permute.xlu0 %3533
        %3535 = vrot.lane.b32.xlu0 %v3079, 32
        %v3536 = vpop.permute.xlu0 %3535
        %3537 = vrot.lane.b32.xlu0 %v3081, 32
        %v3538 = vpop.permute.xlu0 %3537
        %3539 = vrot.lane.b32.xlu0 %v3476, 32
        %v3540 = vpop.permute.xlu0 %3539
        %3541 = vrot.lane.b32.xlu0 %v3478, 32
        %v3542 = vpop.permute.xlu0 %3541
        %3575 = vst.msk [vmem:[#allocation3] sm:$0xff] %vm1599, %v3480
        %3576 = vst.msk [vmem:[#allocation3 + $0x8] sm:$0xff] %vm1599, %v3482
        %3577 = vst.msk [vmem:[#allocation3 + $0x10] sm:$0xff] %vm1599, %v3484
        %3578 = vst.msk [vmem:[#allocation3 + $0x18] sm:$0xff] %vm1599, %v3486
        %3579 = vst.msk [vmem:[#allocation3 + $0x20] sm:$0xff] %vm1599, %v3488
        %3580 = vst.msk [vmem:[#allocation3 + $0x28] sm:$0xff] %vm1599, %v3490
        %3581 = vst.msk [vmem:[#allocation3 + $0x30] sm:$0xff] %vm1599, %v3492
        %3582 = vst.msk [vmem:[#allocation3 + $0x38] sm:$0xff] %vm1599, %v3494
        %3583 = vst.msk [vmem:[#allocation3 + $0x40] sm:$0xff] %vm1599, %v3496
        %3584 = vst.msk [vmem:[#allocation3 + $0x48] sm:$0xff] %vm1599, %v3498
        %3585 = vst.msk [vmem:[#allocation3 + $0x50] sm:$0xff] %vm1599, %v3500
        %3586 = vst.msk [vmem:[#allocation3 + $0x58] sm:$0xff] %vm1599, %v3502
        %3587 = vst.msk [vmem:[#allocation3 + $0x60] sm:$0xff] %vm1599, %v3504
        %3588 = vst.msk [vmem:[#allocation3 + $0x68] sm:$0xff] %vm1599, %v3506
        %3589 = vst.msk [vmem:[#allocation3 + $0x70] sm:$0xff] %vm1599, %v3508
        %3590 = vst.msk [vmem:[#allocation3 + $0x78] sm:$0xff] %vm1599, %v3510
        %3591 = vst.msk [vmem:[#allocation3 + $0x80] sm:$0xff] %vm1599, %v3512
        %3592 = vst.msk [vmem:[#allocation3 + $0x88] sm:$0xff] %vm1599, %v3514
        %3593 = vst.msk [vmem:[#allocation3 + $0x90] sm:$0xff] %vm1599, %v3516
        %3594 = vst.msk [vmem:[#allocation3 + $0x98] sm:$0xff] %vm1599, %v3518
        %3595 = vst.msk [vmem:[#allocation3 + $0xa0] sm:$0xff] %vm1599, %v3520
        %3596 = vst.msk [vmem:[#allocation3 + $0xa8] sm:$0xff] %vm1599, %v3522
        %3597 = vst.msk [vmem:[#allocation3 + $0xb0] sm:$0xff] %vm1599, %v3524
        %3598 = vst.msk [vmem:[#allocation3 + $0xb8] sm:$0xff] %vm1599, %v3526
        %3599 = vst.msk [vmem:[#allocation3 + $0xc0] sm:$0xff] %vm1599, %v3528
        %3600 = vst.msk [vmem:[#allocation3 + $0xc8] sm:$0xff] %vm1599, %v3530
        %3601 = vst.msk [vmem:[#allocation3 + $0xd0] sm:$0xff] %vm1599, %v3532
        %3602 = vst.msk [vmem:[#allocation3 + $0xd8] sm:$0xff] %vm1599, %v3534
        %3603 = vst.msk [vmem:[#allocation3 + $0xe0] sm:$0xff] %vm1599, %v3536
        %3604 = vst.msk [vmem:[#allocation3 + $0xe8] sm:$0xff] %vm1599, %v3538
        %3605 = vst.msk [vmem:[#allocation3 + $0xf0] sm:$0xff] %vm1599, %v3540
        %3606 = vst.msk [vmem:[#allocation3 + $0xf8] sm:$0xff] %vm1599, %v3542
        %v3607 = vld [vmem:[%s5] sm:$0xf]
        %v3608 = vld [vmem:[#allocation3] sm:$0xff]
        %v3609 = vld [vmem:[#allocation3 + $0x8] sm:$0xff]
        %v3610 = vld [vmem:[#allocation3 + $0x10] sm:$0xff]
        %v3611 = vld [vmem:[#allocation3 + $0x18] sm:$0xff]
        %v3612 = vld [vmem:[#allocation3 + $0x20] sm:$0xff]
        %v3613 = vld [vmem:[#allocation3 + $0x28] sm:$0xff]
        %v3614 = vld [vmem:[#allocation3 + $0x30] sm:$0xff]
        %v3615 = vld [vmem:[#allocation3 + $0x38] sm:$0xff]
        %v3616 = vld [vmem:[#allocation3 + $0x40] sm:$0xff]
        %v3617 = vld [vmem:[#allocation3 + $0x48] sm:$0xff]
        %v3618 = vld [vmem:[#allocation3 + $0x50] sm:$0xff]
        %v3619 = vld [vmem:[#allocation3 + $0x58] sm:$0xff]
        %v3620 = vld [vmem:[#allocation3 + $0x60] sm:$0xff]
        %v3621 = vld [vmem:[#allocation3 + $0x68] sm:$0xff]
        %v3622 = vld [vmem:[#allocation3 + $0x70] sm:$0xff]
        %v3623 = vld [vmem:[#allocation3 + $0x78] sm:$0xff]
        %v3624 = vld [vmem:[#allocation3 + $0x80] sm:$0xff]
        %v3625 = vld [vmem:[#allocation3 + $0x88] sm:$0xff]
        %v3626 = vld [vmem:[#allocation3 + $0x90] sm:$0xff]
        %v3627 = vld [vmem:[#allocation3 + $0x98] sm:$0xff]
        %v3628 = vld [vmem:[#allocation3 + $0xa0] sm:$0xff]
        %v3629 = vld [vmem:[#allocation3 + $0xa8] sm:$0xff]
        %v3630 = vld [vmem:[#allocation3 + $0xb0] sm:$0xff]
        %v3631 = vld [vmem:[#allocation3 + $0xb8] sm:$0xff]
        %v3632 = vld [vmem:[#allocation3 + $0xc0] sm:$0xff]
        %v3633 = vld [vmem:[#allocation3 + $0xc8] sm:$0xff]
        %v3634 = vld [vmem:[#allocation3 + $0xd0] sm:$0xff]
        %v3635 = vld [vmem:[#allocation3 + $0xd8] sm:$0xff]
        %v3636 = vld [vmem:[#allocation3 + $0xe0] sm:$0xff]
        %v3637 = vld [vmem:[#allocation3 + $0xe8] sm:$0xff]
        %v3638 = vld [vmem:[#allocation3 + $0xf0] sm:$0xff]
        %v3639 = vld [vmem:[#allocation3 + $0xf8] sm:$0xff]
        %v3640 = vld [vmem:[%s6] sm:$0xf]
        %3642 = vset.pattern.permute.xlu0 0
        %3643 = vperm.xlu0 %3642, %v3640
        %v3644 = vpop.permute.xlu0 %3643
        %v3647 = vsel %vm1676, %v3607, 0
        %v3650 = vsel %vm1676, %v3608, 0
        %v3653 = vsel %vm1676, %v3609, 0
        %v3656 = vsel %vm1676, %v3610, 0
        %v3659 = vsel %vm1676, %v3611, 0
        %v3662 = vsel %vm1676, %v3612, 0
        %v3665 = vsel %vm1676, %v3613, 0
        %v3668 = vsel %vm1676, %v3614, 0
        %v3671 = vsel %vm1676, %v3615, 0
        %v3674 = vsel %vm1676, %v3616, 0
        %v3677 = vsel %vm1676, %v3617, 0
        %v3680 = vsel %vm1676, %v3618, 0
        %v3683 = vsel %vm1676, %v3619, 0
        %v3686 = vsel %vm1676, %v3620, 0
        %v3689 = vsel %vm1676, %v3621, 0
        %v3692 = vsel %vm1676, %v3622, 0
        %v3695 = vsel %vm1676, %v3623, 0
        %v3698 = vsel %vm1676, %v3624, 0
        %v3701 = vsel %vm1676, %v3625, 0
        %v3704 = vsel %vm1676, %v3626, 0
        %v3707 = vsel %vm1676, %v3627, 0
        %v3710 = vsel %vm1676, %v3628, 0
        %v3713 = vsel %vm1676, %v3629, 0
        %v3716 = vsel %vm1676, %v3630, 0
        %v3719 = vsel %vm1676, %v3631, 0
        %v3722 = vsel %vm1676, %v3632, 0
        %v3725 = vsel %vm1676, %v3633, 0
        %v3728 = vsel %vm1676, %v3634, 0
        %v3731 = vsel %vm1676, %v3635, 0
        %v3734 = vsel %vm1676, %v3636, 0
        %v3737 = vsel %vm1676, %v3637, 0
        %v3740 = vsel %vm1676, %v3638, 0
        %v3743 = vsel %vm1676, %v3639, 0
        %3745 = vmatprep.subr.mxu0 0.0
        %3746 = vmatpush1.xpose.msra.mxu0 %v3650
        %3747 = vmatprep.subr.mxu0 0.0
        %3748 = vmatpush1.xpose.msra.mxu0 %v3653
        %3749 = vmatprep.subr.mxu0 0.0
        %3750 = vmatpush1.xpose.msra.mxu0 %v3656
        %3751 = vmatprep.subr.mxu0 0.0
        %3752 = vmatpush1.xpose.msra.mxu0 %v3659
        %3753 = vmatprep.subr.mxu0 0.0
        %3754 = vmatpush1.xpose.msra.mxu0 %v3662
        %3755 = vmatprep.subr.mxu0 0.0
        %3756 = vmatpush1.xpose.msra.mxu0 %v3665
        %3757 = vmatprep.subr.mxu0 0.0
        %3758 = vmatpush1.xpose.msra.mxu0 %v3668
        %3759 = vmatprep.subr.mxu0 0.0
        %3760 = vmatpush1.xpose.msra.mxu0 %v3671
        %3761 = vmatprep.subr.mxu0 0.0
        %3762 = vmatpush1.xpose.msra.mxu0 %v3674
        %3763 = vmatprep.subr.mxu0 0.0
        %3764 = vmatpush1.xpose.msra.mxu0 %v3677
        %3765 = vmatprep.subr.mxu0 0.0
        %3766 = vmatpush1.xpose.msra.mxu0 %v3680
        %3767 = vmatprep.subr.mxu0 0.0
        %3768 = vmatpush1.xpose.msra.mxu0 %v3683
        %3769 = vmatprep.subr.mxu0 0.0
        %3770 = vmatpush1.xpose.msra.mxu0 %v3686
        %3771 = vmatprep.subr.mxu0 0.0
        %3772 = vmatpush1.xpose.msra.mxu0 %v3689
        %3773 = vmatprep.subr.mxu0 0.0
        %3774 = vmatpush1.xpose.msra.mxu0 %v3692
        %3775 = vmatprep.subr.mxu0 0.0
        %3776 = vmatpush1.xpose.msra.mxu0 %v3695
        %3777 = vmatprep.subr.mxu0 0.0
        %3778 = vmatpush1.xpose.msra.mxu0 %v3698
        %3779 = vmatprep.subr.mxu0 0.0
        %3780 = vmatpush1.xpose.msra.mxu0 %v3701
        %3781 = vmatprep.subr.mxu0 0.0
        %3782 = vmatpush1.xpose.msra.mxu0 %v3704
        %3783 = vmatprep.subr.mxu0 0.0
        %3784 = vmatpush1.xpose.msra.mxu0 %v3707
        %3785 = vmatprep.subr.mxu0 0.0
        %3786 = vmatpush1.xpose.msra.mxu0 %v3710
        %3787 = vmatprep.subr.mxu0 0.0
        %3788 = vmatpush1.xpose.msra.mxu0 %v3713
        %3789 = vmatprep.subr.mxu0 0.0
        %3790 = vmatpush1.xpose.msra.mxu0 %v3716
        %3791 = vmatprep.subr.mxu0 0.0
        %3792 = vmatpush1.xpose.msra.mxu0 %v3719
        %3793 = vmatprep.subr.mxu0 0.0
        %3794 = vmatpush1.xpose.msra.mxu0 %v3722
        %3795 = vmatprep.subr.mxu0 0.0
        %3796 = vmatpush1.xpose.msra.mxu0 %v3725
        %3797 = vmatprep.subr.mxu0 0.0
        %3798 = vmatpush1.xpose.msra.mxu0 %v3728
        %3799 = vmatprep.subr.mxu0 0.0
        %3800 = vmatpush1.xpose.msra.mxu0 %v3731
        %3801 = vmatprep.subr.mxu0 0.0
        %3802 = vmatpush1.xpose.msra.mxu0 %v3734
        %3803 = vmatprep.subr.mxu0 0.0
        %3804 = vmatpush1.xpose.msra.mxu0 %v3737
        %3805 = vmatprep.subr.mxu0 0.0
        %3806 = vmatpush1.xpose.msra.mxu0 %v3740
        %3807 = vmatprep.subr.mxu0 0.0
        %3808 = vmatpush1.xpose.msra.mxu0 %v3743
        %3809 = vmatprep.mubr.f32.mxu0 0.0
        %3810 = vmatmul.mubr.f32.gmra.mrb[0].mxu0 %v3647
        %v3811 = vpop.f32.mrb[0].mxu0
        %v3812 = vadd.f32 %v3644, %v3811
        %v3813 = vpop.f32.mrb[0].mxu0
        %v3814 = vadd.f32 %v3644, %v3813
        %3815 = vdwg.mxu0
        %vm3816 = vcmp.gt.f32.partialorder %v3812, 0.0
        %vm3817 = vcmp.gt.f32.partialorder %v3814, 0.0
        %v3818 = vmul.f32 %v3812, 0.01
        %v3819 = vmul.f32 %v3814, 0.01
        %v3820 = vsel %vm3816, %v3812, %v3818
        %v3821 = vsel %vm3817, %v3814, %v3819
        %v3822 = vadd.f32 %v3820, %v2183
        %v3823 = vadd.f32 %v3821, %v2184
        %v3824 = vmul.f32 %v3822, 0.5
        %v3825 = vmul.f32 %v3823, 0.5
        %v3828 = vcombine.low %v3824, %v3825
        %3830 = vst [vmem:[%s271] sm:$0xff] %v3828
        %s3831 = sand.u32 %s181, 1
        %s3832 = scalar_lea.sflag [#allocation6], %s3831
        %s3833 = sand.u32 %s181, 1
        %s3834 = smul.addr %s3833, 8
        %s3835 = scalar_lea.vmem [#allocation5], %s3834
        // Predicated region
        $region49: #{tpu_custom_call.1} parent=47 // pred_check
          %p3836 = pneg %p191
        $region50: #{tpu_custom_call.1} parent=47 // pred_check_branch
          %3838 = sbr.rel (%p3836) target = $region52
        $region51: #{tpu_custom_call.1} parent=47 // pred_region
          %s3840 = ssub.s32 128, 128
          %3841 = vsyncadd %s3832, %s3840
          %s3842 = smul.addr %s21, 2
          %s3843 = smul.addr %s3842, 64
          %s3844 = scalar_lea.hbm %s7, %s3843
          %s3846 = sshll.u32 %s3835, 4
          %s3847 = int_to_ptr.vmem [resolvable:$true] %s3846
          %3849 = dma.vmem_to_hbm [thread:$0]  %s3847, 128, %s3844, %s3832
        $region52: #{tpu_custom_call.1} parent=47 // pred_fallthru
          _
      $region48: #{tpu_custom_call.1} parent=5 // pred_fallthru
        _
      %p3850 = scmp.le.s32.totalorder 2, %s16
      // Predicated region
      $region53: #{tpu_custom_call.1} parent=5 // pred_check
        %p3851 = pneg %p3850
      $region54: #{tpu_custom_call.1} parent=5 // pred_check_branch
        %3853 = sbr.rel (%p3851) target = $region56
      $region55: #{tpu_custom_call.1} parent=5 // pred_region
        %s3854 = ssub.s32 %s16, 2
        // Predicated region
        $region57: #{tpu_custom_call.1} parent=55 // pred_check
          %p3855 = pneg %p197
        $region58: #{tpu_custom_call.1} parent=55 // pred_check_branch
          %3857 = sbr.rel (%p3855) target = $region60
        $region59: #{tpu_custom_call.1} parent=55 // pred_region
          %s3858 = sand.u32 %s182, 1
          %s3859 = scalar_lea.sflag [#allocation6], %s3858
          %s3860 = sand.u32 %s182, 1
          %s3861 = smul.addr %s3860, 8
          %s3862 = scalar_lea.vmem [#allocation5], %s3861
          %3863 = dma.done %s3859, 128
        $region60: #{tpu_custom_call.1} parent=55 // pred_fallthru
          _
      $region56: #{tpu_custom_call.1} parent=5 // pred_fallthru
        _
    $region6: #{tpu_custom_call.1} parent=1 // loop_footer
      %s20 = sadd.s32 1, %s16
    $region7: #{tpu_custom_call.1} parent=1 // loop_footer_branch
      %15 = sbr.rel target = $region3
    $region8: #{tpu_custom_call.1} parent=1 // loop_exit
      _
    %3864 = vsyncpa [#allocation6], 1
    %s3865 = scalar_lea.sflag [#allocation6], 1
    %3866 = vsyncpa %s3865, 1

</llo_original>
